<compile_context>
chip_gen: v5e
topology: v5e:2x2
jax: 0.10.0
libtpu: 0.0.40
codegen_flags: <defaults>
</compile_context>

<pallas_src>
import jax
import jax.numpy as jnp
from jax.experimental import pallas as pl
from jax.experimental.pallas import tpu as pltpu


# ---------------------------------------------------------------------------
# Fused BasicBlock kernel
# ---------------------------------------------------------------------------

def _make_basic_block_kernel(*, stride, OH, OW, Cin, planes, has_sc):
    s = stride
    M = OH * OW
    taps = [(kh, kw) for kh in range(3) for kw in range(3)]

    def body(x_ref, w1_ref, b1_ref, w2_ref, b2_ref, *rest):
        if has_sc:
            wsc_ref, bsc_ref, o_ref, hpad_ref = rest
        else:
            o_ref, hpad_ref = rest

        # ---- conv1 (3x3, stride folded into the phase layout) + bn1 + relu ----
        # bf16 operands on the MXU, f32 accumulation.
        acc = jnp.zeros((M, planes), jnp.float32)
        for t, (kh, kw) in enumerate(taps):
            ph = (kh % s) * s + (kw % s)             # which stride-phase plane
            patch = x_ref[ph, pl.ds(kh // s, OH), pl.ds(kw // s, OW), :]
            acc = acc + jnp.dot(patch.reshape(M, Cin), w1_ref[t],
                                preferred_element_type=jnp.float32)
        h = jnp.maximum(acc + b1_ref[...], 0.0)       # bias-only epilogue (f32)

        # Stage h into a zero-padded VMEM scratch so conv2 never touches HBM.
        hpad_ref[...] = jnp.zeros_like(hpad_ref)
        hpad_ref[pl.ds(1, OH), pl.ds(1, OW), :] = h.reshape(OH, OW, planes)

        # ---- conv2 (3x3, stride 1) + bn2 ----
        acc2 = jnp.zeros((M, planes), jnp.float32)
        for t, (kh, kw) in enumerate(taps):
            patch = hpad_ref[pl.ds(kh, OH), pl.ds(kw, OW), :]
            acc2 = acc2 + jnp.dot(
                patch.reshape(M, planes).astype(jnp.bfloat16), w2_ref[t],
                preferred_element_type=jnp.float32)
        out = acc2 + b2_ref[...]

        # ---- shortcut: identity, or fused 1x1 conv + bn on the same VMEM tile ----
        ph_c = (1 % s) * s + (1 % s)                  # phase of x_pad[s*i+1, s*j+1]
        q_c = 1 // s
        x_c = x_ref[ph_c, pl.ds(q_c, OH), pl.ds(q_c, OW), :]
        if has_sc:
            res = jnp.dot(x_c.reshape(M, Cin), wsc_ref[0],
                          preferred_element_type=jnp.float32) + bsc_ref[...]
        else:
            res = x_c.reshape(M, planes).astype(jnp.float32)

        out = jnp.maximum(out + res, 0.0)             # add THEN relu (PyTorch order)
        o_ref[...] = out.reshape(1, OH, OW, planes).astype(o_ref.dtype)

    return body


def basic_block(x_nhwc, p):
    """Fused ResNet BasicBlock forward. x_nhwc: (N,H,W,Cin) -> (N,OH,OW,planes) bf16."""
    stride = int(p["stride"])
    N, H, W, Cin = x_nhwc.shape
    planes = p["w1"].shape[0]
    assert p["w1"].shape == (planes, Cin, 3, 3)
    has_sc = "sc_w" in p
    if not has_sc:
        assert stride == 1 and Cin == planes

    OH = (H + 2 - 3) // stride + 1
    OW = (W + 2 - 3) // stride + 1
    s = stride

    # --- zero-pad (padding=1) and phase-decompose for the stride, in bf16 ---
    xb = x_nhwc.astype(jnp.bfloat16)
    xp = jnp.pad(xb, ((0, 0), (1, 1), (1, 1), (0, 0)))
    HP, WP = H + 2, W + 2
    eh, ew = (-HP) % s, (-WP) % s
    if eh or ew:
        xp = jnp.pad(xp, ((0, 0), (0, eh), (0, ew), (0, 0)))
        HP += eh
        WP += ew
    HPs, WPs = HP // s, WP // s
    # (N, HP, WP, C) -> (N, s, s, HP/s, WP/s, C) -> (N*s*s, HP/s, WP/s, C)
    xph = xp.reshape(N, HPs, s, WPs, s, Cin).transpose(0, 2, 4, 1, 3, 5)
    xph = xph.reshape(N * s * s, HPs, WPs, Cin)

    # --- fold BN scale into weights (bias-only epilogue in the kernel) ---
    def prep_w(w_pt, scale):
        cout, cin = w_pt.shape[0], w_pt.shape[1]
        w = w_pt * scale[:, None, None, None]
        w = jnp.transpose(w, (2, 3, 1, 0)).reshape(-1, cin, cout)   # (KH*KW, Cin, Cout)
        return w.astype(jnp.bfloat16)

    f32 = jnp.float32
    w1 = prep_w(p["w1"], p["s1"])
    b1 = p["b1"].reshape(1, planes).astype(f32)
    w2 = prep_w(p["w2"], p["s2"])
    b2 = p["b2"].reshape(1, planes).astype(f32)

    args = [xph, w1, b1, w2, b2]
    in_specs = [
        pl.BlockSpec((s * s, HPs, WPs, Cin), lambda n: (n, 0, 0, 0)),
        pl.BlockSpec((9, Cin, planes), lambda n: (0, 0, 0)),
        pl.BlockSpec((1, planes), lambda n: (0, 0)),
        pl.BlockSpec((9, planes, planes), lambda n: (0, 0, 0)),
        pl.BlockSpec((1, planes), lambda n: (0, 0)),
    ]
    if has_sc:
        wsc = prep_w(p["sc_w"], p["sc_s"])
        bsc = p["sc_b"].reshape(1, planes).astype(f32)
        args += [wsc, bsc]
        in_specs += [
            pl.BlockSpec((1, Cin, planes), lambda n: (0, 0, 0)),
            pl.BlockSpec((1, planes), lambda n: (0, 0)),
        ]

    # TODO(synk): for large feature maps / channel counts, tile OH and planes
    #             over extra grid axes instead of holding the full block in VMEM.
    kernel = _make_basic_block_kernel(
        stride=s, OH=OH, OW=OW, Cin=Cin, planes=planes, has_sc=has_sc)

    return pl.pallas_call(
        kernel,
        out_shape=jax.ShapeDtypeStruct((N, OH, OW, planes), jnp.bfloat16),
        grid=(N,),
        in_specs=in_specs,
        out_specs=pl.BlockSpec((1, OH, OW, planes), lambda n: (n, 0, 0, 0)),
        scratch_shapes=[pltpu.VMEM((OH + 2, OW + 2, planes), jnp.float32)],
        compiler_params=pltpu.CompilerParams(
            dimension_semantics=("parallel",)),
    )(*args)


# ---------------------------------------------------------------------------
# Pure-JAX reference (mirrors the kernel's bf16 operand rounding / f32 accum)
# ---------------------------------------------------------------------------

def basic_block_ref(x_nhwc, p):
    stride = int(p["stride"])
    f32 = jnp.float32

    def bf(a):
        return a.astype(jnp.bfloat16).astype(f32)

    def conv(x, w_pt, scale, s, pad):
        w = w_pt * scale[:, None, None, None]                 # fold BN scale
        w = jnp.transpose(w, (2, 3, 1, 0))                    # -> HWIO
        return jax.lax.conv_general_dilated(
            bf(x), bf(w), window_strides=(s, s),
            padding=((pad, pad), (pad, pad)),
            dimension_numbers=("NHWC", "HWIO", "NHWC"),
            precision=jax.lax.Precision.HIGHEST)

    x = x_nhwc.astype(f32)
    h = jnp.maximum(conv(x, p["w1"], p["s1"], stride, 1) + p["b1"], 0.0)
    h = bf(h)                                                 # kernel stages h in low precision
    out = conv(h, p["w2"], p["s2"], 1, 1) + p["b2"]
    if "sc_w" in p:
        res = conv(x, p["sc_w"], p["sc_s"], stride, 0) + p["sc_b"]
    else:
        res = bf(x)
    return jnp.maximum(out + res, 0.0)


# ---------------------------------------------------------------------------
# Deterministic parameter init (PyTorch layouts, eval-mode BN folded)
# ---------------------------------------------------------------------------

def init_block_params(key, in_planes, planes, stride):
    ks = jax.random.split(key, 6)

    def conv_w(k, cin, cout, ksize):
        fan_in = cin * ksize * ksize
        return jax.random.normal(k, (cout, cin, ksize, ksize), jnp.float32) \
            * (1.0 / fan_in ** 0.5)

    def bn(k, c):
        k1, k2, k3, k4 = jax.random.split(k, 4)
        gamma = jax.random.uniform(k1, (c,), jnp.float32, 0.5, 1.5)
        beta = 0.1 * jax.random.normal(k2, (c,), jnp.float32)
        mean = 0.1 * jax.random.normal(k3, (c,), jnp.float32)
        var = jax.random.uniform(k4, (c,), jnp.float32, 0.5, 1.5)
        scale = gamma / jnp.sqrt(var + 1e-5)
        bias = beta - mean * scale
        return scale, bias

    p = {"stride": stride}
    p["w1"] = conv_w(ks[0], in_planes, planes, 3)
    p["s1"], p["b1"] = bn(ks[1], planes)
    p["w2"] = conv_w(ks[2], planes, planes, 3)
    p["s2"], p["b2"] = bn(ks[3], planes)
    if stride != 1 or in_planes != planes:
        p["sc_w"] = conv_w(ks[4], in_planes, planes, 1)
        p["sc_s"], p["sc_b"] = bn(ks[5], planes)
    return p


# ---------------------------------------------------------------------------
# Main
# ---------------------------------------------------------------------------

if __name__ == "__main__":
    root = jax.random.PRNGKey(0)
    kx, k1, k2 = jax.random.split(root, 3)

    # PyTorch-style NCHW input: batch=2, channels=64, 16x16 spatial.
    x_nchw = jax.random.normal(kx, (2, 64, 16, 16), jnp.float32)

    # Two BasicBlock configs: downsampling block (1x1-conv shortcut) and
    # identity-shortcut block. Both produce lane-dense (128-ch) outputs.
    p1 = init_block_params(k1, in_planes=64, planes=128, stride=2)
    p2 = init_block_params(k2, in_planes=128, planes=128, stride=1)

    @jax.jit
    def forward(x):
        y = jnp.transpose(x, (0, 2, 3, 1))     # NCHW -> NHWC
        y = basic_block(y, p1)
        y = basic_block(y, p2)
        return jnp.transpose(y, (0, 3, 1, 2))  # back to NCHW

    out = forward(x_nchw)
    jax.block_until_ready(out)

    # Reference check.
    x_nhwc = jnp.transpose(x_nchw, (0, 2, 3, 1))
    ref = basic_block_ref(basic_block_ref(x_nhwc, p1), p2)
    ref = jnp.transpose(ref, (0, 3, 1, 2))

    assert out.shape == (2, 128, 8, 8)
    assert bool(jnp.all(jnp.isfinite(out)))
    out_f = out.astype(jnp.float32)
    ok = bool(jnp.all(jnp.abs(out_f - ref) <= 2e-2 + 2e-2 * jnp.abs(ref)))
    assert ok, f"max abs err = {float(jnp.max(jnp.abs(out_f - ref)))}"
    print("KERNEL_OK")
</pallas_src>

<mosaic_0001>
module attributes {stable_mosaic.version = 11 : i64} {
  func.func @body(%arg0: i32, %arg1: memref<4x9x9x64xbf16, #tpu.memory_space<vmem>>, %arg2: memref<9x64x128xbf16, #tpu.memory_space<vmem>>, %arg3: memref<1x128xf32, #tpu.memory_space<vmem>>, %arg4: memref<9x128x128xbf16, #tpu.memory_space<vmem>>, %arg5: memref<1x128xf32, #tpu.memory_space<vmem>>, %arg6: memref<1x64x128xbf16, #tpu.memory_space<vmem>>, %arg7: memref<1x128xf32, #tpu.memory_space<vmem>>, %arg8: memref<1x8x8x128xbf16, #tpu.memory_space<vmem>>, %arg9: memref<10x10x128xf32, #tpu.memory_space<vmem>>) attributes {dimension_semantics = [#tpu.dimension_semantics<parallel>], iteration_bounds = array<i64: 2>, scalar_prefetch = 0 : i64, scratch_operands = 1 : i64, tpu.core_type = #tpu.core_type<tc>, window_params = [{transform_indices = @transform_0, window_bounds = array<i64: 4, 9, 9, 64>}, {pipeline_mode = #tpu.pipeline_mode<synchronous>, transform_indices = @transform_1, window_bounds = array<i64: 9, 64, 128>}, {pipeline_mode = #tpu.pipeline_mode<synchronous>, transform_indices = @transform_2, window_bounds = array<i64: 1, 128>}, {pipeline_mode = #tpu.pipeline_mode<synchronous>, transform_indices = @transform_3, window_bounds = array<i64: 9, 128, 128>}, {pipeline_mode = #tpu.pipeline_mode<synchronous>, transform_indices = @transform_4, window_bounds = array<i64: 1, 128>}, {pipeline_mode = #tpu.pipeline_mode<synchronous>, transform_indices = @transform_5, window_bounds = array<i64: 1, 64, 128>}, {pipeline_mode = #tpu.pipeline_mode<synchronous>, transform_indices = @transform_6, window_bounds = array<i64: 1, 128>}, {transform_indices = @transform_7, window_bounds = array<i64: 1, 8, 8, 128>}]} {
    %cst = arith.constant 0.000000e+00 : f32
    %0 = vector.broadcast %cst : f32 to vector<64x128xf32>
    %c0 = arith.constant 0 : index
    %c0_0 = arith.constant 0 : index
    %c0_1 = arith.constant 0 : index
    %c0_2 = arith.constant 0 : index
    %1 = vector.load %arg1[%c0, %c0_0, %c0_1, %c0_2] : memref<4x9x9x64xbf16, #tpu.memory_space<vmem>>, vector<1x8x8x64xbf16>
    %2 = vector.shape_cast %1 : vector<1x8x8x64xbf16> to vector<8x8x64xbf16>
    %3 = vector.shape_cast %2 : vector<8x8x64xbf16> to vector<64x64xbf16>
    %c0_3 = arith.constant 0 : index
    %c0_4 = arith.constant 0 : index
    %c0_5 = arith.constant 0 : index
    %4 = vector.load %arg2[%c0_3, %c0_4, %c0_5] : memref<9x64x128xbf16, #tpu.memory_space<vmem>>, vector<1x64x128xbf16>
    %5 = vector.shape_cast %4 : vector<1x64x128xbf16> to vector<64x128xbf16>
    %cst_6 = arith.constant dense<0.000000e+00> : vector<64x128xf32>
    %6 = tpu.matmul %3, %5, %cst_6 {dimension_numbers = #tpu.dot_dimension_numbers<[1], [0], [0], [1], [0, 0, 1, 1], [], []>} : vector<64x64xbf16>, vector<64x128xbf16>, vector<64x128xf32> -> vector<64x128xf32>
    %7 = arith.addf %0, %6 : vector<64x128xf32>
    %c1 = arith.constant 1 : index
    %c0_7 = arith.constant 0 : index
    %c0_8 = arith.constant 0 : index
    %c0_9 = arith.constant 0 : index
    %8 = vector.load %arg1[%c1, %c0_7, %c0_8, %c0_9] : memref<4x9x9x64xbf16, #tpu.memory_space<vmem>>, vector<1x8x8x64xbf16>
    %9 = vector.shape_cast %8 : vector<1x8x8x64xbf16> to vector<8x8x64xbf16>
    %10 = vector.shape_cast %9 : vector<8x8x64xbf16> to vector<64x64xbf16>
    %c1_10 = arith.constant 1 : index
    %c0_11 = arith.constant 0 : index
    %c0_12 = arith.constant 0 : index
    %11 = vector.load %arg2[%c1_10, %c0_11, %c0_12] : memref<9x64x128xbf16, #tpu.memory_space<vmem>>, vector<1x64x128xbf16>
    %12 = vector.shape_cast %11 : vector<1x64x128xbf16> to vector<64x128xbf16>
    %cst_13 = arith.constant dense<0.000000e+00> : vector<64x128xf32>
    %13 = tpu.matmul %10, %12, %cst_13 {dimension_numbers = #tpu.dot_dimension_numbers<[1], [0], [0], [1], [0, 0, 1, 1], [], []>} : vector<64x64xbf16>, vector<64x128xbf16>, vector<64x128xf32> -> vector<64x128xf32>
    %14 = arith.addf %7, %13 : vector<64x128xf32>
    %c0_14 = arith.constant 0 : index
    %c0_15 = arith.constant 0 : index
    %c1_16 = arith.constant 1 : index
    %c0_17 = arith.constant 0 : index
    %15 = vector.load %arg1[%c0_14, %c0_15, %c1_16, %c0_17] : memref<4x9x9x64xbf16, #tpu.memory_space<vmem>>, vector<1x8x8x64xbf16>
    %16 = vector.shape_cast %15 : vector<1x8x8x64xbf16> to vector<8x8x64xbf16>
    %17 = vector.shape_cast %16 : vector<8x8x64xbf16> to vector<64x64xbf16>
    %c2 = arith.constant 2 : index
    %c0_18 = arith.constant 0 : index
    %c0_19 = arith.constant 0 : index
    %18 = vector.load %arg2[%c2, %c0_18, %c0_19] : memref<9x64x128xbf16, #tpu.memory_space<vmem>>, vector<1x64x128xbf16>
    %19 = vector.shape_cast %18 : vector<1x64x128xbf16> to vector<64x128xbf16>
    %cst_20 = arith.constant dense<0.000000e+00> : vector<64x128xf32>
    %20 = tpu.matmul %17, %19, %cst_20 {dimension_numbers = #tpu.dot_dimension_numbers<[1], [0], [0], [1], [0, 0, 1, 1], [], []>} : vector<64x64xbf16>, vector<64x128xbf16>, vector<64x128xf32> -> vector<64x128xf32>
    %21 = arith.addf %14, %20 : vector<64x128xf32>
    %c2_21 = arith.constant 2 : index
    %c0_22 = arith.constant 0 : index
    %c0_23 = arith.constant 0 : index
    %c0_24 = arith.constant 0 : index
    %22 = vector.load %arg1[%c2_21, %c0_22, %c0_23, %c0_24] : memref<4x9x9x64xbf16, #tpu.memory_space<vmem>>, vector<1x8x8x64xbf16>
    %23 = vector.shape_cast %22 : vector<1x8x8x64xbf16> to vector<8x8x64xbf16>
    %24 = vector.shape_cast %23 : vector<8x8x64xbf16> to vector<64x64xbf16>
    %c3 = arith.constant 3 : index
    %c0_25 = arith.constant 0 : index
    %c0_26 = arith.constant 0 : index
    %25 = vector.load %arg2[%c3, %c0_25, %c0_26] : memref<9x64x128xbf16, #tpu.memory_space<vmem>>, vector<1x64x128xbf16>
    %26 = vector.shape_cast %25 : vector<1x64x128xbf16> to vector<64x128xbf16>
    %cst_27 = arith.constant dense<0.000000e+00> : vector<64x128xf32>
    %27 = tpu.matmul %24, %26, %cst_27 {dimension_numbers = #tpu.dot_dimension_numbers<[1], [0], [0], [1], [0, 0, 1, 1], [], []>} : vector<64x64xbf16>, vector<64x128xbf16>, vector<64x128xf32> -> vector<64x128xf32>
    %28 = arith.addf %21, %27 : vector<64x128xf32>
    %c3_28 = arith.constant 3 : index
    %c0_29 = arith.constant 0 : index
    %c0_30 = arith.constant 0 : index
    %c0_31 = arith.constant 0 : index
    %29 = vector.load %arg1[%c3_28, %c0_29, %c0_30, %c0_31] : memref<4x9x9x64xbf16, #tpu.memory_space<vmem>>, vector<1x8x8x64xbf16>
    %30 = vector.shape_cast %29 : vector<1x8x8x64xbf16> to vector<8x8x64xbf16>
    %31 = vector.shape_cast %30 : vector<8x8x64xbf16> to vector<64x64xbf16>
    %c4 = arith.constant 4 : index
    %c0_32 = arith.constant 0 : index
    %c0_33 = arith.constant 0 : index
    %32 = vector.load %arg2[%c4, %c0_32, %c0_33] : memref<9x64x128xbf16, #tpu.memory_space<vmem>>, vector<1x64x128xbf16>
    %33 = vector.shape_cast %32 : vector<1x64x128xbf16> to vector<64x128xbf16>
    %cst_34 = arith.constant dense<0.000000e+00> : vector<64x128xf32>
    %34 = tpu.matmul %31, %33, %cst_34 {dimension_numbers = #tpu.dot_dimension_numbers<[1], [0], [0], [1], [0, 0, 1, 1], [], []>} : vector<64x64xbf16>, vector<64x128xbf16>, vector<64x128xf32> -> vector<64x128xf32>
    %35 = arith.addf %28, %34 : vector<64x128xf32>
    %c2_35 = arith.constant 2 : index
    %c0_36 = arith.constant 0 : index
    %c1_37 = arith.constant 1 : index
    %c0_38 = arith.constant 0 : index
    %36 = vector.load %arg1[%c2_35, %c0_36, %c1_37, %c0_38] : memref<4x9x9x64xbf16, #tpu.memory_space<vmem>>, vector<1x8x8x64xbf16>
    %37 = vector.shape_cast %36 : vector<1x8x8x64xbf16> to vector<8x8x64xbf16>
    %38 = vector.shape_cast %37 : vector<8x8x64xbf16> to vector<64x64xbf16>
    %c5 = arith.constant 5 : index
    %c0_39 = arith.constant 0 : index
    %c0_40 = arith.constant 0 : index
    %39 = vector.load %arg2[%c5, %c0_39, %c0_40] : memref<9x64x128xbf16, #tpu.memory_space<vmem>>, vector<1x64x128xbf16>
    %40 = vector.shape_cast %39 : vector<1x64x128xbf16> to vector<64x128xbf16>
    %cst_41 = arith.constant dense<0.000000e+00> : vector<64x128xf32>
    %41 = tpu.matmul %38, %40, %cst_41 {dimension_numbers = #tpu.dot_dimension_numbers<[1], [0], [0], [1], [0, 0, 1, 1], [], []>} : vector<64x64xbf16>, vector<64x128xbf16>, vector<64x128xf32> -> vector<64x128xf32>
    %42 = arith.addf %35, %41 : vector<64x128xf32>
    %c0_42 = arith.constant 0 : index
    %c1_43 = arith.constant 1 : index
    %c0_44 = arith.constant 0 : index
    %c0_45 = arith.constant 0 : index
    %43 = vector.load %arg1[%c0_42, %c1_43, %c0_44, %c0_45] : memref<4x9x9x64xbf16, #tpu.memory_space<vmem>>, vector<1x8x8x64xbf16>
    %44 = vector.shape_cast %43 : vector<1x8x8x64xbf16> to vector<8x8x64xbf16>
    %45 = vector.shape_cast %44 : vector<8x8x64xbf16> to vector<64x64xbf16>
    %c6 = arith.constant 6 : index
    %c0_46 = arith.constant 0 : index
    %c0_47 = arith.constant 0 : index
    %46 = vector.load %arg2[%c6, %c0_46, %c0_47] : memref<9x64x128xbf16, #tpu.memory_space<vmem>>, vector<1x64x128xbf16>
    %47 = vector.shape_cast %46 : vector<1x64x128xbf16> to vector<64x128xbf16>
    %cst_48 = arith.constant dense<0.000000e+00> : vector<64x128xf32>
    %48 = tpu.matmul %45, %47, %cst_48 {dimension_numbers = #tpu.dot_dimension_numbers<[1], [0], [0], [1], [0, 0, 1, 1], [], []>} : vector<64x64xbf16>, vector<64x128xbf16>, vector<64x128xf32> -> vector<64x128xf32>
    %49 = arith.addf %42, %48 : vector<64x128xf32>
    %c1_49 = arith.constant 1 : index
    %c1_50 = arith.constant 1 : index
    %c0_51 = arith.constant 0 : index
    %c0_52 = arith.constant 0 : index
    %50 = vector.load %arg1[%c1_49, %c1_50, %c0_51, %c0_52] : memref<4x9x9x64xbf16, #tpu.memory_space<vmem>>, vector<1x8x8x64xbf16>
    %51 = vector.shape_cast %50 : vector<1x8x8x64xbf16> to vector<8x8x64xbf16>
    %52 = vector.shape_cast %51 : vector<8x8x64xbf16> to vector<64x64xbf16>
    %c7 = arith.constant 7 : index
    %c0_53 = arith.constant 0 : index
    %c0_54 = arith.constant 0 : index
    %53 = vector.load %arg2[%c7, %c0_53, %c0_54] : memref<9x64x128xbf16, #tpu.memory_space<vmem>>, vector<1x64x128xbf16>
    %54 = vector.shape_cast %53 : vector<1x64x128xbf16> to vector<64x128xbf16>
    %cst_55 = arith.constant dense<0.000000e+00> : vector<64x128xf32>
    %55 = tpu.matmul %52, %54, %cst_55 {dimension_numbers = #tpu.dot_dimension_numbers<[1], [0], [0], [1], [0, 0, 1, 1], [], []>} : vector<64x64xbf16>, vector<64x128xbf16>, vector<64x128xf32> -> vector<64x128xf32>
    %56 = arith.addf %49, %55 : vector<64x128xf32>
    %c0_56 = arith.constant 0 : index
    %c1_57 = arith.constant 1 : index
    %c1_58 = arith.constant 1 : index
    %c0_59 = arith.constant 0 : index
    %57 = vector.load %arg1[%c0_56, %c1_57, %c1_58, %c0_59] : memref<4x9x9x64xbf16, #tpu.memory_space<vmem>>, vector<1x8x8x64xbf16>
    %58 = vector.shape_cast %57 : vector<1x8x8x64xbf16> to vector<8x8x64xbf16>
    %59 = vector.shape_cast %58 : vector<8x8x64xbf16> to vector<64x64xbf16>
    %c8 = arith.constant 8 : index
    %c0_60 = arith.constant 0 : index
    %c0_61 = arith.constant 0 : index
    %60 = vector.load %arg2[%c8, %c0_60, %c0_61] : memref<9x64x128xbf16, #tpu.memory_space<vmem>>, vector<1x64x128xbf16>
    %61 = vector.shape_cast %60 : vector<1x64x128xbf16> to vector<64x128xbf16>
    %cst_62 = arith.constant dense<0.000000e+00> : vector<64x128xf32>
    %62 = tpu.matmul %59, %61, %cst_62 {dimension_numbers = #tpu.dot_dimension_numbers<[1], [0], [0], [1], [0, 0, 1, 1], [], []>} : vector<64x64xbf16>, vector<64x128xbf16>, vector<64x128xf32> -> vector<64x128xf32>
    %63 = arith.addf %56, %62 : vector<64x128xf32>
    %c0_63 = arith.constant 0 : index
    %c0_64 = arith.constant 0 : index
    %64 = vector.load %arg3[%c0_63, %c0_64] : memref<1x128xf32, #tpu.memory_space<vmem>>, vector<1x128xf32>
    %65 = vector.broadcast %64 : vector<1x128xf32> to vector<64x128xf32>
    %66 = arith.addf %63, %65 : vector<64x128xf32>
    %cst_65 = arith.constant 0.000000e+00 : f32
    %67 = vector.broadcast %cst_65 : f32 to vector<64x128xf32>
    %68 = arith.maximumf %66, %67 : vector<64x128xf32>
    %cst_66 = arith.constant 0.000000e+00 : f32
    %69 = vector.broadcast %cst_66 : f32 to vector<10x10x128xf32>
    %c0_67 = arith.constant 0 : index
    %c0_68 = arith.constant 0 : index
    %c0_69 = arith.constant 0 : index
    %70 = vector.load %arg9[%c0_67, %c0_68, %c0_69] : memref<10x10x128xf32, #tpu.memory_space<vmem>>, vector<10x10x128xf32>
    tpu.vector_store %arg9[%c0_67, %c0_68, %c0_69], %69 {strides = array<i32>} : memref<10x10x128xf32, #tpu.memory_space<vmem>>, vector<10x10x128xf32>,
    %71 = vector.shape_cast %68 : vector<64x128xf32> to vector<8x8x128xf32>
    %c1_70 = arith.constant 1 : index
    %c1_71 = arith.constant 1 : index
    %c0_72 = arith.constant 0 : index
    %72 = vector.load %arg9[%c1_70, %c1_71, %c0_72] : memref<10x10x128xf32, #tpu.memory_space<vmem>>, vector<8x8x128xf32>
    tpu.vector_store %arg9[%c1_70, %c1_71, %c0_72], %71 {strides = array<i32>} : memref<10x10x128xf32, #tpu.memory_space<vmem>>, vector<8x8x128xf32>,
    %cst_73 = arith.constant 0.000000e+00 : f32
    %73 = vector.broadcast %cst_73 : f32 to vector<64x128xf32>
    %c0_74 = arith.constant 0 : index
    %c0_75 = arith.constant 0 : index
    %c0_76 = arith.constant 0 : index
    %74 = vector.load %arg9[%c0_74, %c0_75, %c0_76] : memref<10x10x128xf32, #tpu.memory_space<vmem>>, vector<8x8x128xf32>
    %75 = vector.shape_cast %74 : vector<8x8x128xf32> to vector<64x128xf32>
    %76 = arith.truncf %75 : vector<64x128xf32> to vector<64x128xbf16>
    %c0_77 = arith.constant 0 : index
    %c0_78 = arith.constant 0 : index
    %c0_79 = arith.constant 0 : index
    %77 = vector.load %arg4[%c0_77, %c0_78, %c0_79] : memref<9x128x128xbf16, #tpu.memory_space<vmem>>, vector<1x128x128xbf16>
    %78 = vector.shape_cast %77 : vector<1x128x128xbf16> to vector<128x128xbf16>
    %cst_80 = arith.constant dense<0.000000e+00> : vector<64x128xf32>
    %79 = tpu.matmul %76, %78, %cst_80 {dimension_numbers = #tpu.dot_dimension_numbers<[1], [0], [0], [1], [0, 0, 1, 1], [], []>} : vector<64x128xbf16>, vector<128x128xbf16>, vector<64x128xf32> -> vector<64x128xf32>
    %80 = arith.addf %73, %79 : vector<64x128xf32>
    %c0_81 = arith.constant 0 : index
    %c1_82 = arith.constant 1 : index
    %c0_83 = arith.constant 0 : index
    %81 = vector.load %arg9[%c0_81, %c1_82, %c0_83] : memref<10x10x128xf32, #tpu.memory_space<vmem>>, vector<8x8x128xf32>
    %82 = vector.shape_cast %81 : vector<8x8x128xf32> to vector<64x128xf32>
    %83 = arith.truncf %82 : vector<64x128xf32> to vector<64x128xbf16>
    %c1_84 = arith.constant 1 : index
    %c0_85 = arith.constant 0 : index
    %c0_86 = arith.constant 0 : index
    %84 = vector.load %arg4[%c1_84, %c0_85, %c0_86] : memref<9x128x128xbf16, #tpu.memory_space<vmem>>, vector<1x128x128xbf16>
    %85 = vector.shape_cast %84 : vector<1x128x128xbf16> to vector<128x128xbf16>
    %cst_87 = arith.constant dense<0.000000e+00> : vector<64x128xf32>
    %86 = tpu.matmul %83, %85, %cst_87 {dimension_numbers = #tpu.dot_dimension_numbers<[1], [0], [0], [1], [0, 0, 1, 1], [], []>} : vector<64x128xbf16>, vector<128x128xbf16>, vector<64x128xf32> -> vector<64x128xf32>
    %87 = arith.addf %80, %86 : vector<64x128xf32>
    %c0_88 = arith.constant 0 : index
    %c2_89 = arith.constant 2 : index
    %c0_90 = arith.constant 0 : index
    %88 = vector.load %arg9[%c0_88, %c2_89, %c0_90] : memref<10x10x128xf32, #tpu.memory_space<vmem>>, vector<8x8x128xf32>
    %89 = vector.shape_cast %88 : vector<8x8x128xf32> to vector<64x128xf32>
    %90 = arith.truncf %89 : vector<64x128xf32> to vector<64x128xbf16>
    %c2_91 = arith.constant 2 : index
    %c0_92 = arith.constant 0 : index
    %c0_93 = arith.constant 0 : index
    %91 = vector.load %arg4[%c2_91, %c0_92, %c0_93] : memref<9x128x128xbf16, #tpu.memory_space<vmem>>, vector<1x128x128xbf16>
    %92 = vector.shape_cast %91 : vector<1x128x128xbf16> to vector<128x128xbf16>
    %cst_94 = arith.constant dense<0.000000e+00> : vector<64x128xf32>
    %93 = tpu.matmul %90, %92, %cst_94 {dimension_numbers = #tpu.dot_dimension_numbers<[1], [0], [0], [1], [0, 0, 1, 1], [], []>} : vector<64x128xbf16>, vector<128x128xbf16>, vector<64x128xf32> -> vector<64x128xf32>
    %94 = arith.addf %87, %93 : vector<64x128xf32>
    %c1_95 = arith.constant 1 : index
    %c0_96 = arith.constant 0 : index
    %c0_97 = arith.constant 0 : index
    %95 = vector.load %arg9[%c1_95, %c0_96, %c0_97] : memref<10x10x128xf32, #tpu.memory_space<vmem>>, vector<8x8x128xf32>
    %96 = vector.shape_cast %95 : vector<8x8x128xf32> to vector<64x128xf32>
    %97 = arith.truncf %96 : vector<64x128xf32> to vector<64x128xbf16>
    %c3_98 = arith.constant 3 : index
    %c0_99 = arith.constant 0 : index
    %c0_100 = arith.constant 0 : index
    %98 = vector.load %arg4[%c3_98, %c0_99, %c0_100] : memref<9x128x128xbf16, #tpu.memory_space<vmem>>, vector<1x128x128xbf16>
    %99 = vector.shape_cast %98 : vector<1x128x128xbf16> to vector<128x128xbf16>
    %cst_101 = arith.constant dense<0.000000e+00> : vector<64x128xf32>
    %100 = tpu.matmul %97, %99, %cst_101 {dimension_numbers = #tpu.dot_dimension_numbers<[1], [0], [0], [1], [0, 0, 1, 1], [], []>} : vector<64x128xbf16>, vector<128x128xbf16>, vector<64x128xf32> -> vector<64x128xf32>
    %101 = arith.addf %94, %100 : vector<64x128xf32>
    %c1_102 = arith.constant 1 : index
    %c1_103 = arith.constant 1 : index
    %c0_104 = arith.constant 0 : index
    %102 = vector.load %arg9[%c1_102, %c1_103, %c0_104] : memref<10x10x128xf32, #tpu.memory_space<vmem>>, vector<8x8x128xf32>
    %103 = vector.shape_cast %102 : vector<8x8x128xf32> to vector<64x128xf32>
    %104 = arith.truncf %103 : vector<64x128xf32> to vector<64x128xbf16>
    %c4_105 = arith.constant 4 : index
    %c0_106 = arith.constant 0 : index
    %c0_107 = arith.constant 0 : index
    %105 = vector.load %arg4[%c4_105, %c0_106, %c0_107] : memref<9x128x128xbf16, #tpu.memory_space<vmem>>, vector<1x128x128xbf16>
    %106 = vector.shape_cast %105 : vector<1x128x128xbf16> to vector<128x128xbf16>
    %cst_108 = arith.constant dense<0.000000e+00> : vector<64x128xf32>
    %107 = tpu.matmul %104, %106, %cst_108 {dimension_numbers = #tpu.dot_dimension_numbers<[1], [0], [0], [1], [0, 0, 1, 1], [], []>} : vector<64x128xbf16>, vector<128x128xbf16>, vector<64x128xf32> -> vector<64x128xf32>
    %108 = arith.addf %101, %107 : vector<64x128xf32>
    %c1_109 = arith.constant 1 : index
    %c2_110 = arith.constant 2 : index
    %c0_111 = arith.constant 0 : index
    %109 = vector.load %arg9[%c1_109, %c2_110, %c0_111] : memref<10x10x128xf32, #tpu.memory_space<vmem>>, vector<8x8x128xf32>
    %110 = vector.shape_cast %109 : vector<8x8x128xf32> to vector<64x128xf32>
    %111 = arith.truncf %110 : vector<64x128xf32> to vector<64x128xbf16>
    %c5_112 = arith.constant 5 : index
    %c0_113 = arith.constant 0 : index
    %c0_114 = arith.constant 0 : index
    %112 = vector.load %arg4[%c5_112, %c0_113, %c0_114] : memref<9x128x128xbf16, #tpu.memory_space<vmem>>, vector<1x128x128xbf16>
    %113 = vector.shape_cast %112 : vector<1x128x128xbf16> to vector<128x128xbf16>
    %cst_115 = arith.constant dense<0.000000e+00> : vector<64x128xf32>
    %114 = tpu.matmul %111, %113, %cst_115 {dimension_numbers = #tpu.dot_dimension_numbers<[1], [0], [0], [1], [0, 0, 1, 1], [], []>} : vector<64x128xbf16>, vector<128x128xbf16>, vector<64x128xf32> -> vector<64x128xf32>
    %115 = arith.addf %108, %114 : vector<64x128xf32>
    %c2_116 = arith.constant 2 : index
    %c0_117 = arith.constant 0 : index
    %c0_118 = arith.constant 0 : index
    %116 = vector.load %arg9[%c2_116, %c0_117, %c0_118] : memref<10x10x128xf32, #tpu.memory_space<vmem>>, vector<8x8x128xf32>
    %117 = vector.shape_cast %116 : vector<8x8x128xf32> to vector<64x128xf32>
    %118 = arith.truncf %117 : vector<64x128xf32> to vector<64x128xbf16>
    %c6_119 = arith.constant 6 : index
    %c0_120 = arith.constant 0 : index
    %c0_121 = arith.constant 0 : index
    %119 = vector.load %arg4[%c6_119, %c0_120, %c0_121] : memref<9x128x128xbf16, #tpu.memory_space<vmem>>, vector<1x128x128xbf16>
    %120 = vector.shape_cast %119 : vector<1x128x128xbf16> to vector<128x128xbf16>
    %cst_122 = arith.constant dense<0.000000e+00> : vector<64x128xf32>
    %121 = tpu.matmul %118, %120, %cst_122 {dimension_numbers = #tpu.dot_dimension_numbers<[1], [0], [0], [1], [0, 0, 1, 1], [], []>} : vector<64x128xbf16>, vector<128x128xbf16>, vector<64x128xf32> -> vector<64x128xf32>
    %122 = arith.addf %115, %121 : vector<64x128xf32>
    %c2_123 = arith.constant 2 : index
    %c1_124 = arith.constant 1 : index
    %c0_125 = arith.constant 0 : index
    %123 = vector.load %arg9[%c2_123, %c1_124, %c0_125] : memref<10x10x128xf32, #tpu.memory_space<vmem>>, vector<8x8x128xf32>
    %124 = vector.shape_cast %123 : vector<8x8x128xf32> to vector<64x128xf32>
    %125 = arith.truncf %124 : vector<64x128xf32> to vector<64x128xbf16>
    %c7_126 = arith.constant 7 : index
    %c0_127 = arith.constant 0 : index
    %c0_128 = arith.constant 0 : index
    %126 = vector.load %arg4[%c7_126, %c0_127, %c0_128] : memref<9x128x128xbf16, #tpu.memory_space<vmem>>, vector<1x128x128xbf16>
    %127 = vector.shape_cast %126 : vector<1x128x128xbf16> to vector<128x128xbf16>
    %cst_129 = arith.constant dense<0.000000e+00> : vector<64x128xf32>
    %128 = tpu.matmul %125, %127, %cst_129 {dimension_numbers = #tpu.dot_dimension_numbers<[1], [0], [0], [1], [0, 0, 1, 1], [], []>} : vector<64x128xbf16>, vector<128x128xbf16>, vector<64x128xf32> -> vector<64x128xf32>
    %129 = arith.addf %122, %128 : vector<64x128xf32>
    %c2_130 = arith.constant 2 : index
    %c2_131 = arith.constant 2 : index
    %c0_132 = arith.constant 0 : index
    %130 = vector.load %arg9[%c2_130, %c2_131, %c0_132] : memref<10x10x128xf32, #tpu.memory_space<vmem>>, vector<8x8x128xf32>
    %131 = vector.shape_cast %130 : vector<8x8x128xf32> to vector<64x128xf32>
    %132 = arith.truncf %131 : vector<64x128xf32> to vector<64x128xbf16>
    %c8_133 = arith.constant 8 : index
    %c0_134 = arith.constant 0 : index
    %c0_135 = arith.constant 0 : index
    %133 = vector.load %arg4[%c8_133, %c0_134, %c0_135] : memref<9x128x128xbf16, #tpu.memory_space<vmem>>, vector<1x128x128xbf16>
    %134 = vector.shape_cast %133 : vector<1x128x128xbf16> to vector<128x128xbf16>
    %cst_136 = arith.constant dense<0.000000e+00> : vector<64x128xf32>
    %135 = tpu.matmul %132, %134, %cst_136 {dimension_numbers = #tpu.dot_dimension_numbers<[1], [0], [0], [1], [0, 0, 1, 1], [], []>} : vector<64x128xbf16>, vector<128x128xbf16>, vector<64x128xf32> -> vector<64x128xf32>
    %136 = arith.addf %129, %135 : vector<64x128xf32>
    %c0_137 = arith.constant 0 : index
    %c0_138 = arith.constant 0 : index
    %137 = vector.load %arg5[%c0_137, %c0_138] : memref<1x128xf32, #tpu.memory_space<vmem>>, vector<1x128xf32>
    %138 = vector.broadcast %137 : vector<1x128xf32> to vector<64x128xf32>
    %139 = arith.addf %136, %138 : vector<64x128xf32>
    %c3_139 = arith.constant 3 : index
    %c0_140 = arith.constant 0 : index
    %c0_141 = arith.constant 0 : index
    %c0_142 = arith.constant 0 : index
    %140 = vector.load %arg1[%c3_139, %c0_140, %c0_141, %c0_142] : memref<4x9x9x64xbf16, #tpu.memory_space<vmem>>, vector<1x8x8x64xbf16>
    %141 = vector.shape_cast %140 : vector<1x8x8x64xbf16> to vector<8x8x64xbf16>
    %142 = vector.shape_cast %141 : vector<8x8x64xbf16> to vector<64x64xbf16>
    %c0_143 = arith.constant 0 : index
    %c0_144 = arith.constant 0 : index
    %c0_145 = arith.constant 0 : index
    %143 = vector.load %arg6[%c0_143, %c0_144, %c0_145] : memref<1x64x128xbf16, #tpu.memory_space<vmem>>, vector<1x64x128xbf16>
    %144 = vector.shape_cast %143 : vector<1x64x128xbf16> to vector<64x128xbf16>
    %cst_146 = arith.constant dense<0.000000e+00> : vector<64x128xf32>
    %145 = tpu.matmul %142, %144, %cst_146 {dimension_numbers = #tpu.dot_dimension_numbers<[1], [0], [0], [1], [0, 0, 1, 1], [], []>} : vector<64x64xbf16>, vector<64x128xbf16>, vector<64x128xf32> -> vector<64x128xf32>
    %c0_147 = arith.constant 0 : index
    %c0_148 = arith.constant 0 : index
    %146 = vector.load %arg7[%c0_147, %c0_148] : memref<1x128xf32, #tpu.memory_space<vmem>>, vector<1x128xf32>
    %147 = vector.broadcast %146 : vector<1x128xf32> to vector<64x128xf32>
    %148 = arith.addf %145, %147 : vector<64x128xf32>
    %149 = arith.addf %139, %148 : vector<64x128xf32>
    %cst_149 = arith.constant 0.000000e+00 : f32
    %150 = vector.broadcast %cst_149 : f32 to vector<64x128xf32>
    %151 = arith.maximumf %149, %150 : vector<64x128xf32>
    %152 = vector.shape_cast %151 : vector<64x128xf32> to vector<1x8x8x128xf32>
    %153 = arith.truncf %152 : vector<1x8x8x128xf32> to vector<1x8x8x128xbf16>
    %c0_150 = arith.constant 0 : index
    %c0_151 = arith.constant 0 : index
    %c0_152 = arith.constant 0 : index
    %c0_153 = arith.constant 0 : index
    %154 = vector.load %arg8[%c0_150, %c0_151, %c0_152, %c0_153] : memref<1x8x8x128xbf16, #tpu.memory_space<vmem>>, vector<1x8x8x128xbf16>
    tpu.vector_store %arg8[%c0_150, %c0_151, %c0_152, %c0_153], %153 {strides = array<i32>} : memref<1x8x8x128xbf16, #tpu.memory_space<vmem>>, vector<1x8x8x128xbf16>,
    return
  }
  func.func @transform_0(%arg0: i32) -> (i32, i32, i32, i32) {
    %c0_i32 = arith.constant 0 : i32
    %c0_i32_0 = arith.constant 0 : i32
    %c0_i32_1 = arith.constant 0 : i32
    %c0_i32_2 = arith.constant 0 : i32
    return %arg0, %c0_i32, %c0_i32_0, %c0_i32_1 : i32, i32, i32, i32
  }
  func.func @transform_1(%arg0: i32) -> (i32, i32, i32) {
    %c0_i32 = arith.constant 0 : i32
    %c0_i32_0 = arith.constant 0 : i32
    %c0_i32_1 = arith.constant 0 : i32
    %c0_i32_2 = arith.constant 0 : i32
    return %c0_i32, %c0_i32_0, %c0_i32_1 : i32, i32, i32
  }
  func.func @transform_2(%arg0: i32) -> (i32, i32) {
    %c0_i32 = arith.constant 0 : i32
    %c0_i32_0 = arith.constant 0 : i32
    %c0_i32_1 = arith.constant 0 : i32
    return %c0_i32, %c0_i32_0 : i32, i32
  }
  func.func @transform_3(%arg0: i32) -> (i32, i32, i32) {
    %c0_i32 = arith.constant 0 : i32
    %c0_i32_0 = arith.constant 0 : i32
    %c0_i32_1 = arith.constant 0 : i32
    %c0_i32_2 = arith.constant 0 : i32
    return %c0_i32, %c0_i32_0, %c0_i32_1 : i32, i32, i32
  }
  func.func @transform_4(%arg0: i32) -> (i32, i32) {
    %c0_i32 = arith.constant 0 : i32
    %c0_i32_0 = arith.constant 0 : i32
    %c0_i32_1 = arith.constant 0 : i32
    return %c0_i32, %c0_i32_0 : i32, i32
  }
  func.func @transform_5(%arg0: i32) -> (i32, i32, i32) {
    %c0_i32 = arith.constant 0 : i32
    %c0_i32_0 = arith.constant 0 : i32
    %c0_i32_1 = arith.constant 0 : i32
    %c0_i32_2 = arith.constant 0 : i32
    return %c0_i32, %c0_i32_0, %c0_i32_1 : i32, i32, i32
  }
  func.func @transform_6(%arg0: i32) -> (i32, i32) {
    %c0_i32 = arith.constant 0 : i32
    %c0_i32_0 = arith.constant 0 : i32
    %c0_i32_1 = arith.constant 0 : i32
    return %c0_i32, %c0_i32_0 : i32, i32
  }
  func.func @transform_7(%arg0: i32) -> (i32, i32, i32, i32) {
    %c0_i32 = arith.constant 0 : i32
    %c0_i32_0 = arith.constant 0 : i32
    %c0_i32_1 = arith.constant 0 : i32
    %c0_i32_2 = arith.constant 0 : i32
    return %arg0, %c0_i32, %c0_i32_0, %c0_i32_1 : i32, i32, i32, i32
  }
}

module attributes {stable_mosaic.version = 11 : i64} {
  func.func @body(%arg0: i32, %arg1: memref<1x10x10x128xbf16, #tpu.memory_space<vmem>>, %arg2: memref<9x128x128xbf16, #tpu.memory_space<vmem>>, %arg3: memref<1x128xf32, #tpu.memory_space<vmem>>, %arg4: memref<9x128x128xbf16, #tpu.memory_space<vmem>>, %arg5: memref<1x128xf32, #tpu.memory_space<vmem>>, %arg6: memref<1x8x8x128xbf16, #tpu.memory_space<vmem>>, %arg7: memref<10x10x128xf32, #tpu.memory_space<vmem>>) attributes {dimension_semantics = [#tpu.dimension_semantics<parallel>], iteration_bounds = array<i64: 2>, scalar_prefetch = 0 : i64, scratch_operands = 1 : i64, tpu.core_type = #tpu.core_type<tc>, window_params = [{transform_indices = @transform_0, window_bounds = array<i64: 1, 10, 10, 128>}, {pipeline_mode = #tpu.pipeline_mode<synchronous>, transform_indices = @transform_1, window_bounds = array<i64: 9, 128, 128>}, {pipeline_mode = #tpu.pipeline_mode<synchronous>, transform_indices = @transform_2, window_bounds = array<i64: 1, 128>}, {pipeline_mode = #tpu.pipeline_mode<synchronous>, transform_indices = @transform_3, window_bounds = array<i64: 9, 128, 128>}, {pipeline_mode = #tpu.pipeline_mode<synchronous>, transform_indices = @transform_4, window_bounds = array<i64: 1, 128>}, {transform_indices = @transform_5, window_bounds = array<i64: 1, 8, 8, 128>}]} {
    %cst = arith.constant 0.000000e+00 : f32
    %0 = vector.broadcast %cst : f32 to vector<64x128xf32>
    %c0 = arith.constant 0 : index
    %c0_0 = arith.constant 0 : index
    %c0_1 = arith.constant 0 : index
    %c0_2 = arith.constant 0 : index
    %1 = vector.load %arg1[%c0, %c0_0, %c0_1, %c0_2] : memref<1x10x10x128xbf16, #tpu.memory_space<vmem>>, vector<1x8x8x128xbf16>
    %2 = vector.shape_cast %1 : vector<1x8x8x128xbf16> to vector<8x8x128xbf16>
    %3 = vector.shape_cast %2 : vector<8x8x128xbf16> to vector<64x128xbf16>
    %c0_3 = arith.constant 0 : index
    %c0_4 = arith.constant 0 : index
    %c0_5 = arith.constant 0 : index
    %4 = vector.load %arg2[%c0_3, %c0_4, %c0_5] : memref<9x128x128xbf16, #tpu.memory_space<vmem>>, vector<1x128x128xbf16>
    %5 = vector.shape_cast %4 : vector<1x128x128xbf16> to vector<128x128xbf16>
    %cst_6 = arith.constant dense<0.000000e+00> : vector<64x128xf32>
    %6 = tpu.matmul %3, %5, %cst_6 {dimension_numbers = #tpu.dot_dimension_numbers<[1], [0], [0], [1], [0, 0, 1, 1], [], []>} : vector<64x128xbf16>, vector<128x128xbf16>, vector<64x128xf32> -> vector<64x128xf32>
    %7 = arith.addf %0, %6 : vector<64x128xf32>
    %c0_7 = arith.constant 0 : index
    %c0_8 = arith.constant 0 : index
    %c1 = arith.constant 1 : index
    %c0_9 = arith.constant 0 : index
    %8 = vector.load %arg1[%c0_7, %c0_8, %c1, %c0_9] : memref<1x10x10x128xbf16, #tpu.memory_space<vmem>>, vector<1x8x8x128xbf16>
    %9 = vector.shape_cast %8 : vector<1x8x8x128xbf16> to vector<8x8x128xbf16>
    %10 = vector.shape_cast %9 : vector<8x8x128xbf16> to vector<64x128xbf16>
    %c1_10 = arith.constant 1 : index
    %c0_11 = arith.constant 0 : index
    %c0_12 = arith.constant 0 : index
    %11 = vector.load %arg2[%c1_10, %c0_11, %c0_12] : memref<9x128x128xbf16, #tpu.memory_space<vmem>>, vector<1x128x128xbf16>
    %12 = vector.shape_cast %11 : vector<1x128x128xbf16> to vector<128x128xbf16>
    %cst_13 = arith.constant dense<0.000000e+00> : vector<64x128xf32>
    %13 = tpu.matmul %10, %12, %cst_13 {dimension_numbers = #tpu.dot_dimension_numbers<[1], [0], [0], [1], [0, 0, 1, 1], [], []>} : vector<64x128xbf16>, vector<128x128xbf16>, vector<64x128xf32> -> vector<64x128xf32>
    %14 = arith.addf %7, %13 : vector<64x128xf32>
    %c0_14 = arith.constant 0 : index
    %c0_15 = arith.constant 0 : index
    %c2 = arith.constant 2 : index
    %c0_16 = arith.constant 0 : index
    %15 = vector.load %arg1[%c0_14, %c0_15, %c2, %c0_16] : memref<1x10x10x128xbf16, #tpu.memory_space<vmem>>, vector<1x8x8x128xbf16>
    %16 = vector.shape_cast %15 : vector<1x8x8x128xbf16> to vector<8x8x128xbf16>
    %17 = vector.shape_cast %16 : vector<8x8x128xbf16> to vector<64x128xbf16>
    %c2_17 = arith.constant 2 : index
    %c0_18 = arith.constant 0 : index
    %c0_19 = arith.constant 0 : index
    %18 = vector.load %arg2[%c2_17, %c0_18, %c0_19] : memref<9x128x128xbf16, #tpu.memory_space<vmem>>, vector<1x128x128xbf16>
    %19 = vector.shape_cast %18 : vector<1x128x128xbf16> to vector<128x128xbf16>
    %cst_20 = arith.constant dense<0.000000e+00> : vector<64x128xf32>
    %20 = tpu.matmul %17, %19, %cst_20 {dimension_numbers = #tpu.dot_dimension_numbers<[1], [0], [0], [1], [0, 0, 1, 1], [], []>} : vector<64x128xbf16>, vector<128x128xbf16>, vector<64x128xf32> -> vector<64x128xf32>
    %21 = arith.addf %14, %20 : vector<64x128xf32>
    %c0_21 = arith.constant 0 : index
    %c1_22 = arith.constant 1 : index
    %c0_23 = arith.constant 0 : index
    %c0_24 = arith.constant 0 : index
    %22 = vector.load %arg1[%c0_21, %c1_22, %c0_23, %c0_24] : memref<1x10x10x128xbf16, #tpu.memory_space<vmem>>, vector<1x8x8x128xbf16>
    %23 = vector.shape_cast %22 : vector<1x8x8x128xbf16> to vector<8x8x128xbf16>
    %24 = vector.shape_cast %23 : vector<8x8x128xbf16> to vector<64x128xbf16>
    %c3 = arith.constant 3 : index
    %c0_25 = arith.constant 0 : index
    %c0_26 = arith.constant 0 : index
    %25 = vector.load %arg2[%c3, %c0_25, %c0_26] : memref<9x128x128xbf16, #tpu.memory_space<vmem>>, vector<1x128x128xbf16>
    %26 = vector.shape_cast %25 : vector<1x128x128xbf16> to vector<128x128xbf16>
    %cst_27 = arith.constant dense<0.000000e+00> : vector<64x128xf32>
    %27 = tpu.matmul %24, %26, %cst_27 {dimension_numbers = #tpu.dot_dimension_numbers<[1], [0], [0], [1], [0, 0, 1, 1], [], []>} : vector<64x128xbf16>, vector<128x128xbf16>, vector<64x128xf32> -> vector<64x128xf32>
    %28 = arith.addf %21, %27 : vector<64x128xf32>
    %c0_28 = arith.constant 0 : index
    %c1_29 = arith.constant 1 : index
    %c1_30 = arith.constant 1 : index
    %c0_31 = arith.constant 0 : index
    %29 = vector.load %arg1[%c0_28, %c1_29, %c1_30, %c0_31] : memref<1x10x10x128xbf16, #tpu.memory_space<vmem>>, vector<1x8x8x128xbf16>
    %30 = vector.shape_cast %29 : vector<1x8x8x128xbf16> to vector<8x8x128xbf16>
    %31 = vector.shape_cast %30 : vector<8x8x128xbf16> to vector<64x128xbf16>
    %c4 = arith.constant 4 : index
    %c0_32 = arith.constant 0 : index
    %c0_33 = arith.constant 0 : index
    %32 = vector.load %arg2[%c4, %c0_32, %c0_33] : memref<9x128x128xbf16, #tpu.memory_space<vmem>>, vector<1x128x128xbf16>
    %33 = vector.shape_cast %32 : vector<1x128x128xbf16> to vector<128x128xbf16>
    %cst_34 = arith.constant dense<0.000000e+00> : vector<64x128xf32>
    %34 = tpu.matmul %31, %33, %cst_34 {dimension_numbers = #tpu.dot_dimension_numbers<[1], [0], [0], [1], [0, 0, 1, 1], [], []>} : vector<64x128xbf16>, vector<128x128xbf16>, vector<64x128xf32> -> vector<64x128xf32>
    %35 = arith.addf %28, %34 : vector<64x128xf32>
    %c0_35 = arith.constant 0 : index
    %c1_36 = arith.constant 1 : index
    %c2_37 = arith.constant 2 : index
    %c0_38 = arith.constant 0 : index
    %36 = vector.load %arg1[%c0_35, %c1_36, %c2_37, %c0_38] : memref<1x10x10x128xbf16, #tpu.memory_space<vmem>>, vector<1x8x8x128xbf16>
    %37 = vector.shape_cast %36 : vector<1x8x8x128xbf16> to vector<8x8x128xbf16>
    %38 = vector.shape_cast %37 : vector<8x8x128xbf16> to vector<64x128xbf16>
    %c5 = arith.constant 5 : index
    %c0_39 = arith.constant 0 : index
    %c0_40 = arith.constant 0 : index
    %39 = vector.load %arg2[%c5, %c0_39, %c0_40] : memref<9x128x128xbf16, #tpu.memory_space<vmem>>, vector<1x128x128xbf16>
    %40 = vector.shape_cast %39 : vector<1x128x128xbf16> to vector<128x128xbf16>
    %cst_41 = arith.constant dense<0.000000e+00> : vector<64x128xf32>
    %41 = tpu.matmul %38, %40, %cst_41 {dimension_numbers = #tpu.dot_dimension_numbers<[1], [0], [0], [1], [0, 0, 1, 1], [], []>} : vector<64x128xbf16>, vector<128x128xbf16>, vector<64x128xf32> -> vector<64x128xf32>
    %42 = arith.addf %35, %41 : vector<64x128xf32>
    %c0_42 = arith.constant 0 : index
    %c2_43 = arith.constant 2 : index
    %c0_44 = arith.constant 0 : index
    %c0_45 = arith.constant 0 : index
    %43 = vector.load %arg1[%c0_42, %c2_43, %c0_44, %c0_45] : memref<1x10x10x128xbf16, #tpu.memory_space<vmem>>, vector<1x8x8x128xbf16>
    %44 = vector.shape_cast %43 : vector<1x8x8x128xbf16> to vector<8x8x128xbf16>
    %45 = vector.shape_cast %44 : vector<8x8x128xbf16> to vector<64x128xbf16>
    %c6 = arith.constant 6 : index
    %c0_46 = arith.constant 0 : index
    %c0_47 = arith.constant 0 : index
    %46 = vector.load %arg2[%c6, %c0_46, %c0_47] : memref<9x128x128xbf16, #tpu.memory_space<vmem>>, vector<1x128x128xbf16>
    %47 = vector.shape_cast %46 : vector<1x128x128xbf16> to vector<128x128xbf16>
    %cst_48 = arith.constant dense<0.000000e+00> : vector<64x128xf32>
    %48 = tpu.matmul %45, %47, %cst_48 {dimension_numbers = #tpu.dot_dimension_numbers<[1], [0], [0], [1], [0, 0, 1, 1], [], []>} : vector<64x128xbf16>, vector<128x128xbf16>, vector<64x128xf32> -> vector<64x128xf32>
    %49 = arith.addf %42, %48 : vector<64x128xf32>
    %c0_49 = arith.constant 0 : index
    %c2_50 = arith.constant 2 : index
    %c1_51 = arith.constant 1 : index
    %c0_52 = arith.constant 0 : index
    %50 = vector.load %arg1[%c0_49, %c2_50, %c1_51, %c0_52] : memref<1x10x10x128xbf16, #tpu.memory_space<vmem>>, vector<1x8x8x128xbf16>
    %51 = vector.shape_cast %50 : vector<1x8x8x128xbf16> to vector<8x8x128xbf16>
    %52 = vector.shape_cast %51 : vector<8x8x128xbf16> to vector<64x128xbf16>
    %c7 = arith.constant 7 : index
    %c0_53 = arith.constant 0 : index
    %c0_54 = arith.constant 0 : index
    %53 = vector.load %arg2[%c7, %c0_53, %c0_54] : memref<9x128x128xbf16, #tpu.memory_space<vmem>>, vector<1x128x128xbf16>
    %54 = vector.shape_cast %53 : vector<1x128x128xbf16> to vector<128x128xbf16>
    %cst_55 = arith.constant dense<0.000000e+00> : vector<64x128xf32>
    %55 = tpu.matmul %52, %54, %cst_55 {dimension_numbers = #tpu.dot_dimension_numbers<[1], [0], [0], [1], [0, 0, 1, 1], [], []>} : vector<64x128xbf16>, vector<128x128xbf16>, vector<64x128xf32> -> vector<64x128xf32>
    %56 = arith.addf %49, %55 : vector<64x128xf32>
    %c0_56 = arith.constant 0 : index
    %c2_57 = arith.constant 2 : index
    %c2_58 = arith.constant 2 : index
    %c0_59 = arith.constant 0 : index
    %57 = vector.load %arg1[%c0_56, %c2_57, %c2_58, %c0_59] : memref<1x10x10x128xbf16, #tpu.memory_space<vmem>>, vector<1x8x8x128xbf16>
    %58 = vector.shape_cast %57 : vector<1x8x8x128xbf16> to vector<8x8x128xbf16>
    %59 = vector.shape_cast %58 : vector<8x8x128xbf16> to vector<64x128xbf16>
    %c8 = arith.constant 8 : index
    %c0_60 = arith.constant 0 : index
    %c0_61 = arith.constant 0 : index
    %60 = vector.load %arg2[%c8, %c0_60, %c0_61] : memref<9x128x128xbf16, #tpu.memory_space<vmem>>, vector<1x128x128xbf16>
    %61 = vector.shape_cast %60 : vector<1x128x128xbf16> to vector<128x128xbf16>
    %cst_62 = arith.constant dense<0.000000e+00> : vector<64x128xf32>
    %62 = tpu.matmul %59, %61, %cst_62 {dimension_numbers = #tpu.dot_dimension_numbers<[1], [0], [0], [1], [0, 0, 1, 1], [], []>} : vector<64x128xbf16>, vector<128x128xbf16>, vector<64x128xf32> -> vector<64x128xf32>
    %63 = arith.addf %56, %62 : vector<64x128xf32>
    %c0_63 = arith.constant 0 : index
    %c0_64 = arith.constant 0 : index
    %64 = vector.load %arg3[%c0_63, %c0_64] : memref<1x128xf32, #tpu.memory_space<vmem>>, vector<1x128xf32>
    %65 = vector.broadcast %64 : vector<1x128xf32> to vector<64x128xf32>
    %66 = arith.addf %63, %65 : vector<64x128xf32>
    %cst_65 = arith.constant 0.000000e+00 : f32
    %67 = vector.broadcast %cst_65 : f32 to vector<64x128xf32>
    %68 = arith.maximumf %66, %67 : vector<64x128xf32>
    %cst_66 = arith.constant 0.000000e+00 : f32
    %69 = vector.broadcast %cst_66 : f32 to vector<10x10x128xf32>
    %c0_67 = arith.constant 0 : index
    %c0_68 = arith.constant 0 : index
    %c0_69 = arith.constant 0 : index
    %70 = vector.load %arg7[%c0_67, %c0_68, %c0_69] : memref<10x10x128xf32, #tpu.memory_space<vmem>>, vector<10x10x128xf32>
    tpu.vector_store %arg7[%c0_67, %c0_68, %c0_69], %69 {strides = array<i32>} : memref<10x10x128xf32, #tpu.memory_space<vmem>>, vector<10x10x128xf32>,
    %71 = vector.shape_cast %68 : vector<64x128xf32> to vector<8x8x128xf32>
    %c1_70 = arith.constant 1 : index
    %c1_71 = arith.constant 1 : index
    %c0_72 = arith.constant 0 : index
    %72 = vector.load %arg7[%c1_70, %c1_71, %c0_72] : memref<10x10x128xf32, #tpu.memory_space<vmem>>, vector<8x8x128xf32>
    tpu.vector_store %arg7[%c1_70, %c1_71, %c0_72], %71 {strides = array<i32>} : memref<10x10x128xf32, #tpu.memory_space<vmem>>, vector<8x8x128xf32>,
    %cst_73 = arith.constant 0.000000e+00 : f32
    %73 = vector.broadcast %cst_73 : f32 to vector<64x128xf32>
    %c0_74 = arith.constant 0 : index
    %c0_75 = arith.constant 0 : index
    %c0_76 = arith.constant 0 : index
    %74 = vector.load %arg7[%c0_74, %c0_75, %c0_76] : memref<10x10x128xf32, #tpu.memory_space<vmem>>, vector<8x8x128xf32>
    %75 = vector.shape_cast %74 : vector<8x8x128xf32> to vector<64x128xf32>
    %76 = arith.truncf %75 : vector<64x128xf32> to vector<64x128xbf16>
    %c0_77 = arith.constant 0 : index
    %c0_78 = arith.constant 0 : index
    %c0_79 = arith.constant 0 : index
    %77 = vector.load %arg4[%c0_77, %c0_78, %c0_79] : memref<9x128x128xbf16, #tpu.memory_space<vmem>>, vector<1x128x128xbf16>
    %78 = vector.shape_cast %77 : vector<1x128x128xbf16> to vector<128x128xbf16>
    %cst_80 = arith.constant dense<0.000000e+00> : vector<64x128xf32>
    %79 = tpu.matmul %76, %78, %cst_80 {dimension_numbers = #tpu.dot_dimension_numbers<[1], [0], [0], [1], [0, 0, 1, 1], [], []>} : vector<64x128xbf16>, vector<128x128xbf16>, vector<64x128xf32> -> vector<64x128xf32>
    %80 = arith.addf %73, %79 : vector<64x128xf32>
    %c0_81 = arith.constant 0 : index
    %c1_82 = arith.constant 1 : index
    %c0_83 = arith.constant 0 : index
    %81 = vector.load %arg7[%c0_81, %c1_82, %c0_83] : memref<10x10x128xf32, #tpu.memory_space<vmem>>, vector<8x8x128xf32>
    %82 = vector.shape_cast %81 : vector<8x8x128xf32> to vector<64x128xf32>
    %83 = arith.truncf %82 : vector<64x128xf32> to vector<64x128xbf16>
    %c1_84 = arith.constant 1 : index
    %c0_85 = arith.constant 0 : index
    %c0_86 = arith.constant 0 : index
    %84 = vector.load %arg4[%c1_84, %c0_85, %c0_86] : memref<9x128x128xbf16, #tpu.memory_space<vmem>>, vector<1x128x128xbf16>
    %85 = vector.shape_cast %84 : vector<1x128x128xbf16> to vector<128x128xbf16>
    %cst_87 = arith.constant dense<0.000000e+00> : vector<64x128xf32>
    %86 = tpu.matmul %83, %85, %cst_87 {dimension_numbers = #tpu.dot_dimension_numbers<[1], [0], [0], [1], [0, 0, 1, 1], [], []>} : vector<64x128xbf16>, vector<128x128xbf16>, vector<64x128xf32> -> vector<64x128xf32>
    %87 = arith.addf %80, %86 : vector<64x128xf32>
    %c0_88 = arith.constant 0 : index
    %c2_89 = arith.constant 2 : index
    %c0_90 = arith.constant 0 : index
    %88 = vector.load %arg7[%c0_88, %c2_89, %c0_90] : memref<10x10x128xf32, #tpu.memory_space<vmem>>, vector<8x8x128xf32>
    %89 = vector.shape_cast %88 : vector<8x8x128xf32> to vector<64x128xf32>
    %90 = arith.truncf %89 : vector<64x128xf32> to vector<64x128xbf16>
    %c2_91 = arith.constant 2 : index
    %c0_92 = arith.constant 0 : index
    %c0_93 = arith.constant 0 : index
    %91 = vector.load %arg4[%c2_91, %c0_92, %c0_93] : memref<9x128x128xbf16, #tpu.memory_space<vmem>>, vector<1x128x128xbf16>
    %92 = vector.shape_cast %91 : vector<1x128x128xbf16> to vector<128x128xbf16>
    %cst_94 = arith.constant dense<0.000000e+00> : vector<64x128xf32>
    %93 = tpu.matmul %90, %92, %cst_94 {dimension_numbers = #tpu.dot_dimension_numbers<[1], [0], [0], [1], [0, 0, 1, 1], [], []>} : vector<64x128xbf16>, vector<128x128xbf16>, vector<64x128xf32> -> vector<64x128xf32>
    %94 = arith.addf %87, %93 : vector<64x128xf32>
    %c1_95 = arith.constant 1 : index
    %c0_96 = arith.constant 0 : index
    %c0_97 = arith.constant 0 : index
    %95 = vector.load %arg7[%c1_95, %c0_96, %c0_97] : memref<10x10x128xf32, #tpu.memory_space<vmem>>, vector<8x8x128xf32>
    %96 = vector.shape_cast %95 : vector<8x8x128xf32> to vector<64x128xf32>
    %97 = arith.truncf %96 : vector<64x128xf32> to vector<64x128xbf16>
    %c3_98 = arith.constant 3 : index
    %c0_99 = arith.constant 0 : index
    %c0_100 = arith.constant 0 : index
    %98 = vector.load %arg4[%c3_98, %c0_99, %c0_100] : memref<9x128x128xbf16, #tpu.memory_space<vmem>>, vector<1x128x128xbf16>
    %99 = vector.shape_cast %98 : vector<1x128x128xbf16> to vector<128x128xbf16>
    %cst_101 = arith.constant dense<0.000000e+00> : vector<64x128xf32>
    %100 = tpu.matmul %97, %99, %cst_101 {dimension_numbers = #tpu.dot_dimension_numbers<[1], [0], [0], [1], [0, 0, 1, 1], [], []>} : vector<64x128xbf16>, vector<128x128xbf16>, vector<64x128xf32> -> vector<64x128xf32>
    %101 = arith.addf %94, %100 : vector<64x128xf32>
    %c1_102 = arith.constant 1 : index
    %c1_103 = arith.constant 1 : index
    %c0_104 = arith.constant 0 : index
    %102 = vector.load %arg7[%c1_102, %c1_103, %c0_104] : memref<10x10x128xf32, #tpu.memory_space<vmem>>, vector<8x8x128xf32>
    %103 = vector.shape_cast %102 : vector<8x8x128xf32> to vector<64x128xf32>
    %104 = arith.truncf %103 : vector<64x128xf32> to vector<64x128xbf16>
    %c4_105 = arith.constant 4 : index
    %c0_106 = arith.constant 0 : index
    %c0_107 = arith.constant 0 : index
    %105 = vector.load %arg4[%c4_105, %c0_106, %c0_107] : memref<9x128x128xbf16, #tpu.memory_space<vmem>>, vector<1x128x128xbf16>
    %106 = vector.shape_cast %105 : vector<1x128x128xbf16> to vector<128x128xbf16>
    %cst_108 = arith.constant dense<0.000000e+00> : vector<64x128xf32>
    %107 = tpu.matmul %104, %106, %cst_108 {dimension_numbers = #tpu.dot_dimension_numbers<[1], [0], [0], [1], [0, 0, 1, 1], [], []>} : vector<64x128xbf16>, vector<128x128xbf16>, vector<64x128xf32> -> vector<64x128xf32>
    %108 = arith.addf %101, %107 : vector<64x128xf32>
    %c1_109 = arith.constant 1 : index
    %c2_110 = arith.constant 2 : index
    %c0_111 = arith.constant 0 : index
    %109 = vector.load %arg7[%c1_109, %c2_110, %c0_111] : memref<10x10x128xf32, #tpu.memory_space<vmem>>, vector<8x8x128xf32>
    %110 = vector.shape_cast %109 : vector<8x8x128xf32> to vector<64x128xf32>
    %111 = arith.truncf %110 : vector<64x128xf32> to vector<64x128xbf16>
    %c5_112 = arith.constant 5 : index
    %c0_113 = arith.constant 0 : index
    %c0_114 = arith.constant 0 : index
    %112 = vector.load %arg4[%c5_112, %c0_113, %c0_114] : memref<9x128x128xbf16, #tpu.memory_space<vmem>>, vector<1x128x128xbf16>
    %113 = vector.shape_cast %112 : vector<1x128x128xbf16> to vector<128x128xbf16>
    %cst_115 = arith.constant dense<0.000000e+00> : vector<64x128xf32>
    %114 = tpu.matmul %111, %113, %cst_115 {dimension_numbers = #tpu.dot_dimension_numbers<[1], [0], [0], [1], [0, 0, 1, 1], [], []>} : vector<64x128xbf16>, vector<128x128xbf16>, vector<64x128xf32> -> vector<64x128xf32>
    %115 = arith.addf %108, %114 : vector<64x128xf32>
    %c2_116 = arith.constant 2 : index
    %c0_117 = arith.constant 0 : index
    %c0_118 = arith.constant 0 : index
    %116 = vector.load %arg7[%c2_116, %c0_117, %c0_118] : memref<10x10x128xf32, #tpu.memory_space<vmem>>, vector<8x8x128xf32>
    %117 = vector.shape_cast %116 : vector<8x8x128xf32> to vector<64x128xf32>
    %118 = arith.truncf %117 : vector<64x128xf32> to vector<64x128xbf16>
    %c6_119 = arith.constant 6 : index
    %c0_120 = arith.constant 0 : index
    %c0_121 = arith.constant 0 : index
    %119 = vector.load %arg4[%c6_119, %c0_120, %c0_121] : memref<9x128x128xbf16, #tpu.memory_space<vmem>>, vector<1x128x128xbf16>
    %120 = vector.shape_cast %119 : vector<1x128x128xbf16> to vector<128x128xbf16>
    %cst_122 = arith.constant dense<0.000000e+00> : vector<64x128xf32>
    %121 = tpu.matmul %118, %120, %cst_122 {dimension_numbers = #tpu.dot_dimension_numbers<[1], [0], [0], [1], [0, 0, 1, 1], [], []>} : vector<64x128xbf16>, vector<128x128xbf16>, vector<64x128xf32> -> vector<64x128xf32>
    %122 = arith.addf %115, %121 : vector<64x128xf32>
    %c2_123 = arith.constant 2 : index
    %c1_124 = arith.constant 1 : index
    %c0_125 = arith.constant 0 : index
    %123 = vector.load %arg7[%c2_123, %c1_124, %c0_125] : memref<10x10x128xf32, #tpu.memory_space<vmem>>, vector<8x8x128xf32>
    %124 = vector.shape_cast %123 : vector<8x8x128xf32> to vector<64x128xf32>
    %125 = arith.truncf %124 : vector<64x128xf32> to vector<64x128xbf16>
    %c7_126 = arith.constant 7 : index
    %c0_127 = arith.constant 0 : index
    %c0_128 = arith.constant 0 : index
    %126 = vector.load %arg4[%c7_126, %c0_127, %c0_128] : memref<9x128x128xbf16, #tpu.memory_space<vmem>>, vector<1x128x128xbf16>
    %127 = vector.shape_cast %126 : vector<1x128x128xbf16> to vector<128x128xbf16>
    %cst_129 = arith.constant dense<0.000000e+00> : vector<64x128xf32>
    %128 = tpu.matmul %125, %127, %cst_129 {dimension_numbers = #tpu.dot_dimension_numbers<[1], [0], [0], [1], [0, 0, 1, 1], [], []>} : vector<64x128xbf16>, vector<128x128xbf16>, vector<64x128xf32> -> vector<64x128xf32>
    %129 = arith.addf %122, %128 : vector<64x128xf32>
    %c2_130 = arith.constant 2 : index
    %c2_131 = arith.constant 2 : index
    %c0_132 = arith.constant 0 : index
    %130 = vector.load %arg7[%c2_130, %c2_131, %c0_132] : memref<10x10x128xf32, #tpu.memory_space<vmem>>, vector<8x8x128xf32>
    %131 = vector.shape_cast %130 : vector<8x8x128xf32> to vector<64x128xf32>
    %132 = arith.truncf %131 : vector<64x128xf32> to vector<64x128xbf16>
    %c8_133 = arith.constant 8 : index
    %c0_134 = arith.constant 0 : index
    %c0_135 = arith.constant 0 : index
    %133 = vector.load %arg4[%c8_133, %c0_134, %c0_135] : memref<9x128x128xbf16, #tpu.memory_space<vmem>>, vector<1x128x128xbf16>
    %134 = vector.shape_cast %133 : vector<1x128x128xbf16> to vector<128x128xbf16>
    %cst_136 = arith.constant dense<0.000000e+00> : vector<64x128xf32>
    %135 = tpu.matmul %132, %134, %cst_136 {dimension_numbers = #tpu.dot_dimension_numbers<[1], [0], [0], [1], [0, 0, 1, 1], [], []>} : vector<64x128xbf16>, vector<128x128xbf16>, vector<64x128xf32> -> vector<64x128xf32>
    %136 = arith.addf %129, %135 : vector<64x128xf32>
    %c0_137 = arith.constant 0 : index
    %c0_138 = arith.constant 0 : index
    %137 = vector.load %arg5[%c0_137, %c0_138] : memref<1x128xf32, #tpu.memory_space<vmem>>, vector<1x128xf32>
    %138 = vector.broadcast %137 : vector<1x128xf32> to vector<64x128xf32>
    %139 = arith.addf %136, %138 : vector<64x128xf32>
    %c0_139 = arith.constant 0 : index
    %c1_140 = arith.constant 1 : index
    %c1_141 = arith.constant 1 : index
    %c0_142 = arith.constant 0 : index
    %140 = vector.load %arg1[%c0_139, %c1_140, %c1_141, %c0_142] : memref<1x10x10x128xbf16, #tpu.memory_space<vmem>>, vector<1x8x8x128xbf16>
    %141 = vector.shape_cast %140 : vector<1x8x8x128xbf16> to vector<8x8x128xbf16>
    %142 = vector.shape_cast %141 : vector<8x8x128xbf16> to vector<64x128xbf16>
    %143 = arith.extf %142 : vector<64x128xbf16> to vector<64x128xf32>
    %144 = arith.addf %139, %143 : vector<64x128xf32>
    %cst_143 = arith.constant 0.000000e+00 : f32
    %145 = vector.broadcast %cst_143 : f32 to vector<64x128xf32>
    %146 = arith.maximumf %144, %145 : vector<64x128xf32>
    %147 = vector.shape_cast %146 : vector<64x128xf32> to vector<1x8x8x128xf32>
    %148 = arith.truncf %147 : vector<1x8x8x128xf32> to vector<1x8x8x128xbf16>
    %c0_144 = arith.constant 0 : index
    %c0_145 = arith.constant 0 : index
    %c0_146 = arith.constant 0 : index
    %c0_147 = arith.constant 0 : index
    %149 = vector.load %arg6[%c0_144, %c0_145, %c0_146, %c0_147] : memref<1x8x8x128xbf16, #tpu.memory_space<vmem>>, vector<1x8x8x128xbf16>
    tpu.vector_store %arg6[%c0_144, %c0_145, %c0_146, %c0_147], %148 {strides = array<i32>} : memref<1x8x8x128xbf16, #tpu.memory_space<vmem>>, vector<1x8x8x128xbf16>,
    return
  }
  func.func @transform_0(%arg0: i32) -> (i32, i32, i32, i32) {
    %c0_i32 = arith.constant 0 : i32
    %c0_i32_0 = arith.constant 0 : i32
    %c0_i32_1 = arith.constant 0 : i32
    %c0_i32_2 = arith.constant 0 : i32
    return %arg0, %c0_i32, %c0_i32_0, %c0_i32_1 : i32, i32, i32, i32
  }
  func.func @transform_1(%arg0: i32) -> (i32, i32, i32) {
    %c0_i32 = arith.constant 0 : i32
    %c0_i32_0 = arith.constant 0 : i32
    %c0_i32_1 = arith.constant 0 : i32
    %c0_i32_2 = arith.constant 0 : i32
    return %c0_i32, %c0_i32_0, %c0_i32_1 : i32, i32, i32
  }
  func.func @transform_2(%arg0: i32) -> (i32, i32) {
    %c0_i32 = arith.constant 0 : i32
    %c0_i32_0 = arith.constant 0 : i32
    %c0_i32_1 = arith.constant 0 : i32
    return %c0_i32, %c0_i32_0 : i32, i32
  }
  func.func @transform_3(%arg0: i32) -> (i32, i32, i32) {
    %c0_i32 = arith.constant 0 : i32
    %c0_i32_0 = arith.constant 0 : i32
    %c0_i32_1 = arith.constant 0 : i32
    %c0_i32_2 = arith.constant 0 : i32
    return %c0_i32, %c0_i32_0, %c0_i32_1 : i32, i32, i32
  }
  func.func @transform_4(%arg0: i32) -> (i32, i32) {
    %c0_i32 = arith.constant 0 : i32
    %c0_i32_0 = arith.constant 0 : i32
    %c0_i32_1 = arith.constant 0 : i32
    return %c0_i32, %c0_i32_0 : i32, i32
  }
  func.func @transform_5(%arg0: i32) -> (i32, i32, i32, i32) {
    %c0_i32 = arith.constant 0 : i32
    %c0_i32_0 = arith.constant 0 : i32
    %c0_i32_1 = arith.constant 0 : i32
    %c0_i32_2 = arith.constant 0 : i32
    return %arg0, %c0_i32, %c0_i32_0, %c0_i32_1 : i32, i32, i32, i32
  }
}

</mosaic_0001>

<llo_original>
// kernel: forward.2
$region0: #{forward.2}
  #allocation0 [shape = 'u32[]', space=smem, size = 0x4, offset = 0x4, fixed_abs, tag = 'smem constant byte address 0x4 - core index']
  #allocation1 [shape = 'u32[72,128]{1,0:T(1,128)}', space=vmem, size = 0x9000, scoped, tag = 'internal scratch']
  #allocation2 [shape = 'f32[10,10,128]{2,1,0:T(8,128)}', space=vmem, size = 0x14000, scoped, tag = 'scratch operand']
  %s0 = inlined_call_operand.vmem [shape: bf16[8,9,9,64], index: 0, kind: input, shape index: {}]
  %s1 = inlined_call_operand.vmem [shape: bf16[9,64,128], index: 1, kind: input, shape index: {}]
  %s2 = inlined_call_operand.vmem [shape: f32[1,128], index: 2, kind: input, shape index: {}]
  %s3 = inlined_call_operand.vmem [shape: bf16[9,128,128], index: 3, kind: input, shape index: {}]
  %s4 = inlined_call_operand.vmem [shape: f32[1,128], index: 4, kind: input, shape index: {}]
  %s5 = inlined_call_operand.vmem [shape: bf16[1,64,128], index: 5, kind: input, shape index: {}]
  %s6 = inlined_call_operand.vmem [shape: f32[1,128], index: 6, kind: input, shape index: {}]
  %s7 = inlined_call_operand.vmem [shape: bf16[2,8,8,128], index: 7, kind: output, shape index: {}]
  %s8 = sld [smem:[#allocation0]]
  $region61: #{forward.2} parent=0
    _
  %s10 = ssub.s32 1, %s8
  %s11 = scalar_select 0, %s10, %s8
  loop: start=0, step=1, limit=4
  $region2: #{forward.2} parent=0 // loop_pre_header
    _
  $region3: #{forward.2} parent=0 // loop_header
    %s13 = sphi 0, %s17
    %p14 = scmp.ge.s32.totalorder %s13, 4
    %s23 = sphi 0, %s25
    %s26 = sphi 0, %s23
    %s27 = sphi 0, %s26
    %s43 = sphi 0, %s27
    %s47 = sphi 0, %s47
    %s49 = sphi 0, %s47
    %s50 = sphi 0, %s49
    %s64 = sphi 0, %s50
    %s68 = sphi 0, %s68
    %s70 = sphi 0, %s68
    %s71 = sphi 0, %s70
    %s85 = sphi 0, %s71
    %s89 = sphi 0, %s89
    %s91 = sphi 0, %s89
    %s92 = sphi 0, %s91
    %s106 = sphi 0, %s92
    %s110 = sphi 0, %s110
    %s112 = sphi 0, %s110
    %s113 = sphi 0, %s112
    %s127 = sphi 0, %s113
    %s131 = sphi 0, %s131
    %s133 = sphi 0, %s131
    %s134 = sphi 0, %s133
    %s148 = sphi 0, %s134
    %s152 = sphi 0, %s152
    %s154 = sphi 0, %s152
    %s155 = sphi 0, %s154
    %s169 = sphi 0, %s155
    %s175 = sphi 0, %s177
    %s178 = sphi 0, %s175
    %s179 = sphi 0, %s178
    %s195 = sphi 0, %s179
  $region4: #{forward.2} parent=0 // loop_header_branch
    %16 = sbr.rel (%p14) target = $region8
  $region5: #{forward.2} parent=0 // loop_body
    %s18 = ssub.s32 %s13, 1
    %s19 = ssub.s32 %s13, 2
    %s20 = sadd.s32 %s13, 1
    %s21 = ssub.s32 %s13, %s20
    %p22 = scmp.eq.s32.totalorder %s21, 0
    %s24 = sadd.s32 %s23, 1
    %s25 = scalar_select %p22, %s23, %s24
    %p28 = pneg %p22
    %p29 = scmp.eq.s32.totalorder %s13, 1
    %p30 = por %p28, %p29
    %p31 = scmp.ne.s32.totalorder %s23, %s26
    %p32 = scmp.eq.s32.totalorder %s13, 0
    %p33 = por %p31, %p32
    %p34 = scmp.ne.s32.totalorder %s23, %s26
    %p35 = scmp.eq.s32.totalorder %s18, 1
    %p36 = por %p34, %p35
    %p37 = scmp.ne.s32.totalorder %s26, %s27
    %p38 = scmp.eq.s32.totalorder %s18, 0
    %p39 = por %p37, %p38
    %p40 = scmp.ne.s32.totalorder %s26, %s27
    %p41 = scmp.eq.s32.totalorder %s19, 1
    %p42 = por %p40, %p41
    %p44 = scmp.ne.s32.totalorder %s27, %s43
    %p45 = scmp.eq.s32.totalorder %s19, 0
    %p46 = por %p44, %p45
    %s48 = sadd.s32 %s47, 1
    %p51 = scmp.eq.s32.totalorder %s13, 1
    %p52 = scmp.ne.s32.totalorder %s47, %s49
    %p53 = scmp.eq.s32.totalorder %s13, 0
    %p54 = por %p52, %p53
    %p55 = scmp.ne.s32.totalorder %s47, %s49
    %p56 = scmp.eq.s32.totalorder %s18, 1
    %p57 = por %p55, %p56
    %p58 = scmp.ne.s32.totalorder %s49, %s50
    %p59 = scmp.eq.s32.totalorder %s18, 0
    %p60 = por %p58, %p59
    %p61 = scmp.ne.s32.totalorder %s49, %s50
    %p62 = scmp.eq.s32.totalorder %s19, 1
    %p63 = por %p61, %p62
    %p65 = scmp.ne.s32.totalorder %s50, %s64
    %p66 = scmp.eq.s32.totalorder %s19, 0
    %p67 = por %p65, %p66
    %s69 = sadd.s32 %s68, 1
    %p72 = scmp.eq.s32.totalorder %s13, 1
    %p73 = scmp.ne.s32.totalorder %s68, %s70
    %p74 = scmp.eq.s32.totalorder %s13, 0
    %p75 = por %p73, %p74
    %p76 = scmp.ne.s32.totalorder %s68, %s70
    %p77 = scmp.eq.s32.totalorder %s18, 1
    %p78 = por %p76, %p77
    %p79 = scmp.ne.s32.totalorder %s70, %s71
    %p80 = scmp.eq.s32.totalorder %s18, 0
    %p81 = por %p79, %p80
    %p82 = scmp.ne.s32.totalorder %s70, %s71
    %p83 = scmp.eq.s32.totalorder %s19, 1
    %p84 = por %p82, %p83
    %p86 = scmp.ne.s32.totalorder %s71, %s85
    %p87 = scmp.eq.s32.totalorder %s19, 0
    %p88 = por %p86, %p87
    %s90 = sadd.s32 %s89, 1
    %p93 = scmp.eq.s32.totalorder %s13, 1
    %p94 = scmp.ne.s32.totalorder %s89, %s91
    %p95 = scmp.eq.s32.totalorder %s13, 0
    %p96 = por %p94, %p95
    %p97 = scmp.ne.s32.totalorder %s89, %s91
    %p98 = scmp.eq.s32.totalorder %s18, 1
    %p99 = por %p97, %p98
    %p100 = scmp.ne.s32.totalorder %s91, %s92
    %p101 = scmp.eq.s32.totalorder %s18, 0
    %p102 = por %p100, %p101
    %p103 = scmp.ne.s32.totalorder %s91, %s92
    %p104 = scmp.eq.s32.totalorder %s19, 1
    %p105 = por %p103, %p104
    %p107 = scmp.ne.s32.totalorder %s92, %s106
    %p108 = scmp.eq.s32.totalorder %s19, 0
    %p109 = por %p107, %p108
    %s111 = sadd.s32 %s110, 1
    %p114 = scmp.eq.s32.totalorder %s13, 1
    %p115 = scmp.ne.s32.totalorder %s110, %s112
    %p116 = scmp.eq.s32.totalorder %s13, 0
    %p117 = por %p115, %p116
    %p118 = scmp.ne.s32.totalorder %s110, %s112
    %p119 = scmp.eq.s32.totalorder %s18, 1
    %p120 = por %p118, %p119
    %p121 = scmp.ne.s32.totalorder %s112, %s113
    %p122 = scmp.eq.s32.totalorder %s18, 0
    %p123 = por %p121, %p122
    %p124 = scmp.ne.s32.totalorder %s112, %s113
    %p125 = scmp.eq.s32.totalorder %s19, 1
    %p126 = por %p124, %p125
    %p128 = scmp.ne.s32.totalorder %s113, %s127
    %p129 = scmp.eq.s32.totalorder %s19, 0
    %p130 = por %p128, %p129
    %s132 = sadd.s32 %s131, 1
    %p135 = scmp.eq.s32.totalorder %s13, 1
    %p136 = scmp.ne.s32.totalorder %s131, %s133
    %p137 = scmp.eq.s32.totalorder %s13, 0
    %p138 = por %p136, %p137
    %p139 = scmp.ne.s32.totalorder %s131, %s133
    %p140 = scmp.eq.s32.totalorder %s18, 1
    %p141 = por %p139, %p140
    %p142 = scmp.ne.s32.totalorder %s133, %s134
    %p143 = scmp.eq.s32.totalorder %s18, 0
    %p144 = por %p142, %p143
    %p145 = scmp.ne.s32.totalorder %s133, %s134
    %p146 = scmp.eq.s32.totalorder %s19, 1
    %p147 = por %p145, %p146
    %p149 = scmp.ne.s32.totalorder %s134, %s148
    %p150 = scmp.eq.s32.totalorder %s19, 0
    %p151 = por %p149, %p150
    %s153 = sadd.s32 %s152, 1
    %p156 = scmp.eq.s32.totalorder %s13, 1
    %p157 = scmp.ne.s32.totalorder %s152, %s154
    %p158 = scmp.eq.s32.totalorder %s13, 0
    %p159 = por %p157, %p158
    %p160 = scmp.ne.s32.totalorder %s152, %s154
    %p161 = scmp.eq.s32.totalorder %s18, 1
    %p162 = por %p160, %p161
    %p163 = scmp.ne.s32.totalorder %s154, %s155
    %p164 = scmp.eq.s32.totalorder %s18, 0
    %p165 = por %p163, %p164
    %p166 = scmp.ne.s32.totalorder %s154, %s155
    %p167 = scmp.eq.s32.totalorder %s19, 1
    %p168 = por %p166, %p167
    %p170 = scmp.ne.s32.totalorder %s155, %s169
    %p171 = scmp.eq.s32.totalorder %s19, 0
    %p172 = por %p170, %p171
    %s173 = ssub.s32 %s13, %s20
    %p174 = scmp.eq.s32.totalorder %s173, 0
    %s176 = sadd.s32 %s175, 1
    %s177 = scalar_select %p174, %s175, %s176
    %p180 = pneg %p174
    %p181 = scmp.eq.s32.totalorder %s13, 1
    %p182 = por %p180, %p181
    %p183 = scmp.ne.s32.totalorder %s175, %s178
    %p184 = scmp.eq.s32.totalorder %s13, 0
    %p185 = por %p183, %p184
    %p186 = scmp.ne.s32.totalorder %s175, %s178
    %p187 = scmp.eq.s32.totalorder %s18, 1
    %p188 = por %p186, %p187
    %p189 = scmp.ne.s32.totalorder %s178, %s179
    %p190 = scmp.eq.s32.totalorder %s18, 0
    %p191 = por %p189, %p190
    %p192 = scmp.ne.s32.totalorder %s178, %s179
    %p193 = scmp.eq.s32.totalorder %s19, 1
    %p194 = por %p192, %p193
    %p196 = scmp.ne.s32.totalorder %s179, %s195
    %p197 = scmp.eq.s32.totalorder %s19, 0
    %p198 = por %p196, %p197
    %p199 = scmp.le.s32.totalorder 1, %s13
    %p200 = scmp.lt.s32.totalorder %s13, 3
    %p201 = pnand %p199, %p200
    %p202 = pneg %p201
    // Predicated region
    $region9: #{forward.2} parent=5 // pred_check
      _
    $region10: #{forward.2} parent=5 // pred_check_branch
      %204 = sbr.rel (%p201) target = $region12
    $region11: #{forward.2} parent=5 // pred_region
      %s205 = ssub.s32 %s13, 1
      // Predicated region
      $region13: #{forward.2} parent=11 // pred_check
        %p206 = pneg %p60
      $region14: #{forward.2} parent=11 // pred_check_branch
        %208 = sbr.rel (%p206) target = $region16
      $region15: #{forward.2} parent=11 // pred_region
        _
      $region16: #{forward.2} parent=11 // pred_fallthru
        _
      // Predicated region
      $region17: #{forward.2} parent=11 // pred_check
        %p209 = pneg %p81
      $region18: #{forward.2} parent=11 // pred_check_branch
        %211 = sbr.rel (%p209) target = $region20
      $region19: #{forward.2} parent=11 // pred_region
        _
      $region20: #{forward.2} parent=11 // pred_fallthru
        _
      // Predicated region
      $region21: #{forward.2} parent=11 // pred_check
        %p212 = pneg %p102
      $region22: #{forward.2} parent=11 // pred_check_branch
        %214 = sbr.rel (%p212) target = $region24
      $region23: #{forward.2} parent=11 // pred_region
        _
      $region24: #{forward.2} parent=11 // pred_fallthru
        _
      // Predicated region
      $region25: #{forward.2} parent=11 // pred_check
        %p215 = pneg %p123
      $region26: #{forward.2} parent=11 // pred_check_branch
        %217 = sbr.rel (%p215) target = $region28
      $region27: #{forward.2} parent=11 // pred_region
        _
      $region28: #{forward.2} parent=11 // pred_fallthru
        _
      // Predicated region
      $region29: #{forward.2} parent=11 // pred_check
        %p218 = pneg %p144
      $region30: #{forward.2} parent=11 // pred_check_branch
        %220 = sbr.rel (%p218) target = $region32
      $region31: #{forward.2} parent=11 // pred_region
        _
      $region32: #{forward.2} parent=11 // pred_fallthru
        _
      // Predicated region
      $region33: #{forward.2} parent=11 // pred_check
        %p221 = pneg %p165
      $region34: #{forward.2} parent=11 // pred_check_branch
        %223 = sbr.rel (%p221) target = $region36
      $region35: #{forward.2} parent=11 // pred_region
        _
      $region36: #{forward.2} parent=11 // pred_fallthru
        _
    $region12: #{forward.2} parent=5 // pred_fallthru
      _
    %p224 = scmp.lt.s32.totalorder %s13, 2
    // Predicated region
    $region37: #{forward.2} parent=5 // pred_check
      %p225 = pneg %p224
    $region38: #{forward.2} parent=5 // pred_check_branch
      %227 = sbr.rel (%p225) target = $region40
    $region39: #{forward.2} parent=5 // pred_region
      // Predicated region
      $region41: #{forward.2} parent=39 // pred_check
        %p228 = pneg %p33
      $region42: #{forward.2} parent=39 // pred_check_branch
        %230 = sbr.rel (%p228) target = $region44
      $region43: #{forward.2} parent=39 // pred_region
        %s231 = smul.u32 4, %s13
        %p232 = scmp.lt.s32.totalorder %s231, 7
        %s233 = scalar_select %p232, %s231, 7
        %s234 = smul.addr %s233, 18
        %s235 = smul.addr %s234, 4
        %s236 = scalar_lea.vmem %s0, %s235
        %s237 = smul.u32 4, %s13
      $region44: #{forward.2} parent=39 // pred_fallthru
        _
    $region40: #{forward.2} parent=5 // pred_fallthru
      _
    %p238 = scmp.le.s32.totalorder 1, %s13
    %p239 = scmp.lt.s32.totalorder %s13, 3
    %p240 = pnand %p238, %p239
    %p241 = pneg %p240
    // Predicated region
    $region45: #{forward.2} parent=5 // pred_check
      _
    $region46: #{forward.2} parent=5 // pred_check_branch
      %243 = sbr.rel (%p240) target = $region48
    $region47: #{forward.2} parent=5 // pred_region
      %s244 = ssub.s32 %s13, 1
      %s245 = smul.u32 4, %s18
      %p246 = scmp.lt.s32.totalorder %s245, 7
      %s247 = scalar_select %p246, %s245, 7
      %s248 = smul.addr %s247, 18
      %s249 = smul.addr %s248, 4
      %s250 = scalar_lea.vmem %s0, %s249
      %p251 = pneg %p39
      %p252 = pneg %p36
      %p253 = pneg %p60
      %p254 = pneg %p57
      %p255 = pneg %p81
      %p256 = pneg %p78
      %p257 = pneg %p102
      %p258 = pneg %p99
      %p259 = pneg %p123
      %p260 = pneg %p120
      %p261 = pneg %p144
      %p262 = pneg %p141
      %p263 = pneg %p165
      %p264 = pneg %p162
      %p265 = pneg %p191
      %p266 = pneg %p188
      %p267 = scmp.lt.s32.totalorder %s18, 1
      %s268 = scalar_select %p267, %s18, 1
      %s269 = smul.addr %s268, 8
      %s270 = smul.addr %s269, 4
      %s271 = scalar_lea.vmem %s7, %s270
      %s272 = smul.u32 4, %s18
      %p273 = scmp.lt.s32.totalorder %s272, 7
      %s274 = scalar_select %p273, %s272, 7
      %s275 = smul.addr %s274, 18
      %s276 = smul.addr %s275, 4
      %s277 = scalar_lea.vmem %s0, %s276
      %s278 = smul.u32 4, %s18
      %p279 = scmp.lt.s32.totalorder %s18, 1
      %s280 = scalar_select %p279, %s18, 1
      %s281 = smul.addr %s280, 8
      %s282 = smul.addr %s281, 4
      %s283 = scalar_lea.vmem %s7, %s282
      %v285 = vld [vmem:[%s277] sm:$0xf]
      %v286 = vld [vmem:[%s277 + $0x8] sm:$0xf]
      %v287 = vld [vmem:[%s277 + $0x10] sm:$0xf]
      %v288 = vld [vmem:[%s277 + $0x18] sm:$0xf]
      %v289 = vld [vmem:[%s277 + $0x20] sm:$0xf]
      %v290 = vld [vmem:[%s277 + $0x28] sm:$0xf]
      %v291 = vld [vmem:[%s277 + $0x30] sm:$0xf]
      %v292 = vld [vmem:[%s277 + $0x38] sm:$0xf]
      %v293 = vld [vmem:[%s1] sm:$0xf]
      %v294 = vld [vmem:[%s1 + $0x4] sm:$0xf]
      %v295 = vld [vmem:[%s1 + $0x8] sm:$0xf]
      %v296 = vld [vmem:[%s1 + $0xc] sm:$0xf]
      %v297 = vld [vmem:[%s1 + $0x10] sm:$0xf]
      %v298 = vld [vmem:[%s1 + $0x14] sm:$0xf]
      %v299 = vld [vmem:[%s1 + $0x18] sm:$0xf]
      %v300 = vld [vmem:[%s1 + $0x1c] sm:$0xf]
      %s301 = scalar_lea.vmem %s277, 72
      %v302 = vld [vmem:[%s301] sm:$0xf]
      %v303 = vld [vmem:[%s301 + $0x8] sm:$0xf]
      %v304 = vld [vmem:[%s301 + $0x10] sm:$0xf]
      %v305 = vld [vmem:[%s301 + $0x18] sm:$0xf]
      %v306 = vld [vmem:[%s301 + $0x20] sm:$0xf]
      %v307 = vld [vmem:[%s301 + $0x28] sm:$0xf]
      %v308 = vld [vmem:[%s301 + $0x30] sm:$0xf]
      %v309 = vld [vmem:[%s301 + $0x38] sm:$0xf]
      %s310 = scalar_lea.vmem %s1, 32
      %v311 = vld [vmem:[%s310] sm:$0xf]
      %v312 = vld [vmem:[%s310 + $0x4] sm:$0xf]
      %v313 = vld [vmem:[%s310 + $0x8] sm:$0xf]
      %v314 = vld [vmem:[%s310 + $0xc] sm:$0xf]
      %v315 = vld [vmem:[%s310 + $0x10] sm:$0xf]
      %v316 = vld [vmem:[%s310 + $0x14] sm:$0xf]
      %v317 = vld [vmem:[%s310 + $0x18] sm:$0xf]
      %v318 = vld [vmem:[%s310 + $0x1c] sm:$0xf]
      %v327 = vunpack.c.l.b16 %v302
      %v328 = vunpack.c.l.b16 %v303
      %v329 = vunpack.c.l.b16 %v304
      %v330 = vunpack.c.l.b16 %v305
      %v331 = vunpack.c.l.b16 %v306
      %v332 = vunpack.c.l.b16 %v307
      %v333 = vunpack.c.l.b16 %v308
      %v334 = vunpack.c.l.b16 %v309
      %v335 = vpack.c.b16 %v328, %v327
      %v336 = vpack.c.b16 %v330, %v329
      %v337 = vpack.c.b16 %v332, %v331
      %v338 = vpack.c.b16 %v334, %v333
      %v347 = vunpack.c.l.b16 %v311
      %v348 = vunpack.c.l.b16 %v312
      %v349 = vunpack.c.l.b16 %v313
      %v350 = vunpack.c.l.b16 %v314
      %v351 = vunpack.c.l.b16 %v315
      %v352 = vunpack.c.l.b16 %v316
      %v353 = vunpack.c.l.b16 %v317
      %v354 = vunpack.c.l.b16 %v318
      %v355 = vpack.c.b16 %v348, %v347
      %v356 = vpack.c.b16 %v350, %v349
      %v357 = vpack.c.b16 %v352, %v351
      %v358 = vpack.c.b16 %v354, %v353
      %vm363 = vcmask 523264
      %v365 = vsel %vm363, %v335, 0
      %v368 = vsel %vm363, %v336, 0
      %v371 = vsel %vm363, %v337, 0
      %v374 = vsel %vm363, %v338, 0
      %376 = vmatpush.bf16.msra.mxu0 0
      %377 = vmatpush.bf16.msra.mxu0 0
      %378 = vmatpush.bf16.msra.mxu0 0
      %379 = vmatpush.bf16.msra.mxu0 0
      %380 = vmatpush.bf16.msra.mxu0 %v358
      %381 = vmatpush.bf16.msra.mxu0 %v357
      %382 = vmatpush.bf16.msra.mxu0 %v356
      %383 = vmatpush.bf16.msra.mxu0 %v355
      %384 = vmatmul.bf16.gmra.mxu0 %v365
      %v385 = vpop.f32.mrf.mxu0
      %v386 = vadd.f32 0.0, %v385
      %v387 = vpop.f32.mrf.mxu0
      %v388 = vadd.f32 0.0, %v387
      %389 = vmatmul.bf16.gmra.mxu0 %v368
      %v390 = vpop.f32.mrf.mxu0
      %v391 = vadd.f32 0.0, %v390
      %v392 = vpop.f32.mrf.mxu0
      %v393 = vadd.f32 0.0, %v392
      %394 = vmatmul.bf16.gmra.mxu0 %v371
      %v395 = vpop.f32.mrf.mxu0
      %v396 = vadd.f32 0.0, %v395
      %v397 = vpop.f32.mrf.mxu0
      %v398 = vadd.f32 0.0, %v397
      %399 = vmatmul.bf16.gmra.mxu0 %v374
      %v400 = vpop.f32.mrf.mxu0
      %v401 = vadd.f32 0.0, %v400
      %v402 = vpop.f32.mrf.mxu0
      %v403 = vadd.f32 0.0, %v402
      %404 = vdwg.mxu0
      %v413 = vunpack.c.l.b16 %v285
      %v414 = vunpack.c.l.b16 %v286
      %v415 = vunpack.c.l.b16 %v287
      %v416 = vunpack.c.l.b16 %v288
      %v417 = vunpack.c.l.b16 %v289
      %v418 = vunpack.c.l.b16 %v290
      %v419 = vunpack.c.l.b16 %v291
      %v420 = vunpack.c.l.b16 %v292
      %v421 = vpack.c.b16 %v414, %v413
      %v422 = vpack.c.b16 %v416, %v415
      %v423 = vpack.c.b16 %v418, %v417
      %v424 = vpack.c.b16 %v420, %v419
      %v433 = vunpack.c.l.b16 %v293
      %v434 = vunpack.c.l.b16 %v294
      %v435 = vunpack.c.l.b16 %v295
      %v436 = vunpack.c.l.b16 %v296
      %v437 = vunpack.c.l.b16 %v297
      %v438 = vunpack.c.l.b16 %v298
      %v439 = vunpack.c.l.b16 %v299
      %v440 = vunpack.c.l.b16 %v300
      %v441 = vpack.c.b16 %v434, %v433
      %v442 = vpack.c.b16 %v436, %v435
      %v443 = vpack.c.b16 %v438, %v437
      %v444 = vpack.c.b16 %v440, %v439
      %v450 = vsel %vm363, %v421, 0
      %v453 = vsel %vm363, %v422, 0
      %v456 = vsel %vm363, %v423, 0
      %v459 = vsel %vm363, %v424, 0
      %461 = vmatpush.bf16.msra.mxu0 0
      %462 = vmatpush.bf16.msra.mxu0 0
      %463 = vmatpush.bf16.msra.mxu0 0
      %464 = vmatpush.bf16.msra.mxu0 0
      %465 = vmatpush.bf16.msra.mxu0 %v444
      %466 = vmatpush.bf16.msra.mxu0 %v443
      %467 = vmatpush.bf16.msra.mxu0 %v442
      %468 = vmatpush.bf16.msra.mxu0 %v441
      %469 = vmatmul.bf16.gmra.mxu0 %v450
      %v470 = vpop.f32.mrf.mxu0
      %v471 = vadd.f32 %v386, %v470
      %v472 = vpop.f32.mrf.mxu0
      %v473 = vadd.f32 %v388, %v472
      %474 = vmatmul.bf16.gmra.mxu0 %v453
      %v475 = vpop.f32.mrf.mxu0
      %v476 = vadd.f32 %v391, %v475
      %v477 = vpop.f32.mrf.mxu0
      %v478 = vadd.f32 %v393, %v477
      %479 = vmatmul.bf16.gmra.mxu0 %v456
      %v480 = vpop.f32.mrf.mxu0
      %v481 = vadd.f32 %v396, %v480
      %v482 = vpop.f32.mrf.mxu0
      %v483 = vadd.f32 %v398, %v482
      %484 = vmatmul.bf16.gmra.mxu0 %v459
      %v485 = vpop.f32.mrf.mxu0
      %v486 = vadd.f32 %v401, %v485
      %v487 = vpop.f32.mrf.mxu0
      %v488 = vadd.f32 %v403, %v487
      %489 = vdwg.mxu0
      %v490 = vld [vmem:[%s277] sm:$0xf]
      %v491 = vld [vmem:[%s277 + $0x4] sm:$0x1]
      %v492 = vld [vmem:[%s277 + $0x8] sm:$0xf]
      %v493 = vld [vmem:[%s277 + $0xc] sm:$0x1]
      %v494 = vld [vmem:[%s277 + $0x10] sm:$0xf]
      %v495 = vld [vmem:[%s277 + $0x14] sm:$0x1]
      %v496 = vld [vmem:[%s277 + $0x18] sm:$0xf]
      %v497 = vld [vmem:[%s277 + $0x1c] sm:$0x1]
      %v498 = vld [vmem:[%s277 + $0x20] sm:$0xf]
      %v499 = vld [vmem:[%s277 + $0x24] sm:$0x1]
      %v500 = vld [vmem:[%s277 + $0x28] sm:$0xf]
      %v501 = vld [vmem:[%s277 + $0x2c] sm:$0x1]
      %v502 = vld [vmem:[%s277 + $0x30] sm:$0xf]
      %v503 = vld [vmem:[%s277 + $0x34] sm:$0x1]
      %v504 = vld [vmem:[%s277 + $0x38] sm:$0xf]
      %v505 = vld [vmem:[%s277 + $0x3c] sm:$0x1]
      %vm506 = vsmask.f32 3328
      %vm507 = vsmask.f32 7440
      %vm508 = vmor %vm506, %vm507
      %v510 = vshrl.u32 %v490, 16
      %v512 = vrot.slane %v510, 4
      %v513 = vshll.u32 %v490, 16
      %v515 = vrot.slane %v513, 5
      %v516 = vor.u32 %v512, %v515
      %v517 = vrot.slane %v516, 4
      %v519 = vshll.u32 %v491, 16
      %v521 = vrot.slane %v519, 5
      %v522 = vsel %vm508, %v517, %v521
      %v524 = vshrl.u32 %v492, 16
      %v526 = vrot.slane %v524, 4
      %v527 = vshll.u32 %v492, 16
      %v529 = vrot.slane %v527, 5
      %v530 = vor.u32 %v526, %v529
      %v531 = vrot.slane %v530, 4
      %v533 = vshll.u32 %v493, 16
      %v535 = vrot.slane %v533, 5
      %v536 = vsel %vm508, %v531, %v535
      %v538 = vshrl.u32 %v494, 16
      %v540 = vrot.slane %v538, 4
      %v541 = vshll.u32 %v494, 16
      %v543 = vrot.slane %v541, 5
      %v544 = vor.u32 %v540, %v543
      %v545 = vrot.slane %v544, 4
      %v547 = vshll.u32 %v495, 16
      %v549 = vrot.slane %v547, 5
      %v550 = vsel %vm508, %v545, %v549
      %v552 = vshrl.u32 %v496, 16
      %v554 = vrot.slane %v552, 4
      %v555 = vshll.u32 %v496, 16
      %v557 = vrot.slane %v555, 5
      %v558 = vor.u32 %v554, %v557
      %v559 = vrot.slane %v558, 4
      %v561 = vshll.u32 %v497, 16
      %v563 = vrot.slane %v561, 5
      %v564 = vsel %vm508, %v559, %v563
      %v566 = vshrl.u32 %v498, 16
      %v568 = vrot.slane %v566, 4
      %v569 = vshll.u32 %v498, 16
      %v571 = vrot.slane %v569, 5
      %v572 = vor.u32 %v568, %v571
      %v573 = vrot.slane %v572, 4
      %v575 = vshll.u32 %v499, 16
      %v577 = vrot.slane %v575, 5
      %v578 = vsel %vm508, %v573, %v577
      %v580 = vshrl.u32 %v500, 16
      %v582 = vrot.slane %v580, 4
      %v583 = vshll.u32 %v500, 16
      %v585 = vrot.slane %v583, 5
      %v586 = vor.u32 %v582, %v585
      %v587 = vrot.slane %v586, 4
      %v589 = vshll.u32 %v501, 16
      %v591 = vrot.slane %v589, 5
      %v592 = vsel %vm508, %v587, %v591
      %v594 = vshrl.u32 %v502, 16
      %v596 = vrot.slane %v594, 4
      %v597 = vshll.u32 %v502, 16
      %v599 = vrot.slane %v597, 5
      %v600 = vor.u32 %v596, %v599
      %v601 = vrot.slane %v600, 4
      %v603 = vshll.u32 %v503, 16
      %v605 = vrot.slane %v603, 5
      %v606 = vsel %vm508, %v601, %v605
      %v608 = vshrl.u32 %v504, 16
      %v610 = vrot.slane %v608, 4
      %v611 = vshll.u32 %v504, 16
      %v613 = vrot.slane %v611, 5
      %v614 = vor.u32 %v610, %v613
      %v615 = vrot.slane %v614, 4
      %v617 = vshll.u32 %v505, 16
      %v619 = vrot.slane %v617, 5
      %v620 = vsel %vm508, %v615, %v619
      %s621 = scalar_lea.vmem %s1, 64
      %v622 = vld [vmem:[%s621] sm:$0xf]
      %v623 = vld [vmem:[%s621 + $0x4] sm:$0xf]
      %v624 = vld [vmem:[%s621 + $0x8] sm:$0xf]
      %v625 = vld [vmem:[%s621 + $0xc] sm:$0xf]
      %v626 = vld [vmem:[%s621 + $0x10] sm:$0xf]
      %v627 = vld [vmem:[%s621 + $0x14] sm:$0xf]
      %v628 = vld [vmem:[%s621 + $0x18] sm:$0xf]
      %v629 = vld [vmem:[%s621 + $0x1c] sm:$0xf]
      %v630 = vunpack.c.l.b16 %v522
      %v631 = vunpack.c.l.b16 %v536
      %v632 = vunpack.c.l.b16 %v550
      %v633 = vunpack.c.l.b16 %v564
      %v634 = vunpack.c.l.b16 %v578
      %v635 = vunpack.c.l.b16 %v592
      %v636 = vunpack.c.l.b16 %v606
      %v637 = vunpack.c.l.b16 %v620
      %v638 = vpack.c.b16 %v631, %v630
      %v639 = vpack.c.b16 %v633, %v632
      %v640 = vpack.c.b16 %v635, %v634
      %v641 = vpack.c.b16 %v637, %v636
      %v650 = vunpack.c.l.b16 %v622
      %v651 = vunpack.c.l.b16 %v623
      %v652 = vunpack.c.l.b16 %v624
      %v653 = vunpack.c.l.b16 %v625
      %v654 = vunpack.c.l.b16 %v626
      %v655 = vunpack.c.l.b16 %v627
      %v656 = vunpack.c.l.b16 %v628
      %v657 = vunpack.c.l.b16 %v629
      %v658 = vpack.c.b16 %v651, %v650
      %v659 = vpack.c.b16 %v653, %v652
      %v660 = vpack.c.b16 %v655, %v654
      %v661 = vpack.c.b16 %v657, %v656
      %v667 = vsel %vm363, %v638, 0
      %v670 = vsel %vm363, %v639, 0
      %v673 = vsel %vm363, %v640, 0
      %v676 = vsel %vm363, %v641, 0
      %678 = vmatpush.bf16.msra.mxu0 0
      %679 = vmatpush.bf16.msra.mxu0 0
      %680 = vmatpush.bf16.msra.mxu0 0
      %681 = vmatpush.bf16.msra.mxu0 0
      %682 = vmatpush.bf16.msra.mxu0 %v661
      %683 = vmatpush.bf16.msra.mxu0 %v660
      %684 = vmatpush.bf16.msra.mxu0 %v659
      %685 = vmatpush.bf16.msra.mxu0 %v658
      %686 = vmatmul.bf16.gmra.mxu0 %v667
      %v687 = vpop.f32.mrf.mxu0
      %v688 = vadd.f32 0.0, %v687
      %v689 = vpop.f32.mrf.mxu0
      %v690 = vadd.f32 0.0, %v689
      %691 = vmatmul.bf16.gmra.mxu0 %v670
      %v692 = vpop.f32.mrf.mxu0
      %v693 = vadd.f32 0.0, %v692
      %v694 = vpop.f32.mrf.mxu0
      %v695 = vadd.f32 0.0, %v694
      %696 = vmatmul.bf16.gmra.mxu0 %v673
      %v697 = vpop.f32.mrf.mxu0
      %v698 = vadd.f32 0.0, %v697
      %v699 = vpop.f32.mrf.mxu0
      %v700 = vadd.f32 0.0, %v699
      %701 = vmatmul.bf16.gmra.mxu0 %v676
      %v702 = vpop.f32.mrf.mxu0
      %v703 = vadd.f32 0.0, %v702
      %v704 = vpop.f32.mrf.mxu0
      %v705 = vadd.f32 0.0, %v704
      %706 = vdwg.mxu0
      %v707 = vadd.f32 %v471, %v688
      %v708 = vadd.f32 %v473, %v690
      %v709 = vadd.f32 %v476, %v693
      %v710 = vadd.f32 %v478, %v695
      %v711 = vadd.f32 %v481, %v698
      %v712 = vadd.f32 %v483, %v700
      %v713 = vadd.f32 %v486, %v703
      %v714 = vadd.f32 %v488, %v705
      %s715 = scalar_lea.vmem %s277, 144
      %v716 = vld [vmem:[%s715] sm:$0xf]
      %v717 = vld [vmem:[%s715 + $0x8] sm:$0xf]
      %v718 = vld [vmem:[%s715 + $0x10] sm:$0xf]
      %v719 = vld [vmem:[%s715 + $0x18] sm:$0xf]
      %v720 = vld [vmem:[%s715 + $0x20] sm:$0xf]
      %v721 = vld [vmem:[%s715 + $0x28] sm:$0xf]
      %v722 = vld [vmem:[%s715 + $0x30] sm:$0xf]
      %v723 = vld [vmem:[%s715 + $0x38] sm:$0xf]
      %s724 = scalar_lea.vmem %s1, 96
      %v725 = vld [vmem:[%s724] sm:$0xf]
      %v726 = vld [vmem:[%s724 + $0x4] sm:$0xf]
      %v727 = vld [vmem:[%s724 + $0x8] sm:$0xf]
      %v728 = vld [vmem:[%s724 + $0xc] sm:$0xf]
      %v729 = vld [vmem:[%s724 + $0x10] sm:$0xf]
      %v730 = vld [vmem:[%s724 + $0x14] sm:$0xf]
      %v731 = vld [vmem:[%s724 + $0x18] sm:$0xf]
      %v732 = vld [vmem:[%s724 + $0x1c] sm:$0xf]
      %v741 = vunpack.c.l.b16 %v716
      %v742 = vunpack.c.l.b16 %v717
      %v743 = vunpack.c.l.b16 %v718
      %v744 = vunpack.c.l.b16 %v719
      %v745 = vunpack.c.l.b16 %v720
      %v746 = vunpack.c.l.b16 %v721
      %v747 = vunpack.c.l.b16 %v722
      %v748 = vunpack.c.l.b16 %v723
      %v749 = vpack.c.b16 %v742, %v741
      %v750 = vpack.c.b16 %v744, %v743
      %v751 = vpack.c.b16 %v746, %v745
      %v752 = vpack.c.b16 %v748, %v747
      %v761 = vunpack.c.l.b16 %v725
      %v762 = vunpack.c.l.b16 %v726
      %v763 = vunpack.c.l.b16 %v727
      %v764 = vunpack.c.l.b16 %v728
      %v765 = vunpack.c.l.b16 %v729
      %v766 = vunpack.c.l.b16 %v730
      %v767 = vunpack.c.l.b16 %v731
      %v768 = vunpack.c.l.b16 %v732
      %v769 = vpack.c.b16 %v762, %v761
      %v770 = vpack.c.b16 %v764, %v763
      %v771 = vpack.c.b16 %v766, %v765
      %v772 = vpack.c.b16 %v768, %v767
      %v778 = vsel %vm363, %v749, 0
      %v781 = vsel %vm363, %v750, 0
      %v784 = vsel %vm363, %v751, 0
      %v787 = vsel %vm363, %v752, 0
      %789 = vmatpush.bf16.msra.mxu0 0
      %790 = vmatpush.bf16.msra.mxu0 0
      %791 = vmatpush.bf16.msra.mxu0 0
      %792 = vmatpush.bf16.msra.mxu0 0
      %793 = vmatpush.bf16.msra.mxu0 %v772
      %794 = vmatpush.bf16.msra.mxu0 %v771
      %795 = vmatpush.bf16.msra.mxu0 %v770
      %796 = vmatpush.bf16.msra.mxu0 %v769
      %797 = vmatmul.bf16.gmra.mxu0 %v778
      %v798 = vpop.f32.mrf.mxu0
      %v799 = vadd.f32 0.0, %v798
      %v800 = vpop.f32.mrf.mxu0
      %v801 = vadd.f32 0.0, %v800
      %802 = vmatmul.bf16.gmra.mxu0 %v781
      %v803 = vpop.f32.mrf.mxu0
      %v804 = vadd.f32 0.0, %v803
      %v805 = vpop.f32.mrf.mxu0
      %v806 = vadd.f32 0.0, %v805
      %807 = vmatmul.bf16.gmra.mxu0 %v784
      %v808 = vpop.f32.mrf.mxu0
      %v809 = vadd.f32 0.0, %v808
      %v810 = vpop.f32.mrf.mxu0
      %v811 = vadd.f32 0.0, %v810
      %812 = vmatmul.bf16.gmra.mxu0 %v787
      %v813 = vpop.f32.mrf.mxu0
      %v814 = vadd.f32 0.0, %v813
      %v815 = vpop.f32.mrf.mxu0
      %v816 = vadd.f32 0.0, %v815
      %817 = vdwg.mxu0
      %v818 = vadd.f32 %v707, %v799
      %v819 = vadd.f32 %v708, %v801
      %v820 = vadd.f32 %v709, %v804
      %v821 = vadd.f32 %v710, %v806
      %v822 = vadd.f32 %v711, %v809
      %v823 = vadd.f32 %v712, %v811
      %v824 = vadd.f32 %v713, %v814
      %v825 = vadd.f32 %v714, %v816
      %s826 = scalar_lea.vmem %s277, 216
      %v827 = vld [vmem:[%s826] sm:$0xf]
      %v828 = vld [vmem:[%s826 + $0x8] sm:$0xf]
      %v829 = vld [vmem:[%s826 + $0x10] sm:$0xf]
      %v830 = vld [vmem:[%s826 + $0x18] sm:$0xf]
      %v831 = vld [vmem:[%s826 + $0x20] sm:$0xf]
      %v832 = vld [vmem:[%s826 + $0x28] sm:$0xf]
      %v833 = vld [vmem:[%s826 + $0x30] sm:$0xf]
      %v834 = vld [vmem:[%s826 + $0x38] sm:$0xf]
      %s835 = scalar_lea.vmem %s1, 128
      %v836 = vld [vmem:[%s835] sm:$0xf]
      %v837 = vld [vmem:[%s835 + $0x4] sm:$0xf]
      %v838 = vld [vmem:[%s835 + $0x8] sm:$0xf]
      %v839 = vld [vmem:[%s835 + $0xc] sm:$0xf]
      %v840 = vld [vmem:[%s835 + $0x10] sm:$0xf]
      %v841 = vld [vmem:[%s835 + $0x14] sm:$0xf]
      %v842 = vld [vmem:[%s835 + $0x18] sm:$0xf]
      %v843 = vld [vmem:[%s835 + $0x1c] sm:$0xf]
      %v852 = vunpack.c.l.b16 %v827
      %v853 = vunpack.c.l.b16 %v828
      %v854 = vunpack.c.l.b16 %v829
      %v855 = vunpack.c.l.b16 %v830
      %v856 = vunpack.c.l.b16 %v831
      %v857 = vunpack.c.l.b16 %v832
      %v858 = vunpack.c.l.b16 %v833
      %v859 = vunpack.c.l.b16 %v834
      %v860 = vpack.c.b16 %v853, %v852
      %v861 = vpack.c.b16 %v855, %v854
      %v862 = vpack.c.b16 %v857, %v856
      %v863 = vpack.c.b16 %v859, %v858
      %v872 = vunpack.c.l.b16 %v836
      %v873 = vunpack.c.l.b16 %v837
      %v874 = vunpack.c.l.b16 %v838
      %v875 = vunpack.c.l.b16 %v839
      %v876 = vunpack.c.l.b16 %v840
      %v877 = vunpack.c.l.b16 %v841
      %v878 = vunpack.c.l.b16 %v842
      %v879 = vunpack.c.l.b16 %v843
      %v880 = vpack.c.b16 %v873, %v872
      %v881 = vpack.c.b16 %v875, %v874
      %v882 = vpack.c.b16 %v877, %v876
      %v883 = vpack.c.b16 %v879, %v878
      %v889 = vsel %vm363, %v860, 0
      %v892 = vsel %vm363, %v861, 0
      %v895 = vsel %vm363, %v862, 0
      %v898 = vsel %vm363, %v863, 0
      %900 = vmatpush.bf16.msra.mxu0 0
      %901 = vmatpush.bf16.msra.mxu0 0
      %902 = vmatpush.bf16.msra.mxu0 0
      %903 = vmatpush.bf16.msra.mxu0 0
      %904 = vmatpush.bf16.msra.mxu0 %v883
      %905 = vmatpush.bf16.msra.mxu0 %v882
      %906 = vmatpush.bf16.msra.mxu0 %v881
      %907 = vmatpush.bf16.msra.mxu0 %v880
      %908 = vmatmul.bf16.gmra.mxu0 %v889
      %v909 = vpop.f32.mrf.mxu0
      %v910 = vadd.f32 0.0, %v909
      %v911 = vpop.f32.mrf.mxu0
      %v912 = vadd.f32 0.0, %v911
      %913 = vmatmul.bf16.gmra.mxu0 %v892
      %v914 = vpop.f32.mrf.mxu0
      %v915 = vadd.f32 0.0, %v914
      %v916 = vpop.f32.mrf.mxu0
      %v917 = vadd.f32 0.0, %v916
      %918 = vmatmul.bf16.gmra.mxu0 %v895
      %v919 = vpop.f32.mrf.mxu0
      %v920 = vadd.f32 0.0, %v919
      %v921 = vpop.f32.mrf.mxu0
      %v922 = vadd.f32 0.0, %v921
      %923 = vmatmul.bf16.gmra.mxu0 %v898
      %v924 = vpop.f32.mrf.mxu0
      %v925 = vadd.f32 0.0, %v924
      %v926 = vpop.f32.mrf.mxu0
      %v927 = vadd.f32 0.0, %v926
      %928 = vdwg.mxu0
      %v929 = vadd.f32 %v818, %v910
      %v930 = vadd.f32 %v819, %v912
      %v931 = vadd.f32 %v820, %v915
      %v932 = vadd.f32 %v821, %v917
      %v933 = vadd.f32 %v822, %v920
      %v934 = vadd.f32 %v823, %v922
      %v935 = vadd.f32 %v824, %v925
      %v936 = vadd.f32 %v825, %v927
      %v937 = vld [vmem:[%s715] sm:$0xf]
      %v938 = vld [vmem:[%s715 + $0x4] sm:$0x1]
      %v939 = vld [vmem:[%s715 + $0x8] sm:$0xf]
      %v940 = vld [vmem:[%s715 + $0xc] sm:$0x1]
      %v941 = vld [vmem:[%s715 + $0x10] sm:$0xf]
      %v942 = vld [vmem:[%s715 + $0x14] sm:$0x1]
      %v943 = vld [vmem:[%s715 + $0x18] sm:$0xf]
      %v944 = vld [vmem:[%s715 + $0x1c] sm:$0x1]
      %v945 = vld [vmem:[%s715 + $0x20] sm:$0xf]
      %v946 = vld [vmem:[%s715 + $0x24] sm:$0x1]
      %v947 = vld [vmem:[%s715 + $0x28] sm:$0xf]
      %v948 = vld [vmem:[%s715 + $0x2c] sm:$0x1]
      %v949 = vld [vmem:[%s715 + $0x30] sm:$0xf]
      %v950 = vld [vmem:[%s715 + $0x34] sm:$0x1]
      %v951 = vld [vmem:[%s715 + $0x38] sm:$0xf]
      %v952 = vld [vmem:[%s715 + $0x3c] sm:$0x1]
      %v954 = vshrl.u32 %v937, 16
      %v956 = vrot.slane %v954, 4
      %v957 = vshll.u32 %v937, 16
      %v959 = vrot.slane %v957, 5
      %v960 = vor.u32 %v956, %v959
      %v961 = vrot.slane %v960, 4
      %v963 = vshll.u32 %v938, 16
      %v965 = vrot.slane %v963, 5
      %v966 = vsel %vm508, %v961, %v965
      %v968 = vshrl.u32 %v939, 16
      %v970 = vrot.slane %v968, 4
      %v971 = vshll.u32 %v939, 16
      %v973 = vrot.slane %v971, 5
      %v974 = vor.u32 %v970, %v973
      %v975 = vrot.slane %v974, 4
      %v977 = vshll.u32 %v940, 16
      %v979 = vrot.slane %v977, 5
      %v980 = vsel %vm508, %v975, %v979
      %v982 = vshrl.u32 %v941, 16
      %v984 = vrot.slane %v982, 4
      %v985 = vshll.u32 %v941, 16
      %v987 = vrot.slane %v985, 5
      %v988 = vor.u32 %v984, %v987
      %v989 = vrot.slane %v988, 4
      %v991 = vshll.u32 %v942, 16
      %v993 = vrot.slane %v991, 5
      %v994 = vsel %vm508, %v989, %v993
      %v996 = vshrl.u32 %v943, 16
      %v998 = vrot.slane %v996, 4
      %v999 = vshll.u32 %v943, 16
      %v1001 = vrot.slane %v999, 5
      %v1002 = vor.u32 %v998, %v1001
      %v1003 = vrot.slane %v1002, 4
      %v1005 = vshll.u32 %v944, 16
      %v1007 = vrot.slane %v1005, 5
      %v1008 = vsel %vm508, %v1003, %v1007
      %v1010 = vshrl.u32 %v945, 16
      %v1012 = vrot.slane %v1010, 4
      %v1013 = vshll.u32 %v945, 16
      %v1015 = vrot.slane %v1013, 5
      %v1016 = vor.u32 %v1012, %v1015
      %v1017 = vrot.slane %v1016, 4
      %v1019 = vshll.u32 %v946, 16
      %v1021 = vrot.slane %v1019, 5
      %v1022 = vsel %vm508, %v1017, %v1021
      %v1024 = vshrl.u32 %v947, 16
      %v1026 = vrot.slane %v1024, 4
      %v1027 = vshll.u32 %v947, 16
      %v1029 = vrot.slane %v1027, 5
      %v1030 = vor.u32 %v1026, %v1029
      %v1031 = vrot.slane %v1030, 4
      %v1033 = vshll.u32 %v948, 16
      %v1035 = vrot.slane %v1033, 5
      %v1036 = vsel %vm508, %v1031, %v1035
      %v1038 = vshrl.u32 %v949, 16
      %v1040 = vrot.slane %v1038, 4
      %v1041 = vshll.u32 %v949, 16
      %v1043 = vrot.slane %v1041, 5
      %v1044 = vor.u32 %v1040, %v1043
      %v1045 = vrot.slane %v1044, 4
      %v1047 = vshll.u32 %v950, 16
      %v1049 = vrot.slane %v1047, 5
      %v1050 = vsel %vm508, %v1045, %v1049
      %v1052 = vshrl.u32 %v951, 16
      %v1054 = vrot.slane %v1052, 4
      %v1055 = vshll.u32 %v951, 16
      %v1057 = vrot.slane %v1055, 5
      %v1058 = vor.u32 %v1054, %v1057
      %v1059 = vrot.slane %v1058, 4
      %v1061 = vshll.u32 %v952, 16
      %v1063 = vrot.slane %v1061, 5
      %v1064 = vsel %vm508, %v1059, %v1063
      %s1065 = scalar_lea.vmem %s1, 160
      %v1066 = vld [vmem:[%s1065] sm:$0xf]
      %v1067 = vld [vmem:[%s1065 + $0x4] sm:$0xf]
      %v1068 = vld [vmem:[%s1065 + $0x8] sm:$0xf]
      %v1069 = vld [vmem:[%s1065 + $0xc] sm:$0xf]
      %v1070 = vld [vmem:[%s1065 + $0x10] sm:$0xf]
      %v1071 = vld [vmem:[%s1065 + $0x14] sm:$0xf]
      %v1072 = vld [vmem:[%s1065 + $0x18] sm:$0xf]
      %v1073 = vld [vmem:[%s1065 + $0x1c] sm:$0xf]
      %v1074 = vunpack.c.l.b16 %v966
      %v1075 = vunpack.c.l.b16 %v980
      %v1076 = vunpack.c.l.b16 %v994
      %v1077 = vunpack.c.l.b16 %v1008
      %v1078 = vunpack.c.l.b16 %v1022
      %v1079 = vunpack.c.l.b16 %v1036
      %v1080 = vunpack.c.l.b16 %v1050
      %v1081 = vunpack.c.l.b16 %v1064
      %v1082 = vpack.c.b16 %v1075, %v1074
      %v1083 = vpack.c.b16 %v1077, %v1076
      %v1084 = vpack.c.b16 %v1079, %v1078
      %v1085 = vpack.c.b16 %v1081, %v1080
      %v1094 = vunpack.c.l.b16 %v1066
      %v1095 = vunpack.c.l.b16 %v1067
      %v1096 = vunpack.c.l.b16 %v1068
      %v1097 = vunpack.c.l.b16 %v1069
      %v1098 = vunpack.c.l.b16 %v1070
      %v1099 = vunpack.c.l.b16 %v1071
      %v1100 = vunpack.c.l.b16 %v1072
      %v1101 = vunpack.c.l.b16 %v1073
      %v1102 = vpack.c.b16 %v1095, %v1094
      %v1103 = vpack.c.b16 %v1097, %v1096
      %v1104 = vpack.c.b16 %v1099, %v1098
      %v1105 = vpack.c.b16 %v1101, %v1100
      %v1111 = vsel %vm363, %v1082, 0
      %v1114 = vsel %vm363, %v1083, 0
      %v1117 = vsel %vm363, %v1084, 0
      %v1120 = vsel %vm363, %v1085, 0
      %1122 = vmatpush.bf16.msra.mxu0 0
      %1123 = vmatpush.bf16.msra.mxu0 0
      %1124 = vmatpush.bf16.msra.mxu0 0
      %1125 = vmatpush.bf16.msra.mxu0 0
      %1126 = vmatpush.bf16.msra.mxu0 %v1105
      %1127 = vmatpush.bf16.msra.mxu0 %v1104
      %1128 = vmatpush.bf16.msra.mxu0 %v1103
      %1129 = vmatpush.bf16.msra.mxu0 %v1102
      %1130 = vmatmul.bf16.gmra.mxu0 %v1111
      %v1131 = vpop.f32.mrf.mxu0
      %v1132 = vadd.f32 0.0, %v1131
      %v1133 = vpop.f32.mrf.mxu0
      %v1134 = vadd.f32 0.0, %v1133
      %1135 = vmatmul.bf16.gmra.mxu0 %v1114
      %v1136 = vpop.f32.mrf.mxu0
      %v1137 = vadd.f32 0.0, %v1136
      %v1138 = vpop.f32.mrf.mxu0
      %v1139 = vadd.f32 0.0, %v1138
      %1140 = vmatmul.bf16.gmra.mxu0 %v1117
      %v1141 = vpop.f32.mrf.mxu0
      %v1142 = vadd.f32 0.0, %v1141
      %v1143 = vpop.f32.mrf.mxu0
      %v1144 = vadd.f32 0.0, %v1143
      %1145 = vmatmul.bf16.gmra.mxu0 %v1120
      %v1146 = vpop.f32.mrf.mxu0
      %v1147 = vadd.f32 0.0, %v1146
      %v1148 = vpop.f32.mrf.mxu0
      %v1149 = vadd.f32 0.0, %v1148
      %1150 = vdwg.mxu0
      %v1151 = vadd.f32 %v929, %v1132
      %v1152 = vadd.f32 %v930, %v1134
      %v1153 = vadd.f32 %v931, %v1137
      %v1154 = vadd.f32 %v932, %v1139
      %v1155 = vadd.f32 %v933, %v1142
      %v1156 = vadd.f32 %v934, %v1144
      %v1157 = vadd.f32 %v935, %v1147
      %v1158 = vadd.f32 %v936, %v1149
      %s1159 = scalar_lea.vmem %s277, 8
      %v1160 = vld [vmem:[%s1159] sm:$0xf]
      %v1161 = vld [vmem:[%s1159 + $0x8] sm:$0xf]
      %v1162 = vld [vmem:[%s1159 + $0x10] sm:$0xf]
      %v1163 = vld [vmem:[%s1159 + $0x18] sm:$0xf]
      %v1164 = vld [vmem:[%s1159 + $0x20] sm:$0xf]
      %v1165 = vld [vmem:[%s1159 + $0x28] sm:$0xf]
      %v1166 = vld [vmem:[%s1159 + $0x30] sm:$0xf]
      %v1167 = vld [vmem:[%s1159 + $0x38] sm:$0xf]
      %s1168 = scalar_lea.vmem %s1, 192
      %v1169 = vld [vmem:[%s1168] sm:$0xf]
      %v1170 = vld [vmem:[%s1168 + $0x4] sm:$0xf]
      %v1171 = vld [vmem:[%s1168 + $0x8] sm:$0xf]
      %v1172 = vld [vmem:[%s1168 + $0xc] sm:$0xf]
      %v1173 = vld [vmem:[%s1168 + $0x10] sm:$0xf]
      %v1174 = vld [vmem:[%s1168 + $0x14] sm:$0xf]
      %v1175 = vld [vmem:[%s1168 + $0x18] sm:$0xf]
      %v1176 = vld [vmem:[%s1168 + $0x1c] sm:$0xf]
      %v1185 = vunpack.c.l.b16 %v1160
      %v1186 = vunpack.c.l.b16 %v1161
      %v1187 = vunpack.c.l.b16 %v1162
      %v1188 = vunpack.c.l.b16 %v1163
      %v1189 = vunpack.c.l.b16 %v1164
      %v1190 = vunpack.c.l.b16 %v1165
      %v1191 = vunpack.c.l.b16 %v1166
      %v1192 = vunpack.c.l.b16 %v1167
      %v1193 = vpack.c.b16 %v1186, %v1185
      %v1194 = vpack.c.b16 %v1188, %v1187
      %v1195 = vpack.c.b16 %v1190, %v1189
      %v1196 = vpack.c.b16 %v1192, %v1191
      %v1205 = vunpack.c.l.b16 %v1169
      %v1206 = vunpack.c.l.b16 %v1170
      %v1207 = vunpack.c.l.b16 %v1171
      %v1208 = vunpack.c.l.b16 %v1172
      %v1209 = vunpack.c.l.b16 %v1173
      %v1210 = vunpack.c.l.b16 %v1174
      %v1211 = vunpack.c.l.b16 %v1175
      %v1212 = vunpack.c.l.b16 %v1176
      %v1213 = vpack.c.b16 %v1206, %v1205
      %v1214 = vpack.c.b16 %v1208, %v1207
      %v1215 = vpack.c.b16 %v1210, %v1209
      %v1216 = vpack.c.b16 %v1212, %v1211
      %v1222 = vsel %vm363, %v1193, 0
      %v1225 = vsel %vm363, %v1194, 0
      %v1228 = vsel %vm363, %v1195, 0
      %v1231 = vsel %vm363, %v1196, 0
      %1233 = vmatpush.bf16.msra.mxu0 0
      %1234 = vmatpush.bf16.msra.mxu0 0
      %1235 = vmatpush.bf16.msra.mxu0 0
      %1236 = vmatpush.bf16.msra.mxu0 0
      %1237 = vmatpush.bf16.msra.mxu0 %v1216
      %1238 = vmatpush.bf16.msra.mxu0 %v1215
      %1239 = vmatpush.bf16.msra.mxu0 %v1214
      %1240 = vmatpush.bf16.msra.mxu0 %v1213
      %1241 = vmatmul.bf16.gmra.mxu0 %v1222
      %v1242 = vpop.f32.mrf.mxu0
      %v1243 = vadd.f32 0.0, %v1242
      %v1244 = vpop.f32.mrf.mxu0
      %v1245 = vadd.f32 0.0, %v1244
      %1246 = vmatmul.bf16.gmra.mxu0 %v1225
      %v1247 = vpop.f32.mrf.mxu0
      %v1248 = vadd.f32 0.0, %v1247
      %v1249 = vpop.f32.mrf.mxu0
      %v1250 = vadd.f32 0.0, %v1249
      %1251 = vmatmul.bf16.gmra.mxu0 %v1228
      %v1252 = vpop.f32.mrf.mxu0
      %v1253 = vadd.f32 0.0, %v1252
      %v1254 = vpop.f32.mrf.mxu0
      %v1255 = vadd.f32 0.0, %v1254
      %1256 = vmatmul.bf16.gmra.mxu0 %v1231
      %v1257 = vpop.f32.mrf.mxu0
      %v1258 = vadd.f32 0.0, %v1257
      %v1259 = vpop.f32.mrf.mxu0
      %v1260 = vadd.f32 0.0, %v1259
      %1261 = vdwg.mxu0
      %v1262 = vadd.f32 %v1151, %v1243
      %v1263 = vadd.f32 %v1152, %v1245
      %v1264 = vadd.f32 %v1153, %v1248
      %v1265 = vadd.f32 %v1154, %v1250
      %v1266 = vadd.f32 %v1155, %v1253
      %v1267 = vadd.f32 %v1156, %v1255
      %v1268 = vadd.f32 %v1157, %v1258
      %v1269 = vadd.f32 %v1158, %v1260
      %s1270 = scalar_lea.vmem %s277, 80
      %v1271 = vld [vmem:[%s1270] sm:$0xf]
      %v1272 = vld [vmem:[%s1270 + $0x8] sm:$0xf]
      %v1273 = vld [vmem:[%s1270 + $0x10] sm:$0xf]
      %v1274 = vld [vmem:[%s1270 + $0x18] sm:$0xf]
      %v1275 = vld [vmem:[%s1270 + $0x20] sm:$0xf]
      %v1276 = vld [vmem:[%s1270 + $0x28] sm:$0xf]
      %v1277 = vld [vmem:[%s1270 + $0x30] sm:$0xf]
      %v1278 = vld [vmem:[%s1270 + $0x38] sm:$0xf]
      %s1279 = scalar_lea.vmem %s1, 224
      %v1280 = vld [vmem:[%s1279] sm:$0xf]
      %v1281 = vld [vmem:[%s1279 + $0x4] sm:$0xf]
      %v1282 = vld [vmem:[%s1279 + $0x8] sm:$0xf]
      %v1283 = vld [vmem:[%s1279 + $0xc] sm:$0xf]
      %v1284 = vld [vmem:[%s1279 + $0x10] sm:$0xf]
      %v1285 = vld [vmem:[%s1279 + $0x14] sm:$0xf]
      %v1286 = vld [vmem:[%s1279 + $0x18] sm:$0xf]
      %v1287 = vld [vmem:[%s1279 + $0x1c] sm:$0xf]
      %v1296 = vunpack.c.l.b16 %v1271
      %v1297 = vunpack.c.l.b16 %v1272
      %v1298 = vunpack.c.l.b16 %v1273
      %v1299 = vunpack.c.l.b16 %v1274
      %v1300 = vunpack.c.l.b16 %v1275
      %v1301 = vunpack.c.l.b16 %v1276
      %v1302 = vunpack.c.l.b16 %v1277
      %v1303 = vunpack.c.l.b16 %v1278
      %v1304 = vpack.c.b16 %v1297, %v1296
      %v1305 = vpack.c.b16 %v1299, %v1298
      %v1306 = vpack.c.b16 %v1301, %v1300
      %v1307 = vpack.c.b16 %v1303, %v1302
      %v1316 = vunpack.c.l.b16 %v1280
      %v1317 = vunpack.c.l.b16 %v1281
      %v1318 = vunpack.c.l.b16 %v1282
      %v1319 = vunpack.c.l.b16 %v1283
      %v1320 = vunpack.c.l.b16 %v1284
      %v1321 = vunpack.c.l.b16 %v1285
      %v1322 = vunpack.c.l.b16 %v1286
      %v1323 = vunpack.c.l.b16 %v1287
      %v1324 = vpack.c.b16 %v1317, %v1316
      %v1325 = vpack.c.b16 %v1319, %v1318
      %v1326 = vpack.c.b16 %v1321, %v1320
      %v1327 = vpack.c.b16 %v1323, %v1322
      %v1333 = vsel %vm363, %v1304, 0
      %v1336 = vsel %vm363, %v1305, 0
      %v1339 = vsel %vm363, %v1306, 0
      %v1342 = vsel %vm363, %v1307, 0
      %1344 = vmatpush.bf16.msra.mxu0 0
      %1345 = vmatpush.bf16.msra.mxu0 0
      %1346 = vmatpush.bf16.msra.mxu0 0
      %1347 = vmatpush.bf16.msra.mxu0 0
      %1348 = vmatpush.bf16.msra.mxu0 %v1327
      %1349 = vmatpush.bf16.msra.mxu0 %v1326
      %1350 = vmatpush.bf16.msra.mxu0 %v1325
      %1351 = vmatpush.bf16.msra.mxu0 %v1324
      %1352 = vmatmul.bf16.gmra.mxu0 %v1333
      %v1353 = vpop.f32.mrf.mxu0
      %v1354 = vadd.f32 0.0, %v1353
      %v1355 = vpop.f32.mrf.mxu0
      %v1356 = vadd.f32 0.0, %v1355
      %1357 = vmatmul.bf16.gmra.mxu0 %v1336
      %v1358 = vpop.f32.mrf.mxu0
      %v1359 = vadd.f32 0.0, %v1358
      %v1360 = vpop.f32.mrf.mxu0
      %v1361 = vadd.f32 0.0, %v1360
      %1362 = vmatmul.bf16.gmra.mxu0 %v1339
      %v1363 = vpop.f32.mrf.mxu0
      %v1364 = vadd.f32 0.0, %v1363
      %v1365 = vpop.f32.mrf.mxu0
      %v1366 = vadd.f32 0.0, %v1365
      %1367 = vmatmul.bf16.gmra.mxu0 %v1342
      %v1368 = vpop.f32.mrf.mxu0
      %v1369 = vadd.f32 0.0, %v1368
      %v1370 = vpop.f32.mrf.mxu0
      %v1371 = vadd.f32 0.0, %v1370
      %1372 = vdwg.mxu0
      %v1373 = vadd.f32 %v1262, %v1354
      %v1374 = vadd.f32 %v1263, %v1356
      %v1375 = vadd.f32 %v1264, %v1359
      %v1376 = vadd.f32 %v1265, %v1361
      %v1377 = vadd.f32 %v1266, %v1364
      %v1378 = vadd.f32 %v1267, %v1366
      %v1379 = vadd.f32 %v1268, %v1369
      %v1380 = vadd.f32 %v1269, %v1371
      %v1381 = vld [vmem:[%s1159] sm:$0xf]
      %v1382 = vld [vmem:[%s1159 + $0x4] sm:$0x1]
      %v1383 = vld [vmem:[%s1159 + $0x8] sm:$0xf]
      %v1384 = vld [vmem:[%s1159 + $0xc] sm:$0x1]
      %v1385 = vld [vmem:[%s1159 + $0x10] sm:$0xf]
      %v1386 = vld [vmem:[%s1159 + $0x14] sm:$0x1]
      %v1387 = vld [vmem:[%s1159 + $0x18] sm:$0xf]
      %v1388 = vld [vmem:[%s1159 + $0x1c] sm:$0x1]
      %v1389 = vld [vmem:[%s1159 + $0x20] sm:$0xf]
      %v1390 = vld [vmem:[%s1159 + $0x24] sm:$0x1]
      %v1391 = vld [vmem:[%s1159 + $0x28] sm:$0xf]
      %v1392 = vld [vmem:[%s1159 + $0x2c] sm:$0x1]
      %v1393 = vld [vmem:[%s1159 + $0x30] sm:$0xf]
      %v1394 = vld [vmem:[%s1159 + $0x34] sm:$0x1]
      %v1395 = vld [vmem:[%s1159 + $0x38] sm:$0xf]
      %v1396 = vld [vmem:[%s1159 + $0x3c] sm:$0x1]
      %v1398 = vshrl.u32 %v1381, 16
      %v1400 = vrot.slane %v1398, 4
      %v1401 = vshll.u32 %v1381, 16
      %v1403 = vrot.slane %v1401, 5
      %v1404 = vor.u32 %v1400, %v1403
      %v1405 = vrot.slane %v1404, 4
      %v1407 = vshll.u32 %v1382, 16
      %v1409 = vrot.slane %v1407, 5
      %v1410 = vsel %vm508, %v1405, %v1409
      %v1412 = vshrl.u32 %v1383, 16
      %v1414 = vrot.slane %v1412, 4
      %v1415 = vshll.u32 %v1383, 16
      %v1417 = vrot.slane %v1415, 5
      %v1418 = vor.u32 %v1414, %v1417
      %v1419 = vrot.slane %v1418, 4
      %v1421 = vshll.u32 %v1384, 16
      %v1423 = vrot.slane %v1421, 5
      %v1424 = vsel %vm508, %v1419, %v1423
      %v1426 = vshrl.u32 %v1385, 16
      %v1428 = vrot.slane %v1426, 4
      %v1429 = vshll.u32 %v1385, 16
      %v1431 = vrot.slane %v1429, 5
      %v1432 = vor.u32 %v1428, %v1431
      %v1433 = vrot.slane %v1432, 4
      %v1435 = vshll.u32 %v1386, 16
      %v1437 = vrot.slane %v1435, 5
      %v1438 = vsel %vm508, %v1433, %v1437
      %v1440 = vshrl.u32 %v1387, 16
      %v1442 = vrot.slane %v1440, 4
      %v1443 = vshll.u32 %v1387, 16
      %v1445 = vrot.slane %v1443, 5
      %v1446 = vor.u32 %v1442, %v1445
      %v1447 = vrot.slane %v1446, 4
      %v1449 = vshll.u32 %v1388, 16
      %v1451 = vrot.slane %v1449, 5
      %v1452 = vsel %vm508, %v1447, %v1451
      %v1454 = vshrl.u32 %v1389, 16
      %v1456 = vrot.slane %v1454, 4
      %v1457 = vshll.u32 %v1389, 16
      %v1459 = vrot.slane %v1457, 5
      %v1460 = vor.u32 %v1456, %v1459
      %v1461 = vrot.slane %v1460, 4
      %v1463 = vshll.u32 %v1390, 16
      %v1465 = vrot.slane %v1463, 5
      %v1466 = vsel %vm508, %v1461, %v1465
      %v1468 = vshrl.u32 %v1391, 16
      %v1470 = vrot.slane %v1468, 4
      %v1471 = vshll.u32 %v1391, 16
      %v1473 = vrot.slane %v1471, 5
      %v1474 = vor.u32 %v1470, %v1473
      %v1475 = vrot.slane %v1474, 4
      %v1477 = vshll.u32 %v1392, 16
      %v1479 = vrot.slane %v1477, 5
      %v1480 = vsel %vm508, %v1475, %v1479
      %v1482 = vshrl.u32 %v1393, 16
      %v1484 = vrot.slane %v1482, 4
      %v1485 = vshll.u32 %v1393, 16
      %v1487 = vrot.slane %v1485, 5
      %v1488 = vor.u32 %v1484, %v1487
      %v1489 = vrot.slane %v1488, 4
      %v1491 = vshll.u32 %v1394, 16
      %v1493 = vrot.slane %v1491, 5
      %v1494 = vsel %vm508, %v1489, %v1493
      %v1496 = vshrl.u32 %v1395, 16
      %v1498 = vrot.slane %v1496, 4
      %v1499 = vshll.u32 %v1395, 16
      %v1501 = vrot.slane %v1499, 5
      %v1502 = vor.u32 %v1498, %v1501
      %v1503 = vrot.slane %v1502, 4
      %v1505 = vshll.u32 %v1396, 16
      %v1507 = vrot.slane %v1505, 5
      %v1508 = vsel %vm508, %v1503, %v1507
      %s1509 = scalar_lea.vmem %s1, 256
      %v1510 = vld [vmem:[%s1509] sm:$0xf]
      %v1511 = vld [vmem:[%s1509 + $0x4] sm:$0xf]
      %v1512 = vld [vmem:[%s1509 + $0x8] sm:$0xf]
      %v1513 = vld [vmem:[%s1509 + $0xc] sm:$0xf]
      %v1514 = vld [vmem:[%s1509 + $0x10] sm:$0xf]
      %v1515 = vld [vmem:[%s1509 + $0x14] sm:$0xf]
      %v1516 = vld [vmem:[%s1509 + $0x18] sm:$0xf]
      %v1517 = vld [vmem:[%s1509 + $0x1c] sm:$0xf]
      %v1518 = vunpack.c.l.b16 %v1410
      %v1519 = vunpack.c.l.b16 %v1424
      %v1520 = vunpack.c.l.b16 %v1438
      %v1521 = vunpack.c.l.b16 %v1452
      %v1522 = vunpack.c.l.b16 %v1466
      %v1523 = vunpack.c.l.b16 %v1480
      %v1524 = vunpack.c.l.b16 %v1494
      %v1525 = vunpack.c.l.b16 %v1508
      %v1526 = vpack.c.b16 %v1519, %v1518
      %v1527 = vpack.c.b16 %v1521, %v1520
      %v1528 = vpack.c.b16 %v1523, %v1522
      %v1529 = vpack.c.b16 %v1525, %v1524
      %v1538 = vunpack.c.l.b16 %v1510
      %v1539 = vunpack.c.l.b16 %v1511
      %v1540 = vunpack.c.l.b16 %v1512
      %v1541 = vunpack.c.l.b16 %v1513
      %v1542 = vunpack.c.l.b16 %v1514
      %v1543 = vunpack.c.l.b16 %v1515
      %v1544 = vunpack.c.l.b16 %v1516
      %v1545 = vunpack.c.l.b16 %v1517
      %v1546 = vpack.c.b16 %v1539, %v1538
      %v1547 = vpack.c.b16 %v1541, %v1540
      %v1548 = vpack.c.b16 %v1543, %v1542
      %v1549 = vpack.c.b16 %v1545, %v1544
      %v1555 = vsel %vm363, %v1526, 0
      %v1558 = vsel %vm363, %v1527, 0
      %v1561 = vsel %vm363, %v1528, 0
      %v1564 = vsel %vm363, %v1529, 0
      %1566 = vmatpush.bf16.msra.mxu0 0
      %1567 = vmatpush.bf16.msra.mxu0 0
      %1568 = vmatpush.bf16.msra.mxu0 0
      %1569 = vmatpush.bf16.msra.mxu0 0
      %1570 = vmatpush.bf16.msra.mxu0 %v1549
      %1571 = vmatpush.bf16.msra.mxu0 %v1548
      %1572 = vmatpush.bf16.msra.mxu0 %v1547
      %1573 = vmatpush.bf16.msra.mxu0 %v1546
      %1574 = vmatmul.bf16.gmra.mxu0 %v1555
      %v1575 = vpop.f32.mrf.mxu0
      %v1576 = vadd.f32 0.0, %v1575
      %v1577 = vpop.f32.mrf.mxu0
      %v1578 = vadd.f32 0.0, %v1577
      %1579 = vmatmul.bf16.gmra.mxu0 %v1558
      %v1580 = vpop.f32.mrf.mxu0
      %v1581 = vadd.f32 0.0, %v1580
      %v1582 = vpop.f32.mrf.mxu0
      %v1583 = vadd.f32 0.0, %v1582
      %1584 = vmatmul.bf16.gmra.mxu0 %v1561
      %v1585 = vpop.f32.mrf.mxu0
      %v1586 = vadd.f32 0.0, %v1585
      %v1587 = vpop.f32.mrf.mxu0
      %v1588 = vadd.f32 0.0, %v1587
      %1589 = vmatmul.bf16.gmra.mxu0 %v1564
      %v1590 = vpop.f32.mrf.mxu0
      %v1591 = vadd.f32 0.0, %v1590
      %v1592 = vpop.f32.mrf.mxu0
      %v1593 = vadd.f32 0.0, %v1592
      %1594 = vdwg.mxu0
      %v1595 = vadd.f32 %v1373, %v1576
      %v1596 = vadd.f32 %v1374, %v1578
      %v1597 = vadd.f32 %v1375, %v1581
      %v1598 = vadd.f32 %v1376, %v1583
      %v1599 = vadd.f32 %v1377, %v1586
      %v1600 = vadd.f32 %v1378, %v1588
      %v1601 = vadd.f32 %v1379, %v1591
      %v1602 = vadd.f32 %v1380, %v1593
      %v1603 = vld [vmem:[%s2] sm:$0x1]
      %v1605 = vperm.slane %v1603, 0
      %v1607 = vadd.f32 %v1595, %v1605
      %v1608 = vadd.f32 %v1596, %v1605
      %v1609 = vadd.f32 %v1597, %v1605
      %v1610 = vadd.f32 %v1598, %v1605
      %v1611 = vadd.f32 %v1599, %v1605
      %v1612 = vadd.f32 %v1600, %v1605
      %v1613 = vadd.f32 %v1601, %v1605
      %v1614 = vadd.f32 %v1602, %v1605
      %v1615 = vmax.f32 %v1607, 0.0
      %v1616 = vmax.f32 %v1608, 0.0
      %v1617 = vmax.f32 %v1609, 0.0
      %v1618 = vmax.f32 %v1610, 0.0
      %v1619 = vmax.f32 %v1611, 0.0
      %v1620 = vmax.f32 %v1612, 0.0
      %v1621 = vmax.f32 %v1613, 0.0
      %v1622 = vmax.f32 %v1614, 0.0
      %1623 = vst [vmem:[#allocation2] sm:$0xff] 0.0
      %1624 = vst [vmem:[#allocation2 + $0x8] sm:$0x3] 0.0
      %1625 = vst [vmem:[#allocation2 + $0x10] sm:$0xff] 0.0
      %1626 = vst [vmem:[#allocation2 + $0x18] sm:$0x3] 0.0
      %1627 = vst [vmem:[#allocation2 + $0x20] sm:$0xff] 0.0
      %1628 = vst [vmem:[#allocation2 + $0x28] sm:$0x3] 0.0
      %1629 = vst [vmem:[#allocation2 + $0x30] sm:$0xff] 0.0
      %1630 = vst [vmem:[#allocation2 + $0x38] sm:$0x3] 0.0
      %1631 = vst [vmem:[#allocation2 + $0x40] sm:$0xff] 0.0
      %1632 = vst [vmem:[#allocation2 + $0x48] sm:$0x3] 0.0
      %1633 = vst [vmem:[#allocation2 + $0x50] sm:$0xff] 0.0
      %1634 = vst [vmem:[#allocation2 + $0x58] sm:$0x3] 0.0
      %1635 = vst [vmem:[#allocation2 + $0x60] sm:$0xff] 0.0
      %1636 = vst [vmem:[#allocation2 + $0x68] sm:$0x3] 0.0
      %1637 = vst [vmem:[#allocation2 + $0x70] sm:$0xff] 0.0
      %1638 = vst [vmem:[#allocation2 + $0x78] sm:$0x3] 0.0
      %1639 = vst [vmem:[#allocation2 + $0x80] sm:$0xff] 0.0
      %1640 = vst [vmem:[#allocation2 + $0x88] sm:$0x3] 0.0
      %1641 = vst [vmem:[#allocation2 + $0x90] sm:$0xff] 0.0
      %1642 = vst [vmem:[#allocation2 + $0x98] sm:$0x3] 0.0
      %s1643 = scalar_lea.vmem [#allocation2], 16
      %1644 = vst [vmem:[%s1643 + $0x1] sm:$0xff] %v1615
      %1645 = vst [vmem:[%s1643 + $0x11] sm:$0xff] %v1616
      %1646 = vst [vmem:[%s1643 + $0x21] sm:$0xff] %v1617
      %1647 = vst [vmem:[%s1643 + $0x31] sm:$0xff] %v1618
      %1648 = vst [vmem:[%s1643 + $0x41] sm:$0xff] %v1619
      %1649 = vst [vmem:[%s1643 + $0x51] sm:$0xff] %v1620
      %1650 = vst [vmem:[%s1643 + $0x61] sm:$0xff] %v1621
      %1651 = vst [vmem:[%s1643 + $0x71] sm:$0xff] %v1622
      %v1652 = vld [vmem:[#allocation2] sm:$0xff]
      %v1653 = vld [vmem:[#allocation2 + $0x10] sm:$0xff]
      %v1654 = vld [vmem:[#allocation2 + $0x20] sm:$0xff]
      %v1655 = vld [vmem:[#allocation2 + $0x30] sm:$0xff]
      %v1656 = vld [vmem:[#allocation2 + $0x40] sm:$0xff]
      %v1657 = vld [vmem:[#allocation2 + $0x50] sm:$0xff]
      %v1658 = vld [vmem:[#allocation2 + $0x60] sm:$0xff]
      %v1659 = vld [vmem:[#allocation2 + $0x70] sm:$0xff]
      %v1660 = vpack.c.bf16 %v1653, %v1652
      %v1661 = vpack.c.bf16 %v1655, %v1654
      %v1662 = vpack.c.bf16 %v1657, %v1656
      %v1663 = vpack.c.bf16 %v1659, %v1658
      %v1664 = vld [vmem:[%s3] sm:$0xf]
      %v1665 = vld [vmem:[%s3 + $0x4] sm:$0xf]
      %v1666 = vld [vmem:[%s3 + $0x8] sm:$0xf]
      %v1667 = vld [vmem:[%s3 + $0xc] sm:$0xf]
      %v1668 = vld [vmem:[%s3 + $0x10] sm:$0xf]
      %v1669 = vld [vmem:[%s3 + $0x14] sm:$0xf]
      %v1670 = vld [vmem:[%s3 + $0x18] sm:$0xf]
      %v1671 = vld [vmem:[%s3 + $0x1c] sm:$0xf]
      %v1672 = vld [vmem:[%s3 + $0x20] sm:$0xf]
      %v1673 = vld [vmem:[%s3 + $0x24] sm:$0xf]
      %v1674 = vld [vmem:[%s3 + $0x28] sm:$0xf]
      %v1675 = vld [vmem:[%s3 + $0x2c] sm:$0xf]
      %v1676 = vld [vmem:[%s3 + $0x30] sm:$0xf]
      %v1677 = vld [vmem:[%s3 + $0x34] sm:$0xf]
      %v1678 = vld [vmem:[%s3 + $0x38] sm:$0xf]
      %v1679 = vld [vmem:[%s3 + $0x3c] sm:$0xf]
      %v1680 = vld [vmem:[#allocation2 + $0x1] sm:$0xff]
      %v1681 = vld [vmem:[#allocation2 + $0x11] sm:$0xff]
      %v1682 = vld [vmem:[#allocation2 + $0x21] sm:$0xff]
      %v1683 = vld [vmem:[#allocation2 + $0x31] sm:$0xff]
      %v1684 = vld [vmem:[#allocation2 + $0x41] sm:$0xff]
      %v1685 = vld [vmem:[#allocation2 + $0x51] sm:$0xff]
      %v1686 = vld [vmem:[#allocation2 + $0x61] sm:$0xff]
      %v1687 = vld [vmem:[#allocation2 + $0x71] sm:$0xff]
      %v1688 = vpack.c.bf16 %v1681, %v1680
      %v1689 = vpack.c.bf16 %v1683, %v1682
      %v1690 = vpack.c.bf16 %v1685, %v1684
      %v1691 = vpack.c.bf16 %v1687, %v1686
      %s1692 = scalar_lea.vmem %s3, 64
      %v1693 = vld [vmem:[%s1692] sm:$0xf]
      %v1694 = vld [vmem:[%s1692 + $0x4] sm:$0xf]
      %v1695 = vld [vmem:[%s1692 + $0x8] sm:$0xf]
      %v1696 = vld [vmem:[%s1692 + $0xc] sm:$0xf]
      %v1697 = vld [vmem:[%s1692 + $0x10] sm:$0xf]
      %v1698 = vld [vmem:[%s1692 + $0x14] sm:$0xf]
      %v1699 = vld [vmem:[%s1692 + $0x18] sm:$0xf]
      %v1700 = vld [vmem:[%s1692 + $0x1c] sm:$0xf]
      %v1701 = vld [vmem:[%s1692 + $0x20] sm:$0xf]
      %v1702 = vld [vmem:[%s1692 + $0x24] sm:$0xf]
      %v1703 = vld [vmem:[%s1692 + $0x28] sm:$0xf]
      %v1704 = vld [vmem:[%s1692 + $0x2c] sm:$0xf]
      %v1705 = vld [vmem:[%s1692 + $0x30] sm:$0xf]
      %v1706 = vld [vmem:[%s1692 + $0x34] sm:$0xf]
      %v1707 = vld [vmem:[%s1692 + $0x38] sm:$0xf]
      %v1708 = vld [vmem:[%s1692 + $0x3c] sm:$0xf]
      %v1725 = vunpack.c.l.b16 %v1693
      %v1726 = vunpack.c.l.b16 %v1694
      %v1727 = vunpack.c.l.b16 %v1695
      %v1728 = vunpack.c.l.b16 %v1696
      %v1729 = vunpack.c.l.b16 %v1697
      %v1730 = vunpack.c.l.b16 %v1698
      %v1731 = vunpack.c.l.b16 %v1699
      %v1732 = vunpack.c.l.b16 %v1700
      %v1733 = vunpack.c.l.b16 %v1701
      %v1734 = vunpack.c.l.b16 %v1702
      %v1735 = vunpack.c.l.b16 %v1703
      %v1736 = vunpack.c.l.b16 %v1704
      %v1737 = vunpack.c.l.b16 %v1705
      %v1738 = vunpack.c.l.b16 %v1706
      %v1739 = vunpack.c.l.b16 %v1707
      %v1740 = vunpack.c.l.b16 %v1708
      %v1741 = vpack.c.b16 %v1726, %v1725
      %v1742 = vpack.c.b16 %v1728, %v1727
      %v1743 = vpack.c.b16 %v1730, %v1729
      %v1744 = vpack.c.b16 %v1732, %v1731
      %v1745 = vpack.c.b16 %v1734, %v1733
      %v1746 = vpack.c.b16 %v1736, %v1735
      %v1747 = vpack.c.b16 %v1738, %v1737
      %v1748 = vpack.c.b16 %v1740, %v1739
      %1757 = vmatpush.bf16.msra.mxu0 %v1748
      %1758 = vmatpush.bf16.msra.mxu0 %v1747
      %1759 = vmatpush.bf16.msra.mxu0 %v1746
      %1760 = vmatpush.bf16.msra.mxu0 %v1745
      %1761 = vmatpush.bf16.msra.mxu0 %v1744
      %1762 = vmatpush.bf16.msra.mxu0 %v1743
      %1763 = vmatpush.bf16.msra.mxu0 %v1742
      %1764 = vmatpush.bf16.msra.mxu0 %v1741
      %1765 = vmatmul.bf16.gmra.mxu0 %v1688
      %v1766 = vpop.f32.mrf.mxu0
      %v1767 = vadd.f32 0.0, %v1766
      %v1768 = vpop.f32.mrf.mxu0
      %v1769 = vadd.f32 0.0, %v1768
      %1770 = vmatmul.bf16.gmra.mxu0 %v1689
      %v1771 = vpop.f32.mrf.mxu0
      %v1772 = vadd.f32 0.0, %v1771
      %v1773 = vpop.f32.mrf.mxu0
      %v1774 = vadd.f32 0.0, %v1773
      %1775 = vmatmul.bf16.gmra.mxu0 %v1690
      %v1776 = vpop.f32.mrf.mxu0
      %v1777 = vadd.f32 0.0, %v1776
      %v1778 = vpop.f32.mrf.mxu0
      %v1779 = vadd.f32 0.0, %v1778
      %1780 = vmatmul.bf16.gmra.mxu0 %v1691
      %v1781 = vpop.f32.mrf.mxu0
      %v1782 = vadd.f32 0.0, %v1781
      %v1783 = vpop.f32.mrf.mxu0
      %v1784 = vadd.f32 0.0, %v1783
      %1785 = vdwg.mxu0
      %v1802 = vunpack.c.l.b16 %v1664
      %v1803 = vunpack.c.l.b16 %v1665
      %v1804 = vunpack.c.l.b16 %v1666
      %v1805 = vunpack.c.l.b16 %v1667
      %v1806 = vunpack.c.l.b16 %v1668
      %v1807 = vunpack.c.l.b16 %v1669
      %v1808 = vunpack.c.l.b16 %v1670
      %v1809 = vunpack.c.l.b16 %v1671
      %v1810 = vunpack.c.l.b16 %v1672
      %v1811 = vunpack.c.l.b16 %v1673
      %v1812 = vunpack.c.l.b16 %v1674
      %v1813 = vunpack.c.l.b16 %v1675
      %v1814 = vunpack.c.l.b16 %v1676
      %v1815 = vunpack.c.l.b16 %v1677
      %v1816 = vunpack.c.l.b16 %v1678
      %v1817 = vunpack.c.l.b16 %v1679
      %v1818 = vpack.c.b16 %v1803, %v1802
      %v1819 = vpack.c.b16 %v1805, %v1804
      %v1820 = vpack.c.b16 %v1807, %v1806
      %v1821 = vpack.c.b16 %v1809, %v1808
      %v1822 = vpack.c.b16 %v1811, %v1810
      %v1823 = vpack.c.b16 %v1813, %v1812
      %v1824 = vpack.c.b16 %v1815, %v1814
      %v1825 = vpack.c.b16 %v1817, %v1816
      %1834 = vmatpush.bf16.msra.mxu0 %v1825
      %1835 = vmatpush.bf16.msra.mxu0 %v1824
      %1836 = vmatpush.bf16.msra.mxu0 %v1823
      %1837 = vmatpush.bf16.msra.mxu0 %v1822
      %1838 = vmatpush.bf16.msra.mxu0 %v1821
      %1839 = vmatpush.bf16.msra.mxu0 %v1820
      %1840 = vmatpush.bf16.msra.mxu0 %v1819
      %1841 = vmatpush.bf16.msra.mxu0 %v1818
      %1842 = vmatmul.bf16.gmra.mxu0 %v1660
      %v1843 = vpop.f32.mrf.mxu0
      %v1844 = vadd.f32 %v1767, %v1843
      %v1845 = vpop.f32.mrf.mxu0
      %v1846 = vadd.f32 %v1769, %v1845
      %1847 = vmatmul.bf16.gmra.mxu0 %v1661
      %v1848 = vpop.f32.mrf.mxu0
      %v1849 = vadd.f32 %v1772, %v1848
      %v1850 = vpop.f32.mrf.mxu0
      %v1851 = vadd.f32 %v1774, %v1850
      %1852 = vmatmul.bf16.gmra.mxu0 %v1662
      %v1853 = vpop.f32.mrf.mxu0
      %v1854 = vadd.f32 %v1777, %v1853
      %v1855 = vpop.f32.mrf.mxu0
      %v1856 = vadd.f32 %v1779, %v1855
      %1857 = vmatmul.bf16.gmra.mxu0 %v1663
      %v1858 = vpop.f32.mrf.mxu0
      %v1859 = vadd.f32 %v1782, %v1858
      %v1860 = vpop.f32.mrf.mxu0
      %v1861 = vadd.f32 %v1784, %v1860
      %1862 = vdwg.mxu0
      %v1863 = vld [vmem:[#allocation2 + $0x2] sm:$0xff]
      %v1864 = vld [vmem:[#allocation2 + $0x12] sm:$0xff]
      %v1865 = vld [vmem:[#allocation2 + $0x22] sm:$0xff]
      %v1866 = vld [vmem:[#allocation2 + $0x32] sm:$0xff]
      %v1867 = vld [vmem:[#allocation2 + $0x42] sm:$0xff]
      %v1868 = vld [vmem:[#allocation2 + $0x52] sm:$0xff]
      %v1869 = vld [vmem:[#allocation2 + $0x62] sm:$0xff]
      %v1870 = vld [vmem:[#allocation2 + $0x72] sm:$0xff]
      %v1871 = vpack.c.bf16 %v1864, %v1863
      %v1872 = vpack.c.bf16 %v1866, %v1865
      %v1873 = vpack.c.bf16 %v1868, %v1867
      %v1874 = vpack.c.bf16 %v1870, %v1869
      %s1875 = scalar_lea.vmem %s3, 128
      %v1876 = vld [vmem:[%s1875] sm:$0xf]
      %v1877 = vld [vmem:[%s1875 + $0x4] sm:$0xf]
      %v1878 = vld [vmem:[%s1875 + $0x8] sm:$0xf]
      %v1879 = vld [vmem:[%s1875 + $0xc] sm:$0xf]
      %v1880 = vld [vmem:[%s1875 + $0x10] sm:$0xf]
      %v1881 = vld [vmem:[%s1875 + $0x14] sm:$0xf]
      %v1882 = vld [vmem:[%s1875 + $0x18] sm:$0xf]
      %v1883 = vld [vmem:[%s1875 + $0x1c] sm:$0xf]
      %v1884 = vld [vmem:[%s1875 + $0x20] sm:$0xf]
      %v1885 = vld [vmem:[%s1875 + $0x24] sm:$0xf]
      %v1886 = vld [vmem:[%s1875 + $0x28] sm:$0xf]
      %v1887 = vld [vmem:[%s1875 + $0x2c] sm:$0xf]
      %v1888 = vld [vmem:[%s1875 + $0x30] sm:$0xf]
      %v1889 = vld [vmem:[%s1875 + $0x34] sm:$0xf]
      %v1890 = vld [vmem:[%s1875 + $0x38] sm:$0xf]
      %v1891 = vld [vmem:[%s1875 + $0x3c] sm:$0xf]
      %v1908 = vunpack.c.l.b16 %v1876
      %v1909 = vunpack.c.l.b16 %v1877
      %v1910 = vunpack.c.l.b16 %v1878
      %v1911 = vunpack.c.l.b16 %v1879
      %v1912 = vunpack.c.l.b16 %v1880
      %v1913 = vunpack.c.l.b16 %v1881
      %v1914 = vunpack.c.l.b16 %v1882
      %v1915 = vunpack.c.l.b16 %v1883
      %v1916 = vunpack.c.l.b16 %v1884
      %v1917 = vunpack.c.l.b16 %v1885
      %v1918 = vunpack.c.l.b16 %v1886
      %v1919 = vunpack.c.l.b16 %v1887
      %v1920 = vunpack.c.l.b16 %v1888
      %v1921 = vunpack.c.l.b16 %v1889
      %v1922 = vunpack.c.l.b16 %v1890
      %v1923 = vunpack.c.l.b16 %v1891
      %v1924 = vpack.c.b16 %v1909, %v1908
      %v1925 = vpack.c.b16 %v1911, %v1910
      %v1926 = vpack.c.b16 %v1913, %v1912
      %v1927 = vpack.c.b16 %v1915, %v1914
      %v1928 = vpack.c.b16 %v1917, %v1916
      %v1929 = vpack.c.b16 %v1919, %v1918
      %v1930 = vpack.c.b16 %v1921, %v1920
      %v1931 = vpack.c.b16 %v1923, %v1922
      %1940 = vmatpush.bf16.msra.mxu0 %v1931
      %1941 = vmatpush.bf16.msra.mxu0 %v1930
      %1942 = vmatpush.bf16.msra.mxu0 %v1929
      %1943 = vmatpush.bf16.msra.mxu0 %v1928
      %1944 = vmatpush.bf16.msra.mxu0 %v1927
      %1945 = vmatpush.bf16.msra.mxu0 %v1926
      %1946 = vmatpush.bf16.msra.mxu0 %v1925
      %1947 = vmatpush.bf16.msra.mxu0 %v1924
      %1948 = vmatmul.bf16.gmra.mxu0 %v1871
      %v1949 = vpop.f32.mrf.mxu0
      %v1950 = vadd.f32 0.0, %v1949
      %v1951 = vpop.f32.mrf.mxu0
      %v1952 = vadd.f32 0.0, %v1951
      %1953 = vmatmul.bf16.gmra.mxu0 %v1872
      %v1954 = vpop.f32.mrf.mxu0
      %v1955 = vadd.f32 0.0, %v1954
      %v1956 = vpop.f32.mrf.mxu0
      %v1957 = vadd.f32 0.0, %v1956
      %1958 = vmatmul.bf16.gmra.mxu0 %v1873
      %v1959 = vpop.f32.mrf.mxu0
      %v1960 = vadd.f32 0.0, %v1959
      %v1961 = vpop.f32.mrf.mxu0
      %v1962 = vadd.f32 0.0, %v1961
      %1963 = vmatmul.bf16.gmra.mxu0 %v1874
      %v1964 = vpop.f32.mrf.mxu0
      %v1965 = vadd.f32 0.0, %v1964
      %v1966 = vpop.f32.mrf.mxu0
      %v1967 = vadd.f32 0.0, %v1966
      %1968 = vdwg.mxu0
      %v1969 = vadd.f32 %v1844, %v1950
      %v1970 = vadd.f32 %v1846, %v1952
      %v1971 = vadd.f32 %v1849, %v1955
      %v1972 = vadd.f32 %v1851, %v1957
      %v1973 = vadd.f32 %v1854, %v1960
      %v1974 = vadd.f32 %v1856, %v1962
      %v1975 = vadd.f32 %v1859, %v1965
      %v1976 = vadd.f32 %v1861, %v1967
      %v1977 = vld [vmem:[%s1643] sm:$0xff]
      %v1978 = vld [vmem:[%s1643 + $0x10] sm:$0xff]
      %v1979 = vld [vmem:[%s1643 + $0x20] sm:$0xff]
      %v1980 = vld [vmem:[%s1643 + $0x30] sm:$0xff]
      %v1981 = vld [vmem:[%s1643 + $0x40] sm:$0xff]
      %v1982 = vld [vmem:[%s1643 + $0x50] sm:$0xff]
      %v1983 = vld [vmem:[%s1643 + $0x60] sm:$0xff]
      %v1984 = vld [vmem:[%s1643 + $0x70] sm:$0xff]
      %v1985 = vpack.c.bf16 %v1978, %v1977
      %v1986 = vpack.c.bf16 %v1980, %v1979
      %v1987 = vpack.c.bf16 %v1982, %v1981
      %v1988 = vpack.c.bf16 %v1984, %v1983
      %s1989 = scalar_lea.vmem %s3, 192
      %v1990 = vld [vmem:[%s1989] sm:$0xf]
      %v1991 = vld [vmem:[%s1989 + $0x4] sm:$0xf]
      %v1992 = vld [vmem:[%s1989 + $0x8] sm:$0xf]
      %v1993 = vld [vmem:[%s1989 + $0xc] sm:$0xf]
      %v1994 = vld [vmem:[%s1989 + $0x10] sm:$0xf]
      %v1995 = vld [vmem:[%s1989 + $0x14] sm:$0xf]
      %v1996 = vld [vmem:[%s1989 + $0x18] sm:$0xf]
      %v1997 = vld [vmem:[%s1989 + $0x1c] sm:$0xf]
      %v1998 = vld [vmem:[%s1989 + $0x20] sm:$0xf]
      %v1999 = vld [vmem:[%s1989 + $0x24] sm:$0xf]
      %v2000 = vld [vmem:[%s1989 + $0x28] sm:$0xf]
      %v2001 = vld [vmem:[%s1989 + $0x2c] sm:$0xf]
      %v2002 = vld [vmem:[%s1989 + $0x30] sm:$0xf]
      %v2003 = vld [vmem:[%s1989 + $0x34] sm:$0xf]
      %v2004 = vld [vmem:[%s1989 + $0x38] sm:$0xf]
      %v2005 = vld [vmem:[%s1989 + $0x3c] sm:$0xf]
      %v2022 = vunpack.c.l.b16 %v1990
      %v2023 = vunpack.c.l.b16 %v1991
      %v2024 = vunpack.c.l.b16 %v1992
      %v2025 = vunpack.c.l.b16 %v1993
      %v2026 = vunpack.c.l.b16 %v1994
      %v2027 = vunpack.c.l.b16 %v1995
      %v2028 = vunpack.c.l.b16 %v1996
      %v2029 = vunpack.c.l.b16 %v1997
      %v2030 = vunpack.c.l.b16 %v1998
      %v2031 = vunpack.c.l.b16 %v1999
      %v2032 = vunpack.c.l.b16 %v2000
      %v2033 = vunpack.c.l.b16 %v2001
      %v2034 = vunpack.c.l.b16 %v2002
      %v2035 = vunpack.c.l.b16 %v2003
      %v2036 = vunpack.c.l.b16 %v2004
      %v2037 = vunpack.c.l.b16 %v2005
      %v2038 = vpack.c.b16 %v2023, %v2022
      %v2039 = vpack.c.b16 %v2025, %v2024
      %v2040 = vpack.c.b16 %v2027, %v2026
      %v2041 = vpack.c.b16 %v2029, %v2028
      %v2042 = vpack.c.b16 %v2031, %v2030
      %v2043 = vpack.c.b16 %v2033, %v2032
      %v2044 = vpack.c.b16 %v2035, %v2034
      %v2045 = vpack.c.b16 %v2037, %v2036
      %2054 = vmatpush.bf16.msra.mxu0 %v2045
      %2055 = vmatpush.bf16.msra.mxu0 %v2044
      %2056 = vmatpush.bf16.msra.mxu0 %v2043
      %2057 = vmatpush.bf16.msra.mxu0 %v2042
      %2058 = vmatpush.bf16.msra.mxu0 %v2041
      %2059 = vmatpush.bf16.msra.mxu0 %v2040
      %2060 = vmatpush.bf16.msra.mxu0 %v2039
      %2061 = vmatpush.bf16.msra.mxu0 %v2038
      %2062 = vmatmul.bf16.gmra.mxu0 %v1985
      %v2063 = vpop.f32.mrf.mxu0
      %v2064 = vadd.f32 0.0, %v2063
      %v2065 = vpop.f32.mrf.mxu0
      %v2066 = vadd.f32 0.0, %v2065
      %2067 = vmatmul.bf16.gmra.mxu0 %v1986
      %v2068 = vpop.f32.mrf.mxu0
      %v2069 = vadd.f32 0.0, %v2068
      %v2070 = vpop.f32.mrf.mxu0
      %v2071 = vadd.f32 0.0, %v2070
      %2072 = vmatmul.bf16.gmra.mxu0 %v1987
      %v2073 = vpop.f32.mrf.mxu0
      %v2074 = vadd.f32 0.0, %v2073
      %v2075 = vpop.f32.mrf.mxu0
      %v2076 = vadd.f32 0.0, %v2075
      %2077 = vmatmul.bf16.gmra.mxu0 %v1988
      %v2078 = vpop.f32.mrf.mxu0
      %v2079 = vadd.f32 0.0, %v2078
      %v2080 = vpop.f32.mrf.mxu0
      %v2081 = vadd.f32 0.0, %v2080
      %2082 = vdwg.mxu0
      %v2083 = vadd.f32 %v1969, %v2064
      %v2084 = vadd.f32 %v1970, %v2066
      %v2085 = vadd.f32 %v1971, %v2069
      %v2086 = vadd.f32 %v1972, %v2071
      %v2087 = vadd.f32 %v1973, %v2074
      %v2088 = vadd.f32 %v1974, %v2076
      %v2089 = vadd.f32 %v1975, %v2079
      %v2090 = vadd.f32 %v1976, %v2081
      %v2091 = vld [vmem:[%s1643 + $0x1] sm:$0xff]
      %v2092 = vld [vmem:[%s1643 + $0x11] sm:$0xff]
      %v2093 = vld [vmem:[%s1643 + $0x21] sm:$0xff]
      %v2094 = vld [vmem:[%s1643 + $0x31] sm:$0xff]
      %v2095 = vld [vmem:[%s1643 + $0x41] sm:$0xff]
      %v2096 = vld [vmem:[%s1643 + $0x51] sm:$0xff]
      %v2097 = vld [vmem:[%s1643 + $0x61] sm:$0xff]
      %v2098 = vld [vmem:[%s1643 + $0x71] sm:$0xff]
      %v2099 = vpack.c.bf16 %v2092, %v2091
      %v2100 = vpack.c.bf16 %v2094, %v2093
      %v2101 = vpack.c.bf16 %v2096, %v2095
      %v2102 = vpack.c.bf16 %v2098, %v2097
      %s2103 = scalar_lea.vmem %s3, 256
      %v2104 = vld [vmem:[%s2103] sm:$0xf]
      %v2105 = vld [vmem:[%s2103 + $0x4] sm:$0xf]
      %v2106 = vld [vmem:[%s2103 + $0x8] sm:$0xf]
      %v2107 = vld [vmem:[%s2103 + $0xc] sm:$0xf]
      %v2108 = vld [vmem:[%s2103 + $0x10] sm:$0xf]
      %v2109 = vld [vmem:[%s2103 + $0x14] sm:$0xf]
      %v2110 = vld [vmem:[%s2103 + $0x18] sm:$0xf]
      %v2111 = vld [vmem:[%s2103 + $0x1c] sm:$0xf]
      %v2112 = vld [vmem:[%s2103 + $0x20] sm:$0xf]
      %v2113 = vld [vmem:[%s2103 + $0x24] sm:$0xf]
      %v2114 = vld [vmem:[%s2103 + $0x28] sm:$0xf]
      %v2115 = vld [vmem:[%s2103 + $0x2c] sm:$0xf]
      %v2116 = vld [vmem:[%s2103 + $0x30] sm:$0xf]
      %v2117 = vld [vmem:[%s2103 + $0x34] sm:$0xf]
      %v2118 = vld [vmem:[%s2103 + $0x38] sm:$0xf]
      %v2119 = vld [vmem:[%s2103 + $0x3c] sm:$0xf]
      %v2136 = vunpack.c.l.b16 %v2104
      %v2137 = vunpack.c.l.b16 %v2105
      %v2138 = vunpack.c.l.b16 %v2106
      %v2139 = vunpack.c.l.b16 %v2107
      %v2140 = vunpack.c.l.b16 %v2108
      %v2141 = vunpack.c.l.b16 %v2109
      %v2142 = vunpack.c.l.b16 %v2110
      %v2143 = vunpack.c.l.b16 %v2111
      %v2144 = vunpack.c.l.b16 %v2112
      %v2145 = vunpack.c.l.b16 %v2113
      %v2146 = vunpack.c.l.b16 %v2114
      %v2147 = vunpack.c.l.b16 %v2115
      %v2148 = vunpack.c.l.b16 %v2116
      %v2149 = vunpack.c.l.b16 %v2117
      %v2150 = vunpack.c.l.b16 %v2118
      %v2151 = vunpack.c.l.b16 %v2119
      %v2152 = vpack.c.b16 %v2137, %v2136
      %v2153 = vpack.c.b16 %v2139, %v2138
      %v2154 = vpack.c.b16 %v2141, %v2140
      %v2155 = vpack.c.b16 %v2143, %v2142
      %v2156 = vpack.c.b16 %v2145, %v2144
      %v2157 = vpack.c.b16 %v2147, %v2146
      %v2158 = vpack.c.b16 %v2149, %v2148
      %v2159 = vpack.c.b16 %v2151, %v2150
      %2168 = vmatpush.bf16.msra.mxu0 %v2159
      %2169 = vmatpush.bf16.msra.mxu0 %v2158
      %2170 = vmatpush.bf16.msra.mxu0 %v2157
      %2171 = vmatpush.bf16.msra.mxu0 %v2156
      %2172 = vmatpush.bf16.msra.mxu0 %v2155
      %2173 = vmatpush.bf16.msra.mxu0 %v2154
      %2174 = vmatpush.bf16.msra.mxu0 %v2153
      %2175 = vmatpush.bf16.msra.mxu0 %v2152
      %2176 = vmatmul.bf16.gmra.mxu0 %v2099
      %v2177 = vpop.f32.mrf.mxu0
      %v2178 = vadd.f32 0.0, %v2177
      %v2179 = vpop.f32.mrf.mxu0
      %v2180 = vadd.f32 0.0, %v2179
      %2181 = vmatmul.bf16.gmra.mxu0 %v2100
      %v2182 = vpop.f32.mrf.mxu0
      %v2183 = vadd.f32 0.0, %v2182
      %v2184 = vpop.f32.mrf.mxu0
      %v2185 = vadd.f32 0.0, %v2184
      %2186 = vmatmul.bf16.gmra.mxu0 %v2101
      %v2187 = vpop.f32.mrf.mxu0
      %v2188 = vadd.f32 0.0, %v2187
      %v2189 = vpop.f32.mrf.mxu0
      %v2190 = vadd.f32 0.0, %v2189
      %2191 = vmatmul.bf16.gmra.mxu0 %v2102
      %v2192 = vpop.f32.mrf.mxu0
      %v2193 = vadd.f32 0.0, %v2192
      %v2194 = vpop.f32.mrf.mxu0
      %v2195 = vadd.f32 0.0, %v2194
      %2196 = vdwg.mxu0
      %v2197 = vadd.f32 %v2083, %v2178
      %v2198 = vadd.f32 %v2084, %v2180
      %v2199 = vadd.f32 %v2085, %v2183
      %v2200 = vadd.f32 %v2086, %v2185
      %v2201 = vadd.f32 %v2087, %v2188
      %v2202 = vadd.f32 %v2088, %v2190
      %v2203 = vadd.f32 %v2089, %v2193
      %v2204 = vadd.f32 %v2090, %v2195
      %v2205 = vld [vmem:[%s1643 + $0x2] sm:$0xff]
      %v2206 = vld [vmem:[%s1643 + $0x12] sm:$0xff]
      %v2207 = vld [vmem:[%s1643 + $0x22] sm:$0xff]
      %v2208 = vld [vmem:[%s1643 + $0x32] sm:$0xff]
      %v2209 = vld [vmem:[%s1643 + $0x42] sm:$0xff]
      %v2210 = vld [vmem:[%s1643 + $0x52] sm:$0xff]
      %v2211 = vld [vmem:[%s1643 + $0x62] sm:$0xff]
      %v2212 = vld [vmem:[%s1643 + $0x72] sm:$0xff]
      %v2213 = vpack.c.bf16 %v2206, %v2205
      %v2214 = vpack.c.bf16 %v2208, %v2207
      %v2215 = vpack.c.bf16 %v2210, %v2209
      %v2216 = vpack.c.bf16 %v2212, %v2211
      %s2217 = scalar_lea.vmem %s3, 320
      %v2218 = vld [vmem:[%s2217] sm:$0xf]
      %v2219 = vld [vmem:[%s2217 + $0x4] sm:$0xf]
      %v2220 = vld [vmem:[%s2217 + $0x8] sm:$0xf]
      %v2221 = vld [vmem:[%s2217 + $0xc] sm:$0xf]
      %v2222 = vld [vmem:[%s2217 + $0x10] sm:$0xf]
      %v2223 = vld [vmem:[%s2217 + $0x14] sm:$0xf]
      %v2224 = vld [vmem:[%s2217 + $0x18] sm:$0xf]
      %v2225 = vld [vmem:[%s2217 + $0x1c] sm:$0xf]
      %v2226 = vld [vmem:[%s2217 + $0x20] sm:$0xf]
      %v2227 = vld [vmem:[%s2217 + $0x24] sm:$0xf]
      %v2228 = vld [vmem:[%s2217 + $0x28] sm:$0xf]
      %v2229 = vld [vmem:[%s2217 + $0x2c] sm:$0xf]
      %v2230 = vld [vmem:[%s2217 + $0x30] sm:$0xf]
      %v2231 = vld [vmem:[%s2217 + $0x34] sm:$0xf]
      %v2232 = vld [vmem:[%s2217 + $0x38] sm:$0xf]
      %v2233 = vld [vmem:[%s2217 + $0x3c] sm:$0xf]
      %v2250 = vunpack.c.l.b16 %v2218
      %v2251 = vunpack.c.l.b16 %v2219
      %v2252 = vunpack.c.l.b16 %v2220
      %v2253 = vunpack.c.l.b16 %v2221
      %v2254 = vunpack.c.l.b16 %v2222
      %v2255 = vunpack.c.l.b16 %v2223
      %v2256 = vunpack.c.l.b16 %v2224
      %v2257 = vunpack.c.l.b16 %v2225
      %v2258 = vunpack.c.l.b16 %v2226
      %v2259 = vunpack.c.l.b16 %v2227
      %v2260 = vunpack.c.l.b16 %v2228
      %v2261 = vunpack.c.l.b16 %v2229
      %v2262 = vunpack.c.l.b16 %v2230
      %v2263 = vunpack.c.l.b16 %v2231
      %v2264 = vunpack.c.l.b16 %v2232
      %v2265 = vunpack.c.l.b16 %v2233
      %v2266 = vpack.c.b16 %v2251, %v2250
      %v2267 = vpack.c.b16 %v2253, %v2252
      %v2268 = vpack.c.b16 %v2255, %v2254
      %v2269 = vpack.c.b16 %v2257, %v2256
      %v2270 = vpack.c.b16 %v2259, %v2258
      %v2271 = vpack.c.b16 %v2261, %v2260
      %v2272 = vpack.c.b16 %v2263, %v2262
      %v2273 = vpack.c.b16 %v2265, %v2264
      %2282 = vmatpush.bf16.msra.mxu0 %v2273
      %2283 = vmatpush.bf16.msra.mxu0 %v2272
      %2284 = vmatpush.bf16.msra.mxu0 %v2271
      %2285 = vmatpush.bf16.msra.mxu0 %v2270
      %2286 = vmatpush.bf16.msra.mxu0 %v2269
      %2287 = vmatpush.bf16.msra.mxu0 %v2268
      %2288 = vmatpush.bf16.msra.mxu0 %v2267
      %2289 = vmatpush.bf16.msra.mxu0 %v2266
      %2290 = vmatmul.bf16.gmra.mxu0 %v2213
      %v2291 = vpop.f32.mrf.mxu0
      %v2292 = vadd.f32 0.0, %v2291
      %v2293 = vpop.f32.mrf.mxu0
      %v2294 = vadd.f32 0.0, %v2293
      %2295 = vmatmul.bf16.gmra.mxu0 %v2214
      %v2296 = vpop.f32.mrf.mxu0
      %v2297 = vadd.f32 0.0, %v2296
      %v2298 = vpop.f32.mrf.mxu0
      %v2299 = vadd.f32 0.0, %v2298
      %2300 = vmatmul.bf16.gmra.mxu0 %v2215
      %v2301 = vpop.f32.mrf.mxu0
      %v2302 = vadd.f32 0.0, %v2301
      %v2303 = vpop.f32.mrf.mxu0
      %v2304 = vadd.f32 0.0, %v2303
      %2305 = vmatmul.bf16.gmra.mxu0 %v2216
      %v2306 = vpop.f32.mrf.mxu0
      %v2307 = vadd.f32 0.0, %v2306
      %v2308 = vpop.f32.mrf.mxu0
      %v2309 = vadd.f32 0.0, %v2308
      %2310 = vdwg.mxu0
      %v2311 = vadd.f32 %v2197, %v2292
      %v2312 = vadd.f32 %v2198, %v2294
      %v2313 = vadd.f32 %v2199, %v2297
      %v2314 = vadd.f32 %v2200, %v2299
      %v2315 = vadd.f32 %v2201, %v2302
      %v2316 = vadd.f32 %v2202, %v2304
      %v2317 = vadd.f32 %v2203, %v2307
      %v2318 = vadd.f32 %v2204, %v2309
      %s2319 = scalar_lea.vmem [#allocation2], 32
      %v2320 = vld [vmem:[%s2319] sm:$0xff]
      %v2321 = vld [vmem:[%s2319 + $0x10] sm:$0xff]
      %v2322 = vld [vmem:[%s2319 + $0x20] sm:$0xff]
      %v2323 = vld [vmem:[%s2319 + $0x30] sm:$0xff]
      %v2324 = vld [vmem:[%s2319 + $0x40] sm:$0xff]
      %v2325 = vld [vmem:[%s2319 + $0x50] sm:$0xff]
      %v2326 = vld [vmem:[%s2319 + $0x60] sm:$0xff]
      %v2327 = vld [vmem:[%s2319 + $0x70] sm:$0xff]
      %v2328 = vpack.c.bf16 %v2321, %v2320
      %v2329 = vpack.c.bf16 %v2323, %v2322
      %v2330 = vpack.c.bf16 %v2325, %v2324
      %v2331 = vpack.c.bf16 %v2327, %v2326
      %s2332 = scalar_lea.vmem %s3, 384
      %v2333 = vld [vmem:[%s2332] sm:$0xf]
      %v2334 = vld [vmem:[%s2332 + $0x4] sm:$0xf]
      %v2335 = vld [vmem:[%s2332 + $0x8] sm:$0xf]
      %v2336 = vld [vmem:[%s2332 + $0xc] sm:$0xf]
      %v2337 = vld [vmem:[%s2332 + $0x10] sm:$0xf]
      %v2338 = vld [vmem:[%s2332 + $0x14] sm:$0xf]
      %v2339 = vld [vmem:[%s2332 + $0x18] sm:$0xf]
      %v2340 = vld [vmem:[%s2332 + $0x1c] sm:$0xf]
      %v2341 = vld [vmem:[%s2332 + $0x20] sm:$0xf]
      %v2342 = vld [vmem:[%s2332 + $0x24] sm:$0xf]
      %v2343 = vld [vmem:[%s2332 + $0x28] sm:$0xf]
      %v2344 = vld [vmem:[%s2332 + $0x2c] sm:$0xf]
      %v2345 = vld [vmem:[%s2332 + $0x30] sm:$0xf]
      %v2346 = vld [vmem:[%s2332 + $0x34] sm:$0xf]
      %v2347 = vld [vmem:[%s2332 + $0x38] sm:$0xf]
      %v2348 = vld [vmem:[%s2332 + $0x3c] sm:$0xf]
      %v2365 = vunpack.c.l.b16 %v2333
      %v2366 = vunpack.c.l.b16 %v2334
      %v2367 = vunpack.c.l.b16 %v2335
      %v2368 = vunpack.c.l.b16 %v2336
      %v2369 = vunpack.c.l.b16 %v2337
      %v2370 = vunpack.c.l.b16 %v2338
      %v2371 = vunpack.c.l.b16 %v2339
      %v2372 = vunpack.c.l.b16 %v2340
      %v2373 = vunpack.c.l.b16 %v2341
      %v2374 = vunpack.c.l.b16 %v2342
      %v2375 = vunpack.c.l.b16 %v2343
      %v2376 = vunpack.c.l.b16 %v2344
      %v2377 = vunpack.c.l.b16 %v2345
      %v2378 = vunpack.c.l.b16 %v2346
      %v2379 = vunpack.c.l.b16 %v2347
      %v2380 = vunpack.c.l.b16 %v2348
      %v2381 = vpack.c.b16 %v2366, %v2365
      %v2382 = vpack.c.b16 %v2368, %v2367
      %v2383 = vpack.c.b16 %v2370, %v2369
      %v2384 = vpack.c.b16 %v2372, %v2371
      %v2385 = vpack.c.b16 %v2374, %v2373
      %v2386 = vpack.c.b16 %v2376, %v2375
      %v2387 = vpack.c.b16 %v2378, %v2377
      %v2388 = vpack.c.b16 %v2380, %v2379
      %2397 = vmatpush.bf16.msra.mxu0 %v2388
      %2398 = vmatpush.bf16.msra.mxu0 %v2387
      %2399 = vmatpush.bf16.msra.mxu0 %v2386
      %2400 = vmatpush.bf16.msra.mxu0 %v2385
      %2401 = vmatpush.bf16.msra.mxu0 %v2384
      %2402 = vmatpush.bf16.msra.mxu0 %v2383
      %2403 = vmatpush.bf16.msra.mxu0 %v2382
      %2404 = vmatpush.bf16.msra.mxu0 %v2381
      %2405 = vmatmul.bf16.gmra.mxu0 %v2328
      %v2406 = vpop.f32.mrf.mxu0
      %v2407 = vadd.f32 0.0, %v2406
      %v2408 = vpop.f32.mrf.mxu0
      %v2409 = vadd.f32 0.0, %v2408
      %2410 = vmatmul.bf16.gmra.mxu0 %v2329
      %v2411 = vpop.f32.mrf.mxu0
      %v2412 = vadd.f32 0.0, %v2411
      %v2413 = vpop.f32.mrf.mxu0
      %v2414 = vadd.f32 0.0, %v2413
      %2415 = vmatmul.bf16.gmra.mxu0 %v2330
      %v2416 = vpop.f32.mrf.mxu0
      %v2417 = vadd.f32 0.0, %v2416
      %v2418 = vpop.f32.mrf.mxu0
      %v2419 = vadd.f32 0.0, %v2418
      %2420 = vmatmul.bf16.gmra.mxu0 %v2331
      %v2421 = vpop.f32.mrf.mxu0
      %v2422 = vadd.f32 0.0, %v2421
      %v2423 = vpop.f32.mrf.mxu0
      %v2424 = vadd.f32 0.0, %v2423
      %2425 = vdwg.mxu0
      %v2426 = vadd.f32 %v2311, %v2407
      %v2427 = vadd.f32 %v2312, %v2409
      %v2428 = vadd.f32 %v2313, %v2412
      %v2429 = vadd.f32 %v2314, %v2414
      %v2430 = vadd.f32 %v2315, %v2417
      %v2431 = vadd.f32 %v2316, %v2419
      %v2432 = vadd.f32 %v2317, %v2422
      %v2433 = vadd.f32 %v2318, %v2424
      %v2434 = vld [vmem:[%s2319 + $0x1] sm:$0xff]
      %v2435 = vld [vmem:[%s2319 + $0x11] sm:$0xff]
      %v2436 = vld [vmem:[%s2319 + $0x21] sm:$0xff]
      %v2437 = vld [vmem:[%s2319 + $0x31] sm:$0xff]
      %v2438 = vld [vmem:[%s2319 + $0x41] sm:$0xff]
      %v2439 = vld [vmem:[%s2319 + $0x51] sm:$0xff]
      %v2440 = vld [vmem:[%s2319 + $0x61] sm:$0xff]
      %v2441 = vld [vmem:[%s2319 + $0x71] sm:$0xff]
      %v2442 = vpack.c.bf16 %v2435, %v2434
      %v2443 = vpack.c.bf16 %v2437, %v2436
      %v2444 = vpack.c.bf16 %v2439, %v2438
      %v2445 = vpack.c.bf16 %v2441, %v2440
      %s2446 = scalar_lea.vmem %s3, 448
      %v2447 = vld [vmem:[%s2446] sm:$0xf]
      %v2448 = vld [vmem:[%s2446 + $0x4] sm:$0xf]
      %v2449 = vld [vmem:[%s2446 + $0x8] sm:$0xf]
      %v2450 = vld [vmem:[%s2446 + $0xc] sm:$0xf]
      %v2451 = vld [vmem:[%s2446 + $0x10] sm:$0xf]
      %v2452 = vld [vmem:[%s2446 + $0x14] sm:$0xf]
      %v2453 = vld [vmem:[%s2446 + $0x18] sm:$0xf]
      %v2454 = vld [vmem:[%s2446 + $0x1c] sm:$0xf]
      %v2455 = vld [vmem:[%s2446 + $0x20] sm:$0xf]
      %v2456 = vld [vmem:[%s2446 + $0x24] sm:$0xf]
      %v2457 = vld [vmem:[%s2446 + $0x28] sm:$0xf]
      %v2458 = vld [vmem:[%s2446 + $0x2c] sm:$0xf]
      %v2459 = vld [vmem:[%s2446 + $0x30] sm:$0xf]
      %v2460 = vld [vmem:[%s2446 + $0x34] sm:$0xf]
      %v2461 = vld [vmem:[%s2446 + $0x38] sm:$0xf]
      %v2462 = vld [vmem:[%s2446 + $0x3c] sm:$0xf]
      %v2479 = vunpack.c.l.b16 %v2447
      %v2480 = vunpack.c.l.b16 %v2448
      %v2481 = vunpack.c.l.b16 %v2449
      %v2482 = vunpack.c.l.b16 %v2450
      %v2483 = vunpack.c.l.b16 %v2451
      %v2484 = vunpack.c.l.b16 %v2452
      %v2485 = vunpack.c.l.b16 %v2453
      %v2486 = vunpack.c.l.b16 %v2454
      %v2487 = vunpack.c.l.b16 %v2455
      %v2488 = vunpack.c.l.b16 %v2456
      %v2489 = vunpack.c.l.b16 %v2457
      %v2490 = vunpack.c.l.b16 %v2458
      %v2491 = vunpack.c.l.b16 %v2459
      %v2492 = vunpack.c.l.b16 %v2460
      %v2493 = vunpack.c.l.b16 %v2461
      %v2494 = vunpack.c.l.b16 %v2462
      %v2495 = vpack.c.b16 %v2480, %v2479
      %v2496 = vpack.c.b16 %v2482, %v2481
      %v2497 = vpack.c.b16 %v2484, %v2483
      %v2498 = vpack.c.b16 %v2486, %v2485
      %v2499 = vpack.c.b16 %v2488, %v2487
      %v2500 = vpack.c.b16 %v2490, %v2489
      %v2501 = vpack.c.b16 %v2492, %v2491
      %v2502 = vpack.c.b16 %v2494, %v2493
      %2511 = vmatpush.bf16.msra.mxu0 %v2502
      %2512 = vmatpush.bf16.msra.mxu0 %v2501
      %2513 = vmatpush.bf16.msra.mxu0 %v2500
      %2514 = vmatpush.bf16.msra.mxu0 %v2499
      %2515 = vmatpush.bf16.msra.mxu0 %v2498
      %2516 = vmatpush.bf16.msra.mxu0 %v2497
      %2517 = vmatpush.bf16.msra.mxu0 %v2496
      %2518 = vmatpush.bf16.msra.mxu0 %v2495
      %2519 = vmatmul.bf16.gmra.mxu0 %v2442
      %v2520 = vpop.f32.mrf.mxu0
      %v2521 = vadd.f32 0.0, %v2520
      %v2522 = vpop.f32.mrf.mxu0
      %v2523 = vadd.f32 0.0, %v2522
      %2524 = vmatmul.bf16.gmra.mxu0 %v2443
      %v2525 = vpop.f32.mrf.mxu0
      %v2526 = vadd.f32 0.0, %v2525
      %v2527 = vpop.f32.mrf.mxu0
      %v2528 = vadd.f32 0.0, %v2527
      %2529 = vmatmul.bf16.gmra.mxu0 %v2444
      %v2530 = vpop.f32.mrf.mxu0
      %v2531 = vadd.f32 0.0, %v2530
      %v2532 = vpop.f32.mrf.mxu0
      %v2533 = vadd.f32 0.0, %v2532
      %2534 = vmatmul.bf16.gmra.mxu0 %v2445
      %v2535 = vpop.f32.mrf.mxu0
      %v2536 = vadd.f32 0.0, %v2535
      %v2537 = vpop.f32.mrf.mxu0
      %v2538 = vadd.f32 0.0, %v2537
      %2539 = vdwg.mxu0
      %v2540 = vadd.f32 %v2426, %v2521
      %v2541 = vadd.f32 %v2427, %v2523
      %v2542 = vadd.f32 %v2428, %v2526
      %v2543 = vadd.f32 %v2429, %v2528
      %v2544 = vadd.f32 %v2430, %v2531
      %v2545 = vadd.f32 %v2431, %v2533
      %v2546 = vadd.f32 %v2432, %v2536
      %v2547 = vadd.f32 %v2433, %v2538
      %v2548 = vld [vmem:[%s2319 + $0x2] sm:$0xff]
      %v2549 = vld [vmem:[%s2319 + $0x12] sm:$0xff]
      %v2550 = vld [vmem:[%s2319 + $0x22] sm:$0xff]
      %v2551 = vld [vmem:[%s2319 + $0x32] sm:$0xff]
      %v2552 = vld [vmem:[%s2319 + $0x42] sm:$0xff]
      %v2553 = vld [vmem:[%s2319 + $0x52] sm:$0xff]
      %v2554 = vld [vmem:[%s2319 + $0x62] sm:$0xff]
      %v2555 = vld [vmem:[%s2319 + $0x72] sm:$0xff]
      %v2556 = vpack.c.bf16 %v2549, %v2548
      %v2557 = vpack.c.bf16 %v2551, %v2550
      %v2558 = vpack.c.bf16 %v2553, %v2552
      %v2559 = vpack.c.bf16 %v2555, %v2554
      %s2560 = scalar_lea.vmem %s3, 512
      %v2561 = vld [vmem:[%s2560] sm:$0xf]
      %v2562 = vld [vmem:[%s2560 + $0x4] sm:$0xf]
      %v2563 = vld [vmem:[%s2560 + $0x8] sm:$0xf]
      %v2564 = vld [vmem:[%s2560 + $0xc] sm:$0xf]
      %v2565 = vld [vmem:[%s2560 + $0x10] sm:$0xf]
      %v2566 = vld [vmem:[%s2560 + $0x14] sm:$0xf]
      %v2567 = vld [vmem:[%s2560 + $0x18] sm:$0xf]
      %v2568 = vld [vmem:[%s2560 + $0x1c] sm:$0xf]
      %v2569 = vld [vmem:[%s2560 + $0x20] sm:$0xf]
      %v2570 = vld [vmem:[%s2560 + $0x24] sm:$0xf]
      %v2571 = vld [vmem:[%s2560 + $0x28] sm:$0xf]
      %v2572 = vld [vmem:[%s2560 + $0x2c] sm:$0xf]
      %v2573 = vld [vmem:[%s2560 + $0x30] sm:$0xf]
      %v2574 = vld [vmem:[%s2560 + $0x34] sm:$0xf]
      %v2575 = vld [vmem:[%s2560 + $0x38] sm:$0xf]
      %v2576 = vld [vmem:[%s2560 + $0x3c] sm:$0xf]
      %v2593 = vunpack.c.l.b16 %v2561
      %v2594 = vunpack.c.l.b16 %v2562
      %v2595 = vunpack.c.l.b16 %v2563
      %v2596 = vunpack.c.l.b16 %v2564
      %v2597 = vunpack.c.l.b16 %v2565
      %v2598 = vunpack.c.l.b16 %v2566
      %v2599 = vunpack.c.l.b16 %v2567
      %v2600 = vunpack.c.l.b16 %v2568
      %v2601 = vunpack.c.l.b16 %v2569
      %v2602 = vunpack.c.l.b16 %v2570
      %v2603 = vunpack.c.l.b16 %v2571
      %v2604 = vunpack.c.l.b16 %v2572
      %v2605 = vunpack.c.l.b16 %v2573
      %v2606 = vunpack.c.l.b16 %v2574
      %v2607 = vunpack.c.l.b16 %v2575
      %v2608 = vunpack.c.l.b16 %v2576
      %v2609 = vpack.c.b16 %v2594, %v2593
      %v2610 = vpack.c.b16 %v2596, %v2595
      %v2611 = vpack.c.b16 %v2598, %v2597
      %v2612 = vpack.c.b16 %v2600, %v2599
      %v2613 = vpack.c.b16 %v2602, %v2601
      %v2614 = vpack.c.b16 %v2604, %v2603
      %v2615 = vpack.c.b16 %v2606, %v2605
      %v2616 = vpack.c.b16 %v2608, %v2607
      %2625 = vmatpush.bf16.msra.mxu0 %v2616
      %2626 = vmatpush.bf16.msra.mxu0 %v2615
      %2627 = vmatpush.bf16.msra.mxu0 %v2614
      %2628 = vmatpush.bf16.msra.mxu0 %v2613
      %2629 = vmatpush.bf16.msra.mxu0 %v2612
      %2630 = vmatpush.bf16.msra.mxu0 %v2611
      %2631 = vmatpush.bf16.msra.mxu0 %v2610
      %2632 = vmatpush.bf16.msra.mxu0 %v2609
      %2633 = vmatmul.bf16.gmra.mxu0 %v2556
      %v2634 = vpop.f32.mrf.mxu0
      %v2635 = vadd.f32 0.0, %v2634
      %v2636 = vpop.f32.mrf.mxu0
      %v2637 = vadd.f32 0.0, %v2636
      %2638 = vmatmul.bf16.gmra.mxu0 %v2557
      %v2639 = vpop.f32.mrf.mxu0
      %v2640 = vadd.f32 0.0, %v2639
      %v2641 = vpop.f32.mrf.mxu0
      %v2642 = vadd.f32 0.0, %v2641
      %2643 = vmatmul.bf16.gmra.mxu0 %v2558
      %v2644 = vpop.f32.mrf.mxu0
      %v2645 = vadd.f32 0.0, %v2644
      %v2646 = vpop.f32.mrf.mxu0
      %v2647 = vadd.f32 0.0, %v2646
      %2648 = vmatmul.bf16.gmra.mxu0 %v2559
      %v2649 = vpop.f32.mrf.mxu0
      %v2650 = vadd.f32 0.0, %v2649
      %v2651 = vpop.f32.mrf.mxu0
      %v2652 = vadd.f32 0.0, %v2651
      %2653 = vdwg.mxu0
      %v2654 = vadd.f32 %v2540, %v2635
      %v2655 = vadd.f32 %v2541, %v2637
      %v2656 = vadd.f32 %v2542, %v2640
      %v2657 = vadd.f32 %v2543, %v2642
      %v2658 = vadd.f32 %v2544, %v2645
      %v2659 = vadd.f32 %v2545, %v2647
      %v2660 = vadd.f32 %v2546, %v2650
      %v2661 = vadd.f32 %v2547, %v2652
      %v2662 = vld [vmem:[%s4] sm:$0x1]
      %v2664 = vperm.slane %v2662, 0
      %v2666 = vadd.f32 %v2654, %v2664
      %v2667 = vadd.f32 %v2655, %v2664
      %v2668 = vadd.f32 %v2656, %v2664
      %v2669 = vadd.f32 %v2657, %v2664
      %v2670 = vadd.f32 %v2658, %v2664
      %v2671 = vadd.f32 %v2659, %v2664
      %v2672 = vadd.f32 %v2660, %v2664
      %v2673 = vadd.f32 %v2661, %v2664
      %v2674 = vld [vmem:[%s826] sm:$0xf]
      %v2675 = vld [vmem:[%s826 + $0x8] sm:$0xf]
      %v2676 = vld [vmem:[%s826 + $0x10] sm:$0xf]
      %v2677 = vld [vmem:[%s826 + $0x18] sm:$0xf]
      %v2678 = vld [vmem:[%s826 + $0x20] sm:$0xf]
      %v2679 = vld [vmem:[%s826 + $0x28] sm:$0xf]
      %v2680 = vld [vmem:[%s826 + $0x30] sm:$0xf]
      %v2681 = vld [vmem:[%s826 + $0x38] sm:$0xf]
      %v2682 = vld [vmem:[%s5] sm:$0xf]
      %v2683 = vld [vmem:[%s5 + $0x4] sm:$0xf]
      %v2684 = vld [vmem:[%s5 + $0x8] sm:$0xf]
      %v2685 = vld [vmem:[%s5 + $0xc] sm:$0xf]
      %v2686 = vld [vmem:[%s5 + $0x10] sm:$0xf]
      %v2687 = vld [vmem:[%s5 + $0x14] sm:$0xf]
      %v2688 = vld [vmem:[%s5 + $0x18] sm:$0xf]
      %v2689 = vld [vmem:[%s5 + $0x1c] sm:$0xf]
      %v2690 = vld [vmem:[%s6] sm:$0x1]
      %v2692 = vperm.slane %v2690, 0
      %v2702 = vunpack.c.l.b16 %v2674
      %v2703 = vunpack.c.l.b16 %v2675
      %v2704 = vunpack.c.l.b16 %v2676
      %v2705 = vunpack.c.l.b16 %v2677
      %v2706 = vunpack.c.l.b16 %v2678
      %v2707 = vunpack.c.l.b16 %v2679
      %v2708 = vunpack.c.l.b16 %v2680
      %v2709 = vunpack.c.l.b16 %v2681
      %v2710 = vpack.c.b16 %v2703, %v2702
      %v2711 = vpack.c.b16 %v2705, %v2704
      %v2712 = vpack.c.b16 %v2707, %v2706
      %v2713 = vpack.c.b16 %v2709, %v2708
      %v2722 = vunpack.c.l.b16 %v2682
      %v2723 = vunpack.c.l.b16 %v2683
      %v2724 = vunpack.c.l.b16 %v2684
      %v2725 = vunpack.c.l.b16 %v2685
      %v2726 = vunpack.c.l.b16 %v2686
      %v2727 = vunpack.c.l.b16 %v2687
      %v2728 = vunpack.c.l.b16 %v2688
      %v2729 = vunpack.c.l.b16 %v2689
      %v2730 = vpack.c.b16 %v2723, %v2722
      %v2731 = vpack.c.b16 %v2725, %v2724
      %v2732 = vpack.c.b16 %v2727, %v2726
      %v2733 = vpack.c.b16 %v2729, %v2728
      %v2739 = vsel %vm363, %v2710, 0
      %v2742 = vsel %vm363, %v2711, 0
      %v2745 = vsel %vm363, %v2712, 0
      %v2748 = vsel %vm363, %v2713, 0
      %2750 = vmatpush.bf16.msra.mxu0 0
      %2751 = vmatpush.bf16.msra.mxu0 0
      %2752 = vmatpush.bf16.msra.mxu0 0
      %2753 = vmatpush.bf16.msra.mxu0 0
      %2754 = vmatpush.bf16.msra.mxu0 %v2733
      %2755 = vmatpush.bf16.msra.mxu0 %v2732
      %2756 = vmatpush.bf16.msra.mxu0 %v2731
      %2757 = vmatpush.bf16.msra.mxu0 %v2730
      %2758 = vmatmul.bf16.gmra.mxu0 %v2739
      %v2759 = vpop.f32.mrf.mxu0
      %v2760 = vadd.f32 %v2692, %v2759
      %v2761 = vpop.f32.mrf.mxu0
      %v2762 = vadd.f32 %v2692, %v2761
      %2763 = vmatmul.bf16.gmra.mxu0 %v2742
      %v2764 = vpop.f32.mrf.mxu0
      %v2765 = vadd.f32 %v2692, %v2764
      %v2766 = vpop.f32.mrf.mxu0
      %v2767 = vadd.f32 %v2692, %v2766
      %2768 = vmatmul.bf16.gmra.mxu0 %v2745
      %v2769 = vpop.f32.mrf.mxu0
      %v2770 = vadd.f32 %v2692, %v2769
      %v2771 = vpop.f32.mrf.mxu0
      %v2772 = vadd.f32 %v2692, %v2771
      %2773 = vmatmul.bf16.gmra.mxu0 %v2748
      %v2774 = vpop.f32.mrf.mxu0
      %v2775 = vadd.f32 %v2692, %v2774
      %v2776 = vpop.f32.mrf.mxu0
      %v2777 = vadd.f32 %v2692, %v2776
      %2778 = vdwg.mxu0
      %v2779 = vadd.f32 %v2666, %v2760
      %v2780 = vadd.f32 %v2667, %v2762
      %v2781 = vadd.f32 %v2668, %v2765
      %v2782 = vadd.f32 %v2669, %v2767
      %v2783 = vadd.f32 %v2670, %v2770
      %v2784 = vadd.f32 %v2671, %v2772
      %v2785 = vadd.f32 %v2672, %v2775
      %v2786 = vadd.f32 %v2673, %v2777
      %v2787 = vmax.f32 %v2779, 0.0
      %v2788 = vmax.f32 %v2780, 0.0
      %v2789 = vmax.f32 %v2781, 0.0
      %v2790 = vmax.f32 %v2782, 0.0
      %v2791 = vmax.f32 %v2783, 0.0
      %v2792 = vmax.f32 %v2784, 0.0
      %v2793 = vmax.f32 %v2785, 0.0
      %v2794 = vmax.f32 %v2786, 0.0
      %v2795 = vpack.c.bf16 %v2787, %v2787
      %v2796 = vpack.c.bf16 %v2788, %v2788
      %v2797 = vpack.c.bf16 %v2789, %v2789
      %v2798 = vpack.c.bf16 %v2790, %v2790
      %v2799 = vpack.c.bf16 %v2791, %v2791
      %v2800 = vpack.c.bf16 %v2792, %v2792
      %v2801 = vpack.c.bf16 %v2793, %v2793
      %v2802 = vpack.c.bf16 %v2794, %v2794
      %2803 = vst [vmem:[%s283] sm:$0xf] %v2795
      %2804 = vst [vmem:[%s283 + $0x4] sm:$0xf] %v2796
      %2805 = vst [vmem:[%s283 + $0x8] sm:$0xf] %v2797
      %2806 = vst [vmem:[%s283 + $0xc] sm:$0xf] %v2798
      %2807 = vst [vmem:[%s283 + $0x10] sm:$0xf] %v2799
      %2808 = vst [vmem:[%s283 + $0x14] sm:$0xf] %v2800
      %2809 = vst [vmem:[%s283 + $0x18] sm:$0xf] %v2801
      %2810 = vst [vmem:[%s283 + $0x1c] sm:$0xf] %v2802
      %p2811 = scmp.lt.s32.totalorder %s18, 1
      %s2812 = scalar_select %p2811, %s18, 1
      %s2813 = smul.addr %s2812, 8
      %s2814 = smul.addr %s2813, 4
      %s2815 = scalar_lea.vmem %s7, %s2814
      // Predicated region
      $region49: #{forward.2} parent=47 // pred_check
        %p2816 = pneg %p188
      $region50: #{forward.2} parent=47 // pred_check_branch
        %2818 = sbr.rel (%p2816) target = $region52
      $region51: #{forward.2} parent=47 // pred_region
        _
      $region52: #{forward.2} parent=47 // pred_fallthru
        _
    $region48: #{forward.2} parent=5 // pred_fallthru
      _
    %p2819 = scmp.le.s32.totalorder 2, %s13
    // Predicated region
    $region53: #{forward.2} parent=5 // pred_check
      %p2820 = pneg %p2819
    $region54: #{forward.2} parent=5 // pred_check_branch
      %2822 = sbr.rel (%p2820) target = $region56
    $region55: #{forward.2} parent=5 // pred_region
      %s2823 = ssub.s32 %s13, 2
      // Predicated region
      $region57: #{forward.2} parent=55 // pred_check
        %p2824 = pneg %p194
      $region58: #{forward.2} parent=55 // pred_check_branch
        %2826 = sbr.rel (%p2824) target = $region60
      $region59: #{forward.2} parent=55 // pred_region
        %p2827 = scmp.lt.s32.totalorder %s19, 1
        %s2828 = scalar_select %p2827, %s19, 1
        %s2829 = smul.addr %s2828, 8
        %s2830 = smul.addr %s2829, 4
        %s2831 = scalar_lea.vmem %s7, %s2830
      $region60: #{forward.2} parent=55 // pred_fallthru
        _
    $region56: #{forward.2} parent=5 // pred_fallthru
      _
  $region6: #{forward.2} parent=0 // loop_footer
    %s17 = sadd.s32 1, %s13
  $region7: #{forward.2} parent=0 // loop_footer_branch
    %12 = sbr.rel target = $region3
  $region8: #{forward.2} parent=0 // loop_exit
    _

// kernel: forward.3
$region0: #{forward.3}
  #allocation0 [shape = 'u32[]', space=smem, size = 0x4, offset = 0x4, fixed_abs, tag = 'smem constant byte address 0x4 - core index']
  #allocation1 [shape = 'u32[72,128]{1,0:T(1,128)}', space=vmem, size = 0x9000, scoped, tag = 'internal scratch']
  #allocation2 [shape = 'f32[10,10,128]{2,1,0:T(8,128)}', space=vmem, size = 0x14000, scoped, tag = 'scratch operand']
  %s0 = inlined_call_operand.vmem [shape: bf16[2,10,10,128], index: 0, kind: input, shape index: {}]
  %s1 = inlined_call_operand.vmem [shape: bf16[9,128,128], index: 1, kind: input, shape index: {}]
  %s2 = inlined_call_operand.vmem [shape: f32[1,128], index: 2, kind: input, shape index: {}]
  %s3 = inlined_call_operand.vmem [shape: bf16[9,128,128], index: 3, kind: input, shape index: {}]
  %s4 = inlined_call_operand.vmem [shape: f32[1,128], index: 4, kind: input, shape index: {}]
  %s5 = inlined_call_operand.hbm [shape: bf16[2,8,8,128], index: 5, kind: output, shape index: {}]
  %s6 = sld [smem:[#allocation0]]
  $region53: #{forward.3} parent=0
    _
  %s8 = ssub.s32 1, %s6
  %s9 = scalar_select 0, %s8, %s6
  $region1: #{forward.3} parent=0
    #allocation3 [shape = 'u8[32768]{0}', space=vmem, size = 0x8000, scoped, tag = 'output window, operand 0']
    #allocation4 [shape = 's32[2]{0}', space=sflag, size = 0x8, scoped, tag = 'scoped memory for forward.3']
    %10 = vsyncpa [#allocation4], 0
    %s11 = scalar_lea.sflag [#allocation4], 1
    %12 = vsyncpa %s11, 0
    loop: start=0, step=1, limit=4
    $region2: #{forward.3} parent=1 // loop_pre_header
      _
    $region3: #{forward.3} parent=1 // loop_header
      %s14 = sphi 0, %s18
      %p15 = scmp.ge.s32.totalorder %s14, 4
      %s24 = sphi 0, %s26
      %s27 = sphi 0, %s24
      %s28 = sphi 0, %s27
      %s44 = sphi 0, %s28
      %s48 = sphi 0, %s48
      %s50 = sphi 0, %s48
      %s51 = sphi 0, %s50
      %s65 = sphi 0, %s51
      %s69 = sphi 0, %s69
      %s71 = sphi 0, %s69
      %s72 = sphi 0, %s71
      %s86 = sphi 0, %s72
      %s90 = sphi 0, %s90
      %s92 = sphi 0, %s90
      %s93 = sphi 0, %s92
      %s107 = sphi 0, %s93
      %s111 = sphi 0, %s111
      %s113 = sphi 0, %s111
      %s114 = sphi 0, %s113
      %s128 = sphi 0, %s114
      %s134 = sphi 0, %s136
      %s137 = sphi 0, %s134
      %s138 = sphi 0, %s137
      %s154 = sphi 0, %s138
    $region4: #{forward.3} parent=1 // loop_header_branch
      %17 = sbr.rel (%p15) target = $region8
    $region5: #{forward.3} parent=1 // loop_body
      %s19 = ssub.s32 %s14, 1
      %s20 = ssub.s32 %s14, 2
      %s21 = sadd.s32 %s14, 1
      %s22 = ssub.s32 %s14, %s21
      %p23 = scmp.eq.s32.totalorder %s22, 0
      %s25 = sadd.s32 %s24, 1
      %s26 = scalar_select %p23, %s24, %s25
      %p29 = pneg %p23
      %p30 = scmp.eq.s32.totalorder %s14, 1
      %p31 = por %p29, %p30
      %p32 = scmp.ne.s32.totalorder %s24, %s27
      %p33 = scmp.eq.s32.totalorder %s14, 0
      %p34 = por %p32, %p33
      %p35 = scmp.ne.s32.totalorder %s24, %s27
      %p36 = scmp.eq.s32.totalorder %s19, 1
      %p37 = por %p35, %p36
      %p38 = scmp.ne.s32.totalorder %s27, %s28
      %p39 = scmp.eq.s32.totalorder %s19, 0
      %p40 = por %p38, %p39
      %p41 = scmp.ne.s32.totalorder %s27, %s28
      %p42 = scmp.eq.s32.totalorder %s20, 1
      %p43 = por %p41, %p42
      %p45 = scmp.ne.s32.totalorder %s28, %s44
      %p46 = scmp.eq.s32.totalorder %s20, 0
      %p47 = por %p45, %p46
      %s49 = sadd.s32 %s48, 1
      %p52 = scmp.eq.s32.totalorder %s14, 1
      %p53 = scmp.ne.s32.totalorder %s48, %s50
      %p54 = scmp.eq.s32.totalorder %s14, 0
      %p55 = por %p53, %p54
      %p56 = scmp.ne.s32.totalorder %s48, %s50
      %p57 = scmp.eq.s32.totalorder %s19, 1
      %p58 = por %p56, %p57
      %p59 = scmp.ne.s32.totalorder %s50, %s51
      %p60 = scmp.eq.s32.totalorder %s19, 0
      %p61 = por %p59, %p60
      %p62 = scmp.ne.s32.totalorder %s50, %s51
      %p63 = scmp.eq.s32.totalorder %s20, 1
      %p64 = por %p62, %p63
      %p66 = scmp.ne.s32.totalorder %s51, %s65
      %p67 = scmp.eq.s32.totalorder %s20, 0
      %p68 = por %p66, %p67
      %s70 = sadd.s32 %s69, 1
      %p73 = scmp.eq.s32.totalorder %s14, 1
      %p74 = scmp.ne.s32.totalorder %s69, %s71
      %p75 = scmp.eq.s32.totalorder %s14, 0
      %p76 = por %p74, %p75
      %p77 = scmp.ne.s32.totalorder %s69, %s71
      %p78 = scmp.eq.s32.totalorder %s19, 1
      %p79 = por %p77, %p78
      %p80 = scmp.ne.s32.totalorder %s71, %s72
      %p81 = scmp.eq.s32.totalorder %s19, 0
      %p82 = por %p80, %p81
      %p83 = scmp.ne.s32.totalorder %s71, %s72
      %p84 = scmp.eq.s32.totalorder %s20, 1
      %p85 = por %p83, %p84
      %p87 = scmp.ne.s32.totalorder %s72, %s86
      %p88 = scmp.eq.s32.totalorder %s20, 0
      %p89 = por %p87, %p88
      %s91 = sadd.s32 %s90, 1
      %p94 = scmp.eq.s32.totalorder %s14, 1
      %p95 = scmp.ne.s32.totalorder %s90, %s92
      %p96 = scmp.eq.s32.totalorder %s14, 0
      %p97 = por %p95, %p96
      %p98 = scmp.ne.s32.totalorder %s90, %s92
      %p99 = scmp.eq.s32.totalorder %s19, 1
      %p100 = por %p98, %p99
      %p101 = scmp.ne.s32.totalorder %s92, %s93
      %p102 = scmp.eq.s32.totalorder %s19, 0
      %p103 = por %p101, %p102
      %p104 = scmp.ne.s32.totalorder %s92, %s93
      %p105 = scmp.eq.s32.totalorder %s20, 1
      %p106 = por %p104, %p105
      %p108 = scmp.ne.s32.totalorder %s93, %s107
      %p109 = scmp.eq.s32.totalorder %s20, 0
      %p110 = por %p108, %p109
      %s112 = sadd.s32 %s111, 1
      %p115 = scmp.eq.s32.totalorder %s14, 1
      %p116 = scmp.ne.s32.totalorder %s111, %s113
      %p117 = scmp.eq.s32.totalorder %s14, 0
      %p118 = por %p116, %p117
      %p119 = scmp.ne.s32.totalorder %s111, %s113
      %p120 = scmp.eq.s32.totalorder %s19, 1
      %p121 = por %p119, %p120
      %p122 = scmp.ne.s32.totalorder %s113, %s114
      %p123 = scmp.eq.s32.totalorder %s19, 0
      %p124 = por %p122, %p123
      %p125 = scmp.ne.s32.totalorder %s113, %s114
      %p126 = scmp.eq.s32.totalorder %s20, 1
      %p127 = por %p125, %p126
      %p129 = scmp.ne.s32.totalorder %s114, %s128
      %p130 = scmp.eq.s32.totalorder %s20, 0
      %p131 = por %p129, %p130
      %s132 = ssub.s32 %s14, %s21
      %p133 = scmp.eq.s32.totalorder %s132, 0
      %s135 = sadd.s32 %s134, 1
      %s136 = scalar_select %p133, %s134, %s135
      %p139 = pneg %p133
      %p140 = scmp.eq.s32.totalorder %s14, 1
      %p141 = por %p139, %p140
      %p142 = scmp.ne.s32.totalorder %s134, %s137
      %p143 = scmp.eq.s32.totalorder %s14, 0
      %p144 = por %p142, %p143
      %p145 = scmp.ne.s32.totalorder %s134, %s137
      %p146 = scmp.eq.s32.totalorder %s19, 1
      %p147 = por %p145, %p146
      %p148 = scmp.ne.s32.totalorder %s137, %s138
      %p149 = scmp.eq.s32.totalorder %s19, 0
      %p150 = por %p148, %p149
      %p151 = scmp.ne.s32.totalorder %s137, %s138
      %p152 = scmp.eq.s32.totalorder %s20, 1
      %p153 = por %p151, %p152
      %p155 = scmp.ne.s32.totalorder %s138, %s154
      %p156 = scmp.eq.s32.totalorder %s20, 0
      %p157 = por %p155, %p156
      %p158 = scmp.le.s32.totalorder 1, %s14
      %p159 = scmp.lt.s32.totalorder %s14, 3
      %p160 = pnand %p158, %p159
      %p161 = pneg %p160
      // Predicated region
      $region9: #{forward.3} parent=5 // pred_check
        _
      $region10: #{forward.3} parent=5 // pred_check_branch
        %163 = sbr.rel (%p160) target = $region12
      $region11: #{forward.3} parent=5 // pred_region
        %s164 = ssub.s32 %s14, 1
        // Predicated region
        $region13: #{forward.3} parent=11 // pred_check
          %p165 = pneg %p61
        $region14: #{forward.3} parent=11 // pred_check_branch
          %167 = sbr.rel (%p165) target = $region16
        $region15: #{forward.3} parent=11 // pred_region
          _
        $region16: #{forward.3} parent=11 // pred_fallthru
          _
        // Predicated region
        $region17: #{forward.3} parent=11 // pred_check
          %p168 = pneg %p82
        $region18: #{forward.3} parent=11 // pred_check_branch
          %170 = sbr.rel (%p168) target = $region20
        $region19: #{forward.3} parent=11 // pred_region
          _
        $region20: #{forward.3} parent=11 // pred_fallthru
          _
        // Predicated region
        $region21: #{forward.3} parent=11 // pred_check
          %p171 = pneg %p103
        $region22: #{forward.3} parent=11 // pred_check_branch
          %173 = sbr.rel (%p171) target = $region24
        $region23: #{forward.3} parent=11 // pred_region
          _
        $region24: #{forward.3} parent=11 // pred_fallthru
          _
        // Predicated region
        $region25: #{forward.3} parent=11 // pred_check
          %p174 = pneg %p124
        $region26: #{forward.3} parent=11 // pred_check_branch
          %176 = sbr.rel (%p174) target = $region28
        $region27: #{forward.3} parent=11 // pred_region
          _
        $region28: #{forward.3} parent=11 // pred_fallthru
          _
      $region12: #{forward.3} parent=5 // pred_fallthru
        _
      %p177 = scmp.lt.s32.totalorder %s14, 2
      // Predicated region
      $region29: #{forward.3} parent=5 // pred_check
        %p178 = pneg %p177
      $region30: #{forward.3} parent=5 // pred_check_branch
        %180 = sbr.rel (%p178) target = $region32
      $region31: #{forward.3} parent=5 // pred_region
        // Predicated region
        $region33: #{forward.3} parent=31 // pred_check
          %p181 = pneg %p34
        $region34: #{forward.3} parent=31 // pred_check_branch
          %183 = sbr.rel (%p181) target = $region36
        $region35: #{forward.3} parent=31 // pred_region
          %p184 = scmp.lt.s32.totalorder %s14, 1
          %s185 = scalar_select %p184, %s14, 1
          %s186 = smul.addr %s185, 20
          %s187 = smul.addr %s186, 4
          %s188 = scalar_lea.vmem %s0, %s187
        $region36: #{forward.3} parent=31 // pred_fallthru
          _
      $region32: #{forward.3} parent=5 // pred_fallthru
        _
      %p189 = scmp.le.s32.totalorder 1, %s14
      %p190 = scmp.lt.s32.totalorder %s14, 3
      %p191 = pnand %p189, %p190
      %p192 = pneg %p191
      // Predicated region
      $region37: #{forward.3} parent=5 // pred_check
        _
      $region38: #{forward.3} parent=5 // pred_check_branch
        %194 = sbr.rel (%p191) target = $region40
      $region39: #{forward.3} parent=5 // pred_region
        %s195 = ssub.s32 %s14, 1
        %p196 = scmp.lt.s32.totalorder %s19, 1
        %s197 = scalar_select %p196, %s19, 1
        %s198 = smul.addr %s197, 20
        %s199 = smul.addr %s198, 4
        %s200 = scalar_lea.vmem %s0, %s199
        %p201 = pneg %p40
        %p202 = pneg %p37
        %p203 = pneg %p61
        %p204 = pneg %p58
        %p205 = pneg %p82
        %p206 = pneg %p79
        %p207 = pneg %p103
        %p208 = pneg %p100
        %p209 = pneg %p124
        %p210 = pneg %p121
        %p211 = pneg %p150
        %p212 = pneg %p147
        %s213 = sand.u32 %s137, 1
        %s214 = scalar_lea.sflag [#allocation4], %s213
        %s215 = sand.u32 %s137, 1
        %s216 = smul.addr %s215, 32
        %s217 = scalar_lea.vmem [#allocation3], %s216
        %p218 = scmp.lt.s32.totalorder %s19, 1
        %s219 = scalar_select %p218, %s19, 1
        %s220 = smul.addr %s219, 20
        %s221 = smul.addr %s220, 4
        %s222 = scalar_lea.vmem %s0, %s221
        %v223 = vld [vmem:[%s222] sm:$0xf]
        %v224 = vld [vmem:[%s222 + $0x8] sm:$0xf]
        %v225 = vld [vmem:[%s222 + $0x10] sm:$0xf]
        %v226 = vld [vmem:[%s222 + $0x18] sm:$0xf]
        %v227 = vld [vmem:[%s222 + $0x20] sm:$0xf]
        %v228 = vld [vmem:[%s222 + $0x28] sm:$0xf]
        %v229 = vld [vmem:[%s222 + $0x30] sm:$0xf]
        %v230 = vld [vmem:[%s222 + $0x38] sm:$0xf]
        %v231 = vld [vmem:[%s1] sm:$0xf]
        %v232 = vld [vmem:[%s1 + $0x4] sm:$0xf]
        %v233 = vld [vmem:[%s1 + $0x8] sm:$0xf]
        %v234 = vld [vmem:[%s1 + $0xc] sm:$0xf]
        %v235 = vld [vmem:[%s1 + $0x10] sm:$0xf]
        %v236 = vld [vmem:[%s1 + $0x14] sm:$0xf]
        %v237 = vld [vmem:[%s1 + $0x18] sm:$0xf]
        %v238 = vld [vmem:[%s1 + $0x1c] sm:$0xf]
        %v239 = vld [vmem:[%s1 + $0x20] sm:$0xf]
        %v240 = vld [vmem:[%s1 + $0x24] sm:$0xf]
        %v241 = vld [vmem:[%s1 + $0x28] sm:$0xf]
        %v242 = vld [vmem:[%s1 + $0x2c] sm:$0xf]
        %v243 = vld [vmem:[%s1 + $0x30] sm:$0xf]
        %v244 = vld [vmem:[%s1 + $0x34] sm:$0xf]
        %v245 = vld [vmem:[%s1 + $0x38] sm:$0xf]
        %v246 = vld [vmem:[%s1 + $0x3c] sm:$0xf]
        %v247 = vld [vmem:[%s222 + $0x4] sm:$0x1]
        %v248 = vld [vmem:[%s222 + $0xc] sm:$0x1]
        %v249 = vld [vmem:[%s222 + $0x14] sm:$0x1]
        %v250 = vld [vmem:[%s222 + $0x1c] sm:$0x1]
        %v251 = vld [vmem:[%s222 + $0x24] sm:$0x1]
        %v252 = vld [vmem:[%s222 + $0x2c] sm:$0x1]
        %v253 = vld [vmem:[%s222 + $0x34] sm:$0x1]
        %v254 = vld [vmem:[%s222 + $0x3c] sm:$0x1]
        %vm255 = vsmask.f32 3328
        %vm256 = vsmask.f32 7440
        %vm257 = vmor %vm255, %vm256
        %v259 = vshrl.u32 %v223, 16
        %v261 = vrot.slane %v259, 4
        %v262 = vshll.u32 %v223, 16
        %v264 = vrot.slane %v262, 5
        %v265 = vor.u32 %v261, %v264
        %v266 = vrot.slane %v265, 4
        %v268 = vshll.u32 %v247, 16
        %v270 = vrot.slane %v268, 5
        %v271 = vsel %vm257, %v266, %v270
        %v273 = vshrl.u32 %v224, 16
        %v275 = vrot.slane %v273, 4
        %v276 = vshll.u32 %v224, 16
        %v278 = vrot.slane %v276, 5
        %v279 = vor.u32 %v275, %v278
        %v280 = vrot.slane %v279, 4
        %v282 = vshll.u32 %v248, 16
        %v284 = vrot.slane %v282, 5
        %v285 = vsel %vm257, %v280, %v284
        %v287 = vshrl.u32 %v225, 16
        %v289 = vrot.slane %v287, 4
        %v290 = vshll.u32 %v225, 16
        %v292 = vrot.slane %v290, 5
        %v293 = vor.u32 %v289, %v292
        %v294 = vrot.slane %v293, 4
        %v296 = vshll.u32 %v249, 16
        %v298 = vrot.slane %v296, 5
        %v299 = vsel %vm257, %v294, %v298
        %v301 = vshrl.u32 %v226, 16
        %v303 = vrot.slane %v301, 4
        %v304 = vshll.u32 %v226, 16
        %v306 = vrot.slane %v304, 5
        %v307 = vor.u32 %v303, %v306
        %v308 = vrot.slane %v307, 4
        %v310 = vshll.u32 %v250, 16
        %v312 = vrot.slane %v310, 5
        %v313 = vsel %vm257, %v308, %v312
        %v315 = vshrl.u32 %v227, 16
        %v317 = vrot.slane %v315, 4
        %v318 = vshll.u32 %v227, 16
        %v320 = vrot.slane %v318, 5
        %v321 = vor.u32 %v317, %v320
        %v322 = vrot.slane %v321, 4
        %v324 = vshll.u32 %v251, 16
        %v326 = vrot.slane %v324, 5
        %v327 = vsel %vm257, %v322, %v326
        %v329 = vshrl.u32 %v228, 16
        %v331 = vrot.slane %v329, 4
        %v332 = vshll.u32 %v228, 16
        %v334 = vrot.slane %v332, 5
        %v335 = vor.u32 %v331, %v334
        %v336 = vrot.slane %v335, 4
        %v338 = vshll.u32 %v252, 16
        %v340 = vrot.slane %v338, 5
        %v341 = vsel %vm257, %v336, %v340
        %v343 = vshrl.u32 %v229, 16
        %v345 = vrot.slane %v343, 4
        %v346 = vshll.u32 %v229, 16
        %v348 = vrot.slane %v346, 5
        %v349 = vor.u32 %v345, %v348
        %v350 = vrot.slane %v349, 4
        %v352 = vshll.u32 %v253, 16
        %v354 = vrot.slane %v352, 5
        %v355 = vsel %vm257, %v350, %v354
        %v357 = vshrl.u32 %v230, 16
        %v359 = vrot.slane %v357, 4
        %v360 = vshll.u32 %v230, 16
        %v362 = vrot.slane %v360, 5
        %v363 = vor.u32 %v359, %v362
        %v364 = vrot.slane %v363, 4
        %v366 = vshll.u32 %v254, 16
        %v368 = vrot.slane %v366, 5
        %v369 = vsel %vm257, %v364, %v368
        %s370 = scalar_lea.vmem %s1, 64
        %v371 = vld [vmem:[%s370] sm:$0xf]
        %v372 = vld [vmem:[%s370 + $0x4] sm:$0xf]
        %v373 = vld [vmem:[%s370 + $0x8] sm:$0xf]
        %v374 = vld [vmem:[%s370 + $0xc] sm:$0xf]
        %v375 = vld [vmem:[%s370 + $0x10] sm:$0xf]
        %v376 = vld [vmem:[%s370 + $0x14] sm:$0xf]
        %v377 = vld [vmem:[%s370 + $0x18] sm:$0xf]
        %v378 = vld [vmem:[%s370 + $0x1c] sm:$0xf]
        %v379 = vld [vmem:[%s370 + $0x20] sm:$0xf]
        %v380 = vld [vmem:[%s370 + $0x24] sm:$0xf]
        %v381 = vld [vmem:[%s370 + $0x28] sm:$0xf]
        %v382 = vld [vmem:[%s370 + $0x2c] sm:$0xf]
        %v383 = vld [vmem:[%s370 + $0x30] sm:$0xf]
        %v384 = vld [vmem:[%s370 + $0x34] sm:$0xf]
        %v385 = vld [vmem:[%s370 + $0x38] sm:$0xf]
        %v386 = vld [vmem:[%s370 + $0x3c] sm:$0xf]
        %v387 = vunpack.c.l.b16 %v271
        %v388 = vunpack.c.l.b16 %v285
        %v389 = vunpack.c.l.b16 %v299
        %v390 = vunpack.c.l.b16 %v313
        %v391 = vunpack.c.l.b16 %v327
        %v392 = vunpack.c.l.b16 %v341
        %v393 = vunpack.c.l.b16 %v355
        %v394 = vunpack.c.l.b16 %v369
        %v395 = vpack.c.b16 %v388, %v387
        %v396 = vpack.c.b16 %v390, %v389
        %v397 = vpack.c.b16 %v392, %v391
        %v398 = vpack.c.b16 %v394, %v393
        %v419 = vunpack.c.l.b16 %v371
        %v420 = vunpack.c.l.b16 %v372
        %v421 = vunpack.c.l.b16 %v373
        %v422 = vunpack.c.l.b16 %v374
        %v423 = vunpack.c.l.b16 %v375
        %v424 = vunpack.c.l.b16 %v376
        %v425 = vunpack.c.l.b16 %v377
        %v426 = vunpack.c.l.b16 %v378
        %v427 = vunpack.c.l.b16 %v379
        %v428 = vunpack.c.l.b16 %v380
        %v429 = vunpack.c.l.b16 %v381
        %v430 = vunpack.c.l.b16 %v382
        %v431 = vunpack.c.l.b16 %v383
        %v432 = vunpack.c.l.b16 %v384
        %v433 = vunpack.c.l.b16 %v385
        %v434 = vunpack.c.l.b16 %v386
        %v435 = vpack.c.b16 %v420, %v419
        %v436 = vpack.c.b16 %v422, %v421
        %v437 = vpack.c.b16 %v424, %v423
        %v438 = vpack.c.b16 %v426, %v425
        %v439 = vpack.c.b16 %v428, %v427
        %v440 = vpack.c.b16 %v430, %v429
        %v441 = vpack.c.b16 %v432, %v431
        %v442 = vpack.c.b16 %v434, %v433
        %451 = vmatpush.bf16.msra.mxu0 %v442
        %452 = vmatpush.bf16.msra.mxu0 %v441
        %453 = vmatpush.bf16.msra.mxu0 %v440
        %454 = vmatpush.bf16.msra.mxu0 %v439
        %455 = vmatpush.bf16.msra.mxu0 %v438
        %456 = vmatpush.bf16.msra.mxu0 %v437
        %457 = vmatpush.bf16.msra.mxu0 %v436
        %458 = vmatpush.bf16.msra.mxu0 %v435
        %459 = vmatmul.bf16.gmra.mxu0 %v395
        %v460 = vpop.f32.mrf.mxu0
        %v461 = vadd.f32 0.0, %v460
        %v462 = vpop.f32.mrf.mxu0
        %v463 = vadd.f32 0.0, %v462
        %464 = vmatmul.bf16.gmra.mxu0 %v396
        %v465 = vpop.f32.mrf.mxu0
        %v466 = vadd.f32 0.0, %v465
        %v467 = vpop.f32.mrf.mxu0
        %v468 = vadd.f32 0.0, %v467
        %469 = vmatmul.bf16.gmra.mxu0 %v397
        %v470 = vpop.f32.mrf.mxu0
        %v471 = vadd.f32 0.0, %v470
        %v472 = vpop.f32.mrf.mxu0
        %v473 = vadd.f32 0.0, %v472
        %474 = vmatmul.bf16.gmra.mxu0 %v398
        %v475 = vpop.f32.mrf.mxu0
        %v476 = vadd.f32 0.0, %v475
        %v477 = vpop.f32.mrf.mxu0
        %v478 = vadd.f32 0.0, %v477
        %479 = vdwg.mxu0
        %v488 = vunpack.c.l.b16 %v223
        %v489 = vunpack.c.l.b16 %v224
        %v490 = vunpack.c.l.b16 %v225
        %v491 = vunpack.c.l.b16 %v226
        %v492 = vunpack.c.l.b16 %v227
        %v493 = vunpack.c.l.b16 %v228
        %v494 = vunpack.c.l.b16 %v229
        %v495 = vunpack.c.l.b16 %v230
        %v496 = vpack.c.b16 %v489, %v488
        %v497 = vpack.c.b16 %v491, %v490
        %v498 = vpack.c.b16 %v493, %v492
        %v499 = vpack.c.b16 %v495, %v494
        %v520 = vunpack.c.l.b16 %v231
        %v521 = vunpack.c.l.b16 %v232
        %v522 = vunpack.c.l.b16 %v233
        %v523 = vunpack.c.l.b16 %v234
        %v524 = vunpack.c.l.b16 %v235
        %v525 = vunpack.c.l.b16 %v236
        %v526 = vunpack.c.l.b16 %v237
        %v527 = vunpack.c.l.b16 %v238
        %v528 = vunpack.c.l.b16 %v239
        %v529 = vunpack.c.l.b16 %v240
        %v530 = vunpack.c.l.b16 %v241
        %v531 = vunpack.c.l.b16 %v242
        %v532 = vunpack.c.l.b16 %v243
        %v533 = vunpack.c.l.b16 %v244
        %v534 = vunpack.c.l.b16 %v245
        %v535 = vunpack.c.l.b16 %v246
        %v536 = vpack.c.b16 %v521, %v520
        %v537 = vpack.c.b16 %v523, %v522
        %v538 = vpack.c.b16 %v525, %v524
        %v539 = vpack.c.b16 %v527, %v526
        %v540 = vpack.c.b16 %v529, %v528
        %v541 = vpack.c.b16 %v531, %v530
        %v542 = vpack.c.b16 %v533, %v532
        %v543 = vpack.c.b16 %v535, %v534
        %552 = vmatpush.bf16.msra.mxu0 %v543
        %553 = vmatpush.bf16.msra.mxu0 %v542
        %554 = vmatpush.bf16.msra.mxu0 %v541
        %555 = vmatpush.bf16.msra.mxu0 %v540
        %556 = vmatpush.bf16.msra.mxu0 %v539
        %557 = vmatpush.bf16.msra.mxu0 %v538
        %558 = vmatpush.bf16.msra.mxu0 %v537
        %559 = vmatpush.bf16.msra.mxu0 %v536
        %560 = vmatmul.bf16.gmra.mxu0 %v496
        %v561 = vpop.f32.mrf.mxu0
        %v562 = vadd.f32 %v461, %v561
        %v563 = vpop.f32.mrf.mxu0
        %v564 = vadd.f32 %v463, %v563
        %565 = vmatmul.bf16.gmra.mxu0 %v497
        %v566 = vpop.f32.mrf.mxu0
        %v567 = vadd.f32 %v466, %v566
        %v568 = vpop.f32.mrf.mxu0
        %v569 = vadd.f32 %v468, %v568
        %570 = vmatmul.bf16.gmra.mxu0 %v498
        %v571 = vpop.f32.mrf.mxu0
        %v572 = vadd.f32 %v471, %v571
        %v573 = vpop.f32.mrf.mxu0
        %v574 = vadd.f32 %v473, %v573
        %575 = vmatmul.bf16.gmra.mxu0 %v499
        %v576 = vpop.f32.mrf.mxu0
        %v577 = vadd.f32 %v476, %v576
        %v578 = vpop.f32.mrf.mxu0
        %v579 = vadd.f32 %v478, %v578
        %580 = vdwg.mxu0
        %v581 = vld [vmem:[%s222] sm:$0xe]
        %v582 = vld [vmem:[%s222 + $0x8] sm:$0xe]
        %v583 = vld [vmem:[%s222 + $0x10] sm:$0xe]
        %v584 = vld [vmem:[%s222 + $0x18] sm:$0xe]
        %v585 = vld [vmem:[%s222 + $0x20] sm:$0xe]
        %v586 = vld [vmem:[%s222 + $0x28] sm:$0xe]
        %v587 = vld [vmem:[%s222 + $0x30] sm:$0xe]
        %v588 = vld [vmem:[%s222 + $0x38] sm:$0xe]
        %vm605 = vcmask 1042432
        %vm606 = vcmask 1046532
        %vm607 = vmor %vm605, %vm606
        %v608 = vrot.slane %v581, 5
        %v609 = vrot.slane %v608, 4
        %v610 = vrot.slane %v247, 5
        %v611 = vsel %vm607, %v609, %v610
        %v612 = vrot.slane %v582, 5
        %v613 = vrot.slane %v612, 4
        %v614 = vrot.slane %v248, 5
        %v615 = vsel %vm607, %v613, %v614
        %v616 = vrot.slane %v583, 5
        %v617 = vrot.slane %v616, 4
        %v618 = vrot.slane %v249, 5
        %v619 = vsel %vm607, %v617, %v618
        %v620 = vrot.slane %v584, 5
        %v621 = vrot.slane %v620, 4
        %v622 = vrot.slane %v250, 5
        %v623 = vsel %vm607, %v621, %v622
        %v624 = vrot.slane %v585, 5
        %v625 = vrot.slane %v624, 4
        %v626 = vrot.slane %v251, 5
        %v627 = vsel %vm607, %v625, %v626
        %v628 = vrot.slane %v586, 5
        %v629 = vrot.slane %v628, 4
        %v630 = vrot.slane %v252, 5
        %v631 = vsel %vm607, %v629, %v630
        %v632 = vrot.slane %v587, 5
        %v633 = vrot.slane %v632, 4
        %v634 = vrot.slane %v253, 5
        %v635 = vsel %vm607, %v633, %v634
        %v636 = vrot.slane %v588, 5
        %v637 = vrot.slane %v636, 4
        %v638 = vrot.slane %v254, 5
        %v639 = vsel %vm607, %v637, %v638
        %s640 = scalar_lea.vmem %s1, 128
        %v641 = vld [vmem:[%s640] sm:$0xf]
        %v642 = vld [vmem:[%s640 + $0x4] sm:$0xf]
        %v643 = vld [vmem:[%s640 + $0x8] sm:$0xf]
        %v644 = vld [vmem:[%s640 + $0xc] sm:$0xf]
        %v645 = vld [vmem:[%s640 + $0x10] sm:$0xf]
        %v646 = vld [vmem:[%s640 + $0x14] sm:$0xf]
        %v647 = vld [vmem:[%s640 + $0x18] sm:$0xf]
        %v648 = vld [vmem:[%s640 + $0x1c] sm:$0xf]
        %v649 = vld [vmem:[%s640 + $0x20] sm:$0xf]
        %v650 = vld [vmem:[%s640 + $0x24] sm:$0xf]
        %v651 = vld [vmem:[%s640 + $0x28] sm:$0xf]
        %v652 = vld [vmem:[%s640 + $0x2c] sm:$0xf]
        %v653 = vld [vmem:[%s640 + $0x30] sm:$0xf]
        %v654 = vld [vmem:[%s640 + $0x34] sm:$0xf]
        %v655 = vld [vmem:[%s640 + $0x38] sm:$0xf]
        %v656 = vld [vmem:[%s640 + $0x3c] sm:$0xf]
        %v657 = vunpack.c.l.b16 %v611
        %v658 = vunpack.c.l.b16 %v615
        %v659 = vunpack.c.l.b16 %v619
        %v660 = vunpack.c.l.b16 %v623
        %v661 = vunpack.c.l.b16 %v627
        %v662 = vunpack.c.l.b16 %v631
        %v663 = vunpack.c.l.b16 %v635
        %v664 = vunpack.c.l.b16 %v639
        %v665 = vpack.c.b16 %v658, %v657
        %v666 = vpack.c.b16 %v660, %v659
        %v667 = vpack.c.b16 %v662, %v661
        %v668 = vpack.c.b16 %v664, %v663
        %v689 = vunpack.c.l.b16 %v641
        %v690 = vunpack.c.l.b16 %v642
        %v691 = vunpack.c.l.b16 %v643
        %v692 = vunpack.c.l.b16 %v644
        %v693 = vunpack.c.l.b16 %v645
        %v694 = vunpack.c.l.b16 %v646
        %v695 = vunpack.c.l.b16 %v647
        %v696 = vunpack.c.l.b16 %v648
        %v697 = vunpack.c.l.b16 %v649
        %v698 = vunpack.c.l.b16 %v650
        %v699 = vunpack.c.l.b16 %v651
        %v700 = vunpack.c.l.b16 %v652
        %v701 = vunpack.c.l.b16 %v653
        %v702 = vunpack.c.l.b16 %v654
        %v703 = vunpack.c.l.b16 %v655
        %v704 = vunpack.c.l.b16 %v656
        %v705 = vpack.c.b16 %v690, %v689
        %v706 = vpack.c.b16 %v692, %v691
        %v707 = vpack.c.b16 %v694, %v693
        %v708 = vpack.c.b16 %v696, %v695
        %v709 = vpack.c.b16 %v698, %v697
        %v710 = vpack.c.b16 %v700, %v699
        %v711 = vpack.c.b16 %v702, %v701
        %v712 = vpack.c.b16 %v704, %v703
        %721 = vmatpush.bf16.msra.mxu0 %v712
        %722 = vmatpush.bf16.msra.mxu0 %v711
        %723 = vmatpush.bf16.msra.mxu0 %v710
        %724 = vmatpush.bf16.msra.mxu0 %v709
        %725 = vmatpush.bf16.msra.mxu0 %v708
        %726 = vmatpush.bf16.msra.mxu0 %v707
        %727 = vmatpush.bf16.msra.mxu0 %v706
        %728 = vmatpush.bf16.msra.mxu0 %v705
        %729 = vmatmul.bf16.gmra.mxu0 %v665
        %v730 = vpop.f32.mrf.mxu0
        %v731 = vadd.f32 0.0, %v730
        %v732 = vpop.f32.mrf.mxu0
        %v733 = vadd.f32 0.0, %v732
        %734 = vmatmul.bf16.gmra.mxu0 %v666
        %v735 = vpop.f32.mrf.mxu0
        %v736 = vadd.f32 0.0, %v735
        %v737 = vpop.f32.mrf.mxu0
        %v738 = vadd.f32 0.0, %v737
        %739 = vmatmul.bf16.gmra.mxu0 %v667
        %v740 = vpop.f32.mrf.mxu0
        %v741 = vadd.f32 0.0, %v740
        %v742 = vpop.f32.mrf.mxu0
        %v743 = vadd.f32 0.0, %v742
        %744 = vmatmul.bf16.gmra.mxu0 %v668
        %v745 = vpop.f32.mrf.mxu0
        %v746 = vadd.f32 0.0, %v745
        %v747 = vpop.f32.mrf.mxu0
        %v748 = vadd.f32 0.0, %v747
        %749 = vdwg.mxu0
        %v750 = vadd.f32 %v562, %v731
        %v751 = vadd.f32 %v564, %v733
        %v752 = vadd.f32 %v567, %v736
        %v753 = vadd.f32 %v569, %v738
        %v754 = vadd.f32 %v572, %v741
        %v755 = vadd.f32 %v574, %v743
        %v756 = vadd.f32 %v577, %v746
        %v757 = vadd.f32 %v579, %v748
        %s758 = scalar_lea.vmem %s222, 8
        %v759 = vld [vmem:[%s758] sm:$0xf]
        %v760 = vld [vmem:[%s758 + $0x8] sm:$0xf]
        %v761 = vld [vmem:[%s758 + $0x10] sm:$0xf]
        %v762 = vld [vmem:[%s758 + $0x18] sm:$0xf]
        %v763 = vld [vmem:[%s758 + $0x20] sm:$0xf]
        %v764 = vld [vmem:[%s758 + $0x28] sm:$0xf]
        %v765 = vld [vmem:[%s758 + $0x30] sm:$0xf]
        %v766 = vld [vmem:[%s758 + $0x38] sm:$0xf]
        %s767 = scalar_lea.vmem %s1, 192
        %v768 = vld [vmem:[%s767] sm:$0xf]
        %v769 = vld [vmem:[%s767 + $0x4] sm:$0xf]
        %v770 = vld [vmem:[%s767 + $0x8] sm:$0xf]
        %v771 = vld [vmem:[%s767 + $0xc] sm:$0xf]
        %v772 = vld [vmem:[%s767 + $0x10] sm:$0xf]
        %v773 = vld [vmem:[%s767 + $0x14] sm:$0xf]
        %v774 = vld [vmem:[%s767 + $0x18] sm:$0xf]
        %v775 = vld [vmem:[%s767 + $0x1c] sm:$0xf]
        %v776 = vld [vmem:[%s767 + $0x20] sm:$0xf]
        %v777 = vld [vmem:[%s767 + $0x24] sm:$0xf]
        %v778 = vld [vmem:[%s767 + $0x28] sm:$0xf]
        %v779 = vld [vmem:[%s767 + $0x2c] sm:$0xf]
        %v780 = vld [vmem:[%s767 + $0x30] sm:$0xf]
        %v781 = vld [vmem:[%s767 + $0x34] sm:$0xf]
        %v782 = vld [vmem:[%s767 + $0x38] sm:$0xf]
        %v783 = vld [vmem:[%s767 + $0x3c] sm:$0xf]
        %v792 = vunpack.c.l.b16 %v759
        %v793 = vunpack.c.l.b16 %v760
        %v794 = vunpack.c.l.b16 %v761
        %v795 = vunpack.c.l.b16 %v762
        %v796 = vunpack.c.l.b16 %v763
        %v797 = vunpack.c.l.b16 %v764
        %v798 = vunpack.c.l.b16 %v765
        %v799 = vunpack.c.l.b16 %v766
        %v800 = vpack.c.b16 %v793, %v792
        %v801 = vpack.c.b16 %v795, %v794
        %v802 = vpack.c.b16 %v797, %v796
        %v803 = vpack.c.b16 %v799, %v798
        %v824 = vunpack.c.l.b16 %v768
        %v825 = vunpack.c.l.b16 %v769
        %v826 = vunpack.c.l.b16 %v770
        %v827 = vunpack.c.l.b16 %v771
        %v828 = vunpack.c.l.b16 %v772
        %v829 = vunpack.c.l.b16 %v773
        %v830 = vunpack.c.l.b16 %v774
        %v831 = vunpack.c.l.b16 %v775
        %v832 = vunpack.c.l.b16 %v776
        %v833 = vunpack.c.l.b16 %v777
        %v834 = vunpack.c.l.b16 %v778
        %v835 = vunpack.c.l.b16 %v779
        %v836 = vunpack.c.l.b16 %v780
        %v837 = vunpack.c.l.b16 %v781
        %v838 = vunpack.c.l.b16 %v782
        %v839 = vunpack.c.l.b16 %v783
        %v840 = vpack.c.b16 %v825, %v824
        %v841 = vpack.c.b16 %v827, %v826
        %v842 = vpack.c.b16 %v829, %v828
        %v843 = vpack.c.b16 %v831, %v830
        %v844 = vpack.c.b16 %v833, %v832
        %v845 = vpack.c.b16 %v835, %v834
        %v846 = vpack.c.b16 %v837, %v836
        %v847 = vpack.c.b16 %v839, %v838
        %856 = vmatpush.bf16.msra.mxu0 %v847
        %857 = vmatpush.bf16.msra.mxu0 %v846
        %858 = vmatpush.bf16.msra.mxu0 %v845
        %859 = vmatpush.bf16.msra.mxu0 %v844
        %860 = vmatpush.bf16.msra.mxu0 %v843
        %861 = vmatpush.bf16.msra.mxu0 %v842
        %862 = vmatpush.bf16.msra.mxu0 %v841
        %863 = vmatpush.bf16.msra.mxu0 %v840
        %864 = vmatmul.bf16.gmra.mxu0 %v800
        %v865 = vpop.f32.mrf.mxu0
        %v866 = vadd.f32 0.0, %v865
        %v867 = vpop.f32.mrf.mxu0
        %v868 = vadd.f32 0.0, %v867
        %869 = vmatmul.bf16.gmra.mxu0 %v801
        %v870 = vpop.f32.mrf.mxu0
        %v871 = vadd.f32 0.0, %v870
        %v872 = vpop.f32.mrf.mxu0
        %v873 = vadd.f32 0.0, %v872
        %874 = vmatmul.bf16.gmra.mxu0 %v802
        %v875 = vpop.f32.mrf.mxu0
        %v876 = vadd.f32 0.0, %v875
        %v877 = vpop.f32.mrf.mxu0
        %v878 = vadd.f32 0.0, %v877
        %879 = vmatmul.bf16.gmra.mxu0 %v803
        %v880 = vpop.f32.mrf.mxu0
        %v881 = vadd.f32 0.0, %v880
        %v882 = vpop.f32.mrf.mxu0
        %v883 = vadd.f32 0.0, %v882
        %884 = vdwg.mxu0
        %v885 = vadd.f32 %v750, %v866
        %v886 = vadd.f32 %v751, %v868
        %v887 = vadd.f32 %v752, %v871
        %v888 = vadd.f32 %v753, %v873
        %v889 = vadd.f32 %v754, %v876
        %v890 = vadd.f32 %v755, %v878
        %v891 = vadd.f32 %v756, %v881
        %v892 = vadd.f32 %v757, %v883
        %v893 = vld [vmem:[%s758] sm:$0xf]
        %v894 = vld [vmem:[%s758 + $0x4] sm:$0x1]
        %v895 = vld [vmem:[%s758 + $0x8] sm:$0xf]
        %v896 = vld [vmem:[%s758 + $0xc] sm:$0x1]
        %v897 = vld [vmem:[%s758 + $0x10] sm:$0xf]
        %v898 = vld [vmem:[%s758 + $0x14] sm:$0x1]
        %v899 = vld [vmem:[%s758 + $0x18] sm:$0xf]
        %v900 = vld [vmem:[%s758 + $0x1c] sm:$0x1]
        %v901 = vld [vmem:[%s758 + $0x20] sm:$0xf]
        %v902 = vld [vmem:[%s758 + $0x24] sm:$0x1]
        %v903 = vld [vmem:[%s758 + $0x28] sm:$0xf]
        %v904 = vld [vmem:[%s758 + $0x2c] sm:$0x1]
        %v905 = vld [vmem:[%s758 + $0x30] sm:$0xf]
        %v906 = vld [vmem:[%s758 + $0x34] sm:$0x1]
        %v907 = vld [vmem:[%s758 + $0x38] sm:$0xf]
        %v908 = vld [vmem:[%s758 + $0x3c] sm:$0x1]
        %v910 = vshrl.u32 %v893, 16
        %v912 = vrot.slane %v910, 4
        %v913 = vshll.u32 %v893, 16
        %v915 = vrot.slane %v913, 5
        %v916 = vor.u32 %v912, %v915
        %v917 = vrot.slane %v916, 4
        %v919 = vshll.u32 %v894, 16
        %v921 = vrot.slane %v919, 5
        %v922 = vsel %vm257, %v917, %v921
        %v924 = vshrl.u32 %v895, 16
        %v926 = vrot.slane %v924, 4
        %v927 = vshll.u32 %v895, 16
        %v929 = vrot.slane %v927, 5
        %v930 = vor.u32 %v926, %v929
        %v931 = vrot.slane %v930, 4
        %v933 = vshll.u32 %v896, 16
        %v935 = vrot.slane %v933, 5
        %v936 = vsel %vm257, %v931, %v935
        %v938 = vshrl.u32 %v897, 16
        %v940 = vrot.slane %v938, 4
        %v941 = vshll.u32 %v897, 16
        %v943 = vrot.slane %v941, 5
        %v944 = vor.u32 %v940, %v943
        %v945 = vrot.slane %v944, 4
        %v947 = vshll.u32 %v898, 16
        %v949 = vrot.slane %v947, 5
        %v950 = vsel %vm257, %v945, %v949
        %v952 = vshrl.u32 %v899, 16
        %v954 = vrot.slane %v952, 4
        %v955 = vshll.u32 %v899, 16
        %v957 = vrot.slane %v955, 5
        %v958 = vor.u32 %v954, %v957
        %v959 = vrot.slane %v958, 4
        %v961 = vshll.u32 %v900, 16
        %v963 = vrot.slane %v961, 5
        %v964 = vsel %vm257, %v959, %v963
        %v966 = vshrl.u32 %v901, 16
        %v968 = vrot.slane %v966, 4
        %v969 = vshll.u32 %v901, 16
        %v971 = vrot.slane %v969, 5
        %v972 = vor.u32 %v968, %v971
        %v973 = vrot.slane %v972, 4
        %v975 = vshll.u32 %v902, 16
        %v977 = vrot.slane %v975, 5
        %v978 = vsel %vm257, %v973, %v977
        %v980 = vshrl.u32 %v903, 16
        %v982 = vrot.slane %v980, 4
        %v983 = vshll.u32 %v903, 16
        %v985 = vrot.slane %v983, 5
        %v986 = vor.u32 %v982, %v985
        %v987 = vrot.slane %v986, 4
        %v989 = vshll.u32 %v904, 16
        %v991 = vrot.slane %v989, 5
        %v992 = vsel %vm257, %v987, %v991
        %v994 = vshrl.u32 %v905, 16
        %v996 = vrot.slane %v994, 4
        %v997 = vshll.u32 %v905, 16
        %v999 = vrot.slane %v997, 5
        %v1000 = vor.u32 %v996, %v999
        %v1001 = vrot.slane %v1000, 4
        %v1003 = vshll.u32 %v906, 16
        %v1005 = vrot.slane %v1003, 5
        %v1006 = vsel %vm257, %v1001, %v1005
        %v1008 = vshrl.u32 %v907, 16
        %v1010 = vrot.slane %v1008, 4
        %v1011 = vshll.u32 %v907, 16
        %v1013 = vrot.slane %v1011, 5
        %v1014 = vor.u32 %v1010, %v1013
        %v1015 = vrot.slane %v1014, 4
        %v1017 = vshll.u32 %v908, 16
        %v1019 = vrot.slane %v1017, 5
        %v1020 = vsel %vm257, %v1015, %v1019
        %s1021 = scalar_lea.vmem %s1, 256
        %v1022 = vld [vmem:[%s1021] sm:$0xf]
        %v1023 = vld [vmem:[%s1021 + $0x4] sm:$0xf]
        %v1024 = vld [vmem:[%s1021 + $0x8] sm:$0xf]
        %v1025 = vld [vmem:[%s1021 + $0xc] sm:$0xf]
        %v1026 = vld [vmem:[%s1021 + $0x10] sm:$0xf]
        %v1027 = vld [vmem:[%s1021 + $0x14] sm:$0xf]
        %v1028 = vld [vmem:[%s1021 + $0x18] sm:$0xf]
        %v1029 = vld [vmem:[%s1021 + $0x1c] sm:$0xf]
        %v1030 = vld [vmem:[%s1021 + $0x20] sm:$0xf]
        %v1031 = vld [vmem:[%s1021 + $0x24] sm:$0xf]
        %v1032 = vld [vmem:[%s1021 + $0x28] sm:$0xf]
        %v1033 = vld [vmem:[%s1021 + $0x2c] sm:$0xf]
        %v1034 = vld [vmem:[%s1021 + $0x30] sm:$0xf]
        %v1035 = vld [vmem:[%s1021 + $0x34] sm:$0xf]
        %v1036 = vld [vmem:[%s1021 + $0x38] sm:$0xf]
        %v1037 = vld [vmem:[%s1021 + $0x3c] sm:$0xf]
        %v1038 = vunpack.c.l.b16 %v922
        %v1039 = vunpack.c.l.b16 %v936
        %v1040 = vunpack.c.l.b16 %v950
        %v1041 = vunpack.c.l.b16 %v964
        %v1042 = vunpack.c.l.b16 %v978
        %v1043 = vunpack.c.l.b16 %v992
        %v1044 = vunpack.c.l.b16 %v1006
        %v1045 = vunpack.c.l.b16 %v1020
        %v1046 = vpack.c.b16 %v1039, %v1038
        %v1047 = vpack.c.b16 %v1041, %v1040
        %v1048 = vpack.c.b16 %v1043, %v1042
        %v1049 = vpack.c.b16 %v1045, %v1044
        %v1070 = vunpack.c.l.b16 %v1022
        %v1071 = vunpack.c.l.b16 %v1023
        %v1072 = vunpack.c.l.b16 %v1024
        %v1073 = vunpack.c.l.b16 %v1025
        %v1074 = vunpack.c.l.b16 %v1026
        %v1075 = vunpack.c.l.b16 %v1027
        %v1076 = vunpack.c.l.b16 %v1028
        %v1077 = vunpack.c.l.b16 %v1029
        %v1078 = vunpack.c.l.b16 %v1030
        %v1079 = vunpack.c.l.b16 %v1031
        %v1080 = vunpack.c.l.b16 %v1032
        %v1081 = vunpack.c.l.b16 %v1033
        %v1082 = vunpack.c.l.b16 %v1034
        %v1083 = vunpack.c.l.b16 %v1035
        %v1084 = vunpack.c.l.b16 %v1036
        %v1085 = vunpack.c.l.b16 %v1037
        %v1086 = vpack.c.b16 %v1071, %v1070
        %v1087 = vpack.c.b16 %v1073, %v1072
        %v1088 = vpack.c.b16 %v1075, %v1074
        %v1089 = vpack.c.b16 %v1077, %v1076
        %v1090 = vpack.c.b16 %v1079, %v1078
        %v1091 = vpack.c.b16 %v1081, %v1080
        %v1092 = vpack.c.b16 %v1083, %v1082
        %v1093 = vpack.c.b16 %v1085, %v1084
        %1102 = vmatpush.bf16.msra.mxu0 %v1093
        %1103 = vmatpush.bf16.msra.mxu0 %v1092
        %1104 = vmatpush.bf16.msra.mxu0 %v1091
        %1105 = vmatpush.bf16.msra.mxu0 %v1090
        %1106 = vmatpush.bf16.msra.mxu0 %v1089
        %1107 = vmatpush.bf16.msra.mxu0 %v1088
        %1108 = vmatpush.bf16.msra.mxu0 %v1087
        %1109 = vmatpush.bf16.msra.mxu0 %v1086
        %1110 = vmatmul.bf16.gmra.mxu0 %v1046
        %v1111 = vpop.f32.mrf.mxu0
        %v1112 = vadd.f32 0.0, %v1111
        %v1113 = vpop.f32.mrf.mxu0
        %v1114 = vadd.f32 0.0, %v1113
        %1115 = vmatmul.bf16.gmra.mxu0 %v1047
        %v1116 = vpop.f32.mrf.mxu0
        %v1117 = vadd.f32 0.0, %v1116
        %v1118 = vpop.f32.mrf.mxu0
        %v1119 = vadd.f32 0.0, %v1118
        %1120 = vmatmul.bf16.gmra.mxu0 %v1048
        %v1121 = vpop.f32.mrf.mxu0
        %v1122 = vadd.f32 0.0, %v1121
        %v1123 = vpop.f32.mrf.mxu0
        %v1124 = vadd.f32 0.0, %v1123
        %1125 = vmatmul.bf16.gmra.mxu0 %v1049
        %v1126 = vpop.f32.mrf.mxu0
        %v1127 = vadd.f32 0.0, %v1126
        %v1128 = vpop.f32.mrf.mxu0
        %v1129 = vadd.f32 0.0, %v1128
        %1130 = vdwg.mxu0
        %v1131 = vadd.f32 %v885, %v1112
        %v1132 = vadd.f32 %v886, %v1114
        %v1133 = vadd.f32 %v887, %v1117
        %v1134 = vadd.f32 %v888, %v1119
        %v1135 = vadd.f32 %v889, %v1122
        %v1136 = vadd.f32 %v890, %v1124
        %v1137 = vadd.f32 %v891, %v1127
        %v1138 = vadd.f32 %v892, %v1129
        %v1139 = vld [vmem:[%s758] sm:$0xe]
        %v1140 = vld [vmem:[%s758 + $0x8] sm:$0xe]
        %v1141 = vld [vmem:[%s758 + $0x10] sm:$0xe]
        %v1142 = vld [vmem:[%s758 + $0x18] sm:$0xe]
        %v1143 = vld [vmem:[%s758 + $0x20] sm:$0xe]
        %v1144 = vld [vmem:[%s758 + $0x28] sm:$0xe]
        %v1145 = vld [vmem:[%s758 + $0x30] sm:$0xe]
        %v1146 = vld [vmem:[%s758 + $0x38] sm:$0xe]
        %v1163 = vrot.slane %v1139, 5
        %v1164 = vrot.slane %v1163, 4
        %v1165 = vrot.slane %v894, 5
        %v1166 = vsel %vm607, %v1164, %v1165
        %v1167 = vrot.slane %v1140, 5
        %v1168 = vrot.slane %v1167, 4
        %v1169 = vrot.slane %v896, 5
        %v1170 = vsel %vm607, %v1168, %v1169
        %v1171 = vrot.slane %v1141, 5
        %v1172 = vrot.slane %v1171, 4
        %v1173 = vrot.slane %v898, 5
        %v1174 = vsel %vm607, %v1172, %v1173
        %v1175 = vrot.slane %v1142, 5
        %v1176 = vrot.slane %v1175, 4
        %v1177 = vrot.slane %v900, 5
        %v1178 = vsel %vm607, %v1176, %v1177
        %v1179 = vrot.slane %v1143, 5
        %v1180 = vrot.slane %v1179, 4
        %v1181 = vrot.slane %v902, 5
        %v1182 = vsel %vm607, %v1180, %v1181
        %v1183 = vrot.slane %v1144, 5
        %v1184 = vrot.slane %v1183, 4
        %v1185 = vrot.slane %v904, 5
        %v1186 = vsel %vm607, %v1184, %v1185
        %v1187 = vrot.slane %v1145, 5
        %v1188 = vrot.slane %v1187, 4
        %v1189 = vrot.slane %v906, 5
        %v1190 = vsel %vm607, %v1188, %v1189
        %v1191 = vrot.slane %v1146, 5
        %v1192 = vrot.slane %v1191, 4
        %v1193 = vrot.slane %v908, 5
        %v1194 = vsel %vm607, %v1192, %v1193
        %s1195 = scalar_lea.vmem %s1, 320
        %v1196 = vld [vmem:[%s1195] sm:$0xf]
        %v1197 = vld [vmem:[%s1195 + $0x4] sm:$0xf]
        %v1198 = vld [vmem:[%s1195 + $0x8] sm:$0xf]
        %v1199 = vld [vmem:[%s1195 + $0xc] sm:$0xf]
        %v1200 = vld [vmem:[%s1195 + $0x10] sm:$0xf]
        %v1201 = vld [vmem:[%s1195 + $0x14] sm:$0xf]
        %v1202 = vld [vmem:[%s1195 + $0x18] sm:$0xf]
        %v1203 = vld [vmem:[%s1195 + $0x1c] sm:$0xf]
        %v1204 = vld [vmem:[%s1195 + $0x20] sm:$0xf]
        %v1205 = vld [vmem:[%s1195 + $0x24] sm:$0xf]
        %v1206 = vld [vmem:[%s1195 + $0x28] sm:$0xf]
        %v1207 = vld [vmem:[%s1195 + $0x2c] sm:$0xf]
        %v1208 = vld [vmem:[%s1195 + $0x30] sm:$0xf]
        %v1209 = vld [vmem:[%s1195 + $0x34] sm:$0xf]
        %v1210 = vld [vmem:[%s1195 + $0x38] sm:$0xf]
        %v1211 = vld [vmem:[%s1195 + $0x3c] sm:$0xf]
        %v1212 = vunpack.c.l.b16 %v1166
        %v1213 = vunpack.c.l.b16 %v1170
        %v1214 = vunpack.c.l.b16 %v1174
        %v1215 = vunpack.c.l.b16 %v1178
        %v1216 = vunpack.c.l.b16 %v1182
        %v1217 = vunpack.c.l.b16 %v1186
        %v1218 = vunpack.c.l.b16 %v1190
        %v1219 = vunpack.c.l.b16 %v1194
        %v1220 = vpack.c.b16 %v1213, %v1212
        %v1221 = vpack.c.b16 %v1215, %v1214
        %v1222 = vpack.c.b16 %v1217, %v1216
        %v1223 = vpack.c.b16 %v1219, %v1218
        %v1244 = vunpack.c.l.b16 %v1196
        %v1245 = vunpack.c.l.b16 %v1197
        %v1246 = vunpack.c.l.b16 %v1198
        %v1247 = vunpack.c.l.b16 %v1199
        %v1248 = vunpack.c.l.b16 %v1200
        %v1249 = vunpack.c.l.b16 %v1201
        %v1250 = vunpack.c.l.b16 %v1202
        %v1251 = vunpack.c.l.b16 %v1203
        %v1252 = vunpack.c.l.b16 %v1204
        %v1253 = vunpack.c.l.b16 %v1205
        %v1254 = vunpack.c.l.b16 %v1206
        %v1255 = vunpack.c.l.b16 %v1207
        %v1256 = vunpack.c.l.b16 %v1208
        %v1257 = vunpack.c.l.b16 %v1209
        %v1258 = vunpack.c.l.b16 %v1210
        %v1259 = vunpack.c.l.b16 %v1211
        %v1260 = vpack.c.b16 %v1245, %v1244
        %v1261 = vpack.c.b16 %v1247, %v1246
        %v1262 = vpack.c.b16 %v1249, %v1248
        %v1263 = vpack.c.b16 %v1251, %v1250
        %v1264 = vpack.c.b16 %v1253, %v1252
        %v1265 = vpack.c.b16 %v1255, %v1254
        %v1266 = vpack.c.b16 %v1257, %v1256
        %v1267 = vpack.c.b16 %v1259, %v1258
        %1276 = vmatpush.bf16.msra.mxu0 %v1267
        %1277 = vmatpush.bf16.msra.mxu0 %v1266
        %1278 = vmatpush.bf16.msra.mxu0 %v1265
        %1279 = vmatpush.bf16.msra.mxu0 %v1264
        %1280 = vmatpush.bf16.msra.mxu0 %v1263
        %1281 = vmatpush.bf16.msra.mxu0 %v1262
        %1282 = vmatpush.bf16.msra.mxu0 %v1261
        %1283 = vmatpush.bf16.msra.mxu0 %v1260
        %1284 = vmatmul.bf16.gmra.mxu0 %v1220
        %v1285 = vpop.f32.mrf.mxu0
        %v1286 = vadd.f32 0.0, %v1285
        %v1287 = vpop.f32.mrf.mxu0
        %v1288 = vadd.f32 0.0, %v1287
        %1289 = vmatmul.bf16.gmra.mxu0 %v1221
        %v1290 = vpop.f32.mrf.mxu0
        %v1291 = vadd.f32 0.0, %v1290
        %v1292 = vpop.f32.mrf.mxu0
        %v1293 = vadd.f32 0.0, %v1292
        %1294 = vmatmul.bf16.gmra.mxu0 %v1222
        %v1295 = vpop.f32.mrf.mxu0
        %v1296 = vadd.f32 0.0, %v1295
        %v1297 = vpop.f32.mrf.mxu0
        %v1298 = vadd.f32 0.0, %v1297
        %1299 = vmatmul.bf16.gmra.mxu0 %v1223
        %v1300 = vpop.f32.mrf.mxu0
        %v1301 = vadd.f32 0.0, %v1300
        %v1302 = vpop.f32.mrf.mxu0
        %v1303 = vadd.f32 0.0, %v1302
        %1304 = vdwg.mxu0
        %v1305 = vadd.f32 %v1131, %v1286
        %v1306 = vadd.f32 %v1132, %v1288
        %v1307 = vadd.f32 %v1133, %v1291
        %v1308 = vadd.f32 %v1134, %v1293
        %v1309 = vadd.f32 %v1135, %v1296
        %v1310 = vadd.f32 %v1136, %v1298
        %v1311 = vadd.f32 %v1137, %v1301
        %v1312 = vadd.f32 %v1138, %v1303
        %s1313 = scalar_lea.vmem %s222, 16
        %v1314 = vld [vmem:[%s1313] sm:$0xf]
        %v1315 = vld [vmem:[%s1313 + $0x8] sm:$0xf]
        %v1316 = vld [vmem:[%s1313 + $0x10] sm:$0xf]
        %v1317 = vld [vmem:[%s1313 + $0x18] sm:$0xf]
        %v1318 = vld [vmem:[%s1313 + $0x20] sm:$0xf]
        %v1319 = vld [vmem:[%s1313 + $0x28] sm:$0xf]
        %v1320 = vld [vmem:[%s1313 + $0x30] sm:$0xf]
        %v1321 = vld [vmem:[%s1313 + $0x38] sm:$0xf]
        %s1322 = scalar_lea.vmem %s1, 384
        %v1323 = vld [vmem:[%s1322] sm:$0xf]
        %v1324 = vld [vmem:[%s1322 + $0x4] sm:$0xf]
        %v1325 = vld [vmem:[%s1322 + $0x8] sm:$0xf]
        %v1326 = vld [vmem:[%s1322 + $0xc] sm:$0xf]
        %v1327 = vld [vmem:[%s1322 + $0x10] sm:$0xf]
        %v1328 = vld [vmem:[%s1322 + $0x14] sm:$0xf]
        %v1329 = vld [vmem:[%s1322 + $0x18] sm:$0xf]
        %v1330 = vld [vmem:[%s1322 + $0x1c] sm:$0xf]
        %v1331 = vld [vmem:[%s1322 + $0x20] sm:$0xf]
        %v1332 = vld [vmem:[%s1322 + $0x24] sm:$0xf]
        %v1333 = vld [vmem:[%s1322 + $0x28] sm:$0xf]
        %v1334 = vld [vmem:[%s1322 + $0x2c] sm:$0xf]
        %v1335 = vld [vmem:[%s1322 + $0x30] sm:$0xf]
        %v1336 = vld [vmem:[%s1322 + $0x34] sm:$0xf]
        %v1337 = vld [vmem:[%s1322 + $0x38] sm:$0xf]
        %v1338 = vld [vmem:[%s1322 + $0x3c] sm:$0xf]
        %v1347 = vunpack.c.l.b16 %v1314
        %v1348 = vunpack.c.l.b16 %v1315
        %v1349 = vunpack.c.l.b16 %v1316
        %v1350 = vunpack.c.l.b16 %v1317
        %v1351 = vunpack.c.l.b16 %v1318
        %v1352 = vunpack.c.l.b16 %v1319
        %v1353 = vunpack.c.l.b16 %v1320
        %v1354 = vunpack.c.l.b16 %v1321
        %v1355 = vpack.c.b16 %v1348, %v1347
        %v1356 = vpack.c.b16 %v1350, %v1349
        %v1357 = vpack.c.b16 %v1352, %v1351
        %v1358 = vpack.c.b16 %v1354, %v1353
        %v1379 = vunpack.c.l.b16 %v1323
        %v1380 = vunpack.c.l.b16 %v1324
        %v1381 = vunpack.c.l.b16 %v1325
        %v1382 = vunpack.c.l.b16 %v1326
        %v1383 = vunpack.c.l.b16 %v1327
        %v1384 = vunpack.c.l.b16 %v1328
        %v1385 = vunpack.c.l.b16 %v1329
        %v1386 = vunpack.c.l.b16 %v1330
        %v1387 = vunpack.c.l.b16 %v1331
        %v1388 = vunpack.c.l.b16 %v1332
        %v1389 = vunpack.c.l.b16 %v1333
        %v1390 = vunpack.c.l.b16 %v1334
        %v1391 = vunpack.c.l.b16 %v1335
        %v1392 = vunpack.c.l.b16 %v1336
        %v1393 = vunpack.c.l.b16 %v1337
        %v1394 = vunpack.c.l.b16 %v1338
        %v1395 = vpack.c.b16 %v1380, %v1379
        %v1396 = vpack.c.b16 %v1382, %v1381
        %v1397 = vpack.c.b16 %v1384, %v1383
        %v1398 = vpack.c.b16 %v1386, %v1385
        %v1399 = vpack.c.b16 %v1388, %v1387
        %v1400 = vpack.c.b16 %v1390, %v1389
        %v1401 = vpack.c.b16 %v1392, %v1391
        %v1402 = vpack.c.b16 %v1394, %v1393
        %1411 = vmatpush.bf16.msra.mxu0 %v1402
        %1412 = vmatpush.bf16.msra.mxu0 %v1401
        %1413 = vmatpush.bf16.msra.mxu0 %v1400
        %1414 = vmatpush.bf16.msra.mxu0 %v1399
        %1415 = vmatpush.bf16.msra.mxu0 %v1398
        %1416 = vmatpush.bf16.msra.mxu0 %v1397
        %1417 = vmatpush.bf16.msra.mxu0 %v1396
        %1418 = vmatpush.bf16.msra.mxu0 %v1395
        %1419 = vmatmul.bf16.gmra.mxu0 %v1355
        %v1420 = vpop.f32.mrf.mxu0
        %v1421 = vadd.f32 0.0, %v1420
        %v1422 = vpop.f32.mrf.mxu0
        %v1423 = vadd.f32 0.0, %v1422
        %1424 = vmatmul.bf16.gmra.mxu0 %v1356
        %v1425 = vpop.f32.mrf.mxu0
        %v1426 = vadd.f32 0.0, %v1425
        %v1427 = vpop.f32.mrf.mxu0
        %v1428 = vadd.f32 0.0, %v1427
        %1429 = vmatmul.bf16.gmra.mxu0 %v1357
        %v1430 = vpop.f32.mrf.mxu0
        %v1431 = vadd.f32 0.0, %v1430
        %v1432 = vpop.f32.mrf.mxu0
        %v1433 = vadd.f32 0.0, %v1432
        %1434 = vmatmul.bf16.gmra.mxu0 %v1358
        %v1435 = vpop.f32.mrf.mxu0
        %v1436 = vadd.f32 0.0, %v1435
        %v1437 = vpop.f32.mrf.mxu0
        %v1438 = vadd.f32 0.0, %v1437
        %1439 = vdwg.mxu0
        %v1440 = vadd.f32 %v1305, %v1421
        %v1441 = vadd.f32 %v1306, %v1423
        %v1442 = vadd.f32 %v1307, %v1426
        %v1443 = vadd.f32 %v1308, %v1428
        %v1444 = vadd.f32 %v1309, %v1431
        %v1445 = vadd.f32 %v1310, %v1433
        %v1446 = vadd.f32 %v1311, %v1436
        %v1447 = vadd.f32 %v1312, %v1438
        %v1448 = vld [vmem:[%s1313] sm:$0xf]
        %v1449 = vld [vmem:[%s1313 + $0x4] sm:$0x1]
        %v1450 = vld [vmem:[%s1313 + $0x8] sm:$0xf]
        %v1451 = vld [vmem:[%s1313 + $0xc] sm:$0x1]
        %v1452 = vld [vmem:[%s1313 + $0x10] sm:$0xf]
        %v1453 = vld [vmem:[%s1313 + $0x14] sm:$0x1]
        %v1454 = vld [vmem:[%s1313 + $0x18] sm:$0xf]
        %v1455 = vld [vmem:[%s1313 + $0x1c] sm:$0x1]
        %v1456 = vld [vmem:[%s1313 + $0x20] sm:$0xf]
        %v1457 = vld [vmem:[%s1313 + $0x24] sm:$0x1]
        %v1458 = vld [vmem:[%s1313 + $0x28] sm:$0xf]
        %v1459 = vld [vmem:[%s1313 + $0x2c] sm:$0x1]
        %v1460 = vld [vmem:[%s1313 + $0x30] sm:$0xf]
        %v1461 = vld [vmem:[%s1313 + $0x34] sm:$0x1]
        %v1462 = vld [vmem:[%s1313 + $0x38] sm:$0xf]
        %v1463 = vld [vmem:[%s1313 + $0x3c] sm:$0x1]
        %v1465 = vshrl.u32 %v1448, 16
        %v1467 = vrot.slane %v1465, 4
        %v1468 = vshll.u32 %v1448, 16
        %v1470 = vrot.slane %v1468, 5
        %v1471 = vor.u32 %v1467, %v1470
        %v1472 = vrot.slane %v1471, 4
        %v1474 = vshll.u32 %v1449, 16
        %v1476 = vrot.slane %v1474, 5
        %v1477 = vsel %vm257, %v1472, %v1476
        %v1479 = vshrl.u32 %v1450, 16
        %v1481 = vrot.slane %v1479, 4
        %v1482 = vshll.u32 %v1450, 16
        %v1484 = vrot.slane %v1482, 5
        %v1485 = vor.u32 %v1481, %v1484
        %v1486 = vrot.slane %v1485, 4
        %v1488 = vshll.u32 %v1451, 16
        %v1490 = vrot.slane %v1488, 5
        %v1491 = vsel %vm257, %v1486, %v1490
        %v1493 = vshrl.u32 %v1452, 16
        %v1495 = vrot.slane %v1493, 4
        %v1496 = vshll.u32 %v1452, 16
        %v1498 = vrot.slane %v1496, 5
        %v1499 = vor.u32 %v1495, %v1498
        %v1500 = vrot.slane %v1499, 4
        %v1502 = vshll.u32 %v1453, 16
        %v1504 = vrot.slane %v1502, 5
        %v1505 = vsel %vm257, %v1500, %v1504
        %v1507 = vshrl.u32 %v1454, 16
        %v1509 = vrot.slane %v1507, 4
        %v1510 = vshll.u32 %v1454, 16
        %v1512 = vrot.slane %v1510, 5
        %v1513 = vor.u32 %v1509, %v1512
        %v1514 = vrot.slane %v1513, 4
        %v1516 = vshll.u32 %v1455, 16
        %v1518 = vrot.slane %v1516, 5
        %v1519 = vsel %vm257, %v1514, %v1518
        %v1521 = vshrl.u32 %v1456, 16
        %v1523 = vrot.slane %v1521, 4
        %v1524 = vshll.u32 %v1456, 16
        %v1526 = vrot.slane %v1524, 5
        %v1527 = vor.u32 %v1523, %v1526
        %v1528 = vrot.slane %v1527, 4
        %v1530 = vshll.u32 %v1457, 16
        %v1532 = vrot.slane %v1530, 5
        %v1533 = vsel %vm257, %v1528, %v1532
        %v1535 = vshrl.u32 %v1458, 16
        %v1537 = vrot.slane %v1535, 4
        %v1538 = vshll.u32 %v1458, 16
        %v1540 = vrot.slane %v1538, 5
        %v1541 = vor.u32 %v1537, %v1540
        %v1542 = vrot.slane %v1541, 4
        %v1544 = vshll.u32 %v1459, 16
        %v1546 = vrot.slane %v1544, 5
        %v1547 = vsel %vm257, %v1542, %v1546
        %v1549 = vshrl.u32 %v1460, 16
        %v1551 = vrot.slane %v1549, 4
        %v1552 = vshll.u32 %v1460, 16
        %v1554 = vrot.slane %v1552, 5
        %v1555 = vor.u32 %v1551, %v1554
        %v1556 = vrot.slane %v1555, 4
        %v1558 = vshll.u32 %v1461, 16
        %v1560 = vrot.slane %v1558, 5
        %v1561 = vsel %vm257, %v1556, %v1560
        %v1563 = vshrl.u32 %v1462, 16
        %v1565 = vrot.slane %v1563, 4
        %v1566 = vshll.u32 %v1462, 16
        %v1568 = vrot.slane %v1566, 5
        %v1569 = vor.u32 %v1565, %v1568
        %v1570 = vrot.slane %v1569, 4
        %v1572 = vshll.u32 %v1463, 16
        %v1574 = vrot.slane %v1572, 5
        %v1575 = vsel %vm257, %v1570, %v1574
        %s1576 = scalar_lea.vmem %s1, 448
        %v1577 = vld [vmem:[%s1576] sm:$0xf]
        %v1578 = vld [vmem:[%s1576 + $0x4] sm:$0xf]
        %v1579 = vld [vmem:[%s1576 + $0x8] sm:$0xf]
        %v1580 = vld [vmem:[%s1576 + $0xc] sm:$0xf]
        %v1581 = vld [vmem:[%s1576 + $0x10] sm:$0xf]
        %v1582 = vld [vmem:[%s1576 + $0x14] sm:$0xf]
        %v1583 = vld [vmem:[%s1576 + $0x18] sm:$0xf]
        %v1584 = vld [vmem:[%s1576 + $0x1c] sm:$0xf]
        %v1585 = vld [vmem:[%s1576 + $0x20] sm:$0xf]
        %v1586 = vld [vmem:[%s1576 + $0x24] sm:$0xf]
        %v1587 = vld [vmem:[%s1576 + $0x28] sm:$0xf]
        %v1588 = vld [vmem:[%s1576 + $0x2c] sm:$0xf]
        %v1589 = vld [vmem:[%s1576 + $0x30] sm:$0xf]
        %v1590 = vld [vmem:[%s1576 + $0x34] sm:$0xf]
        %v1591 = vld [vmem:[%s1576 + $0x38] sm:$0xf]
        %v1592 = vld [vmem:[%s1576 + $0x3c] sm:$0xf]
        %v1593 = vunpack.c.l.b16 %v1477
        %v1594 = vunpack.c.l.b16 %v1491
        %v1595 = vunpack.c.l.b16 %v1505
        %v1596 = vunpack.c.l.b16 %v1519
        %v1597 = vunpack.c.l.b16 %v1533
        %v1598 = vunpack.c.l.b16 %v1547
        %v1599 = vunpack.c.l.b16 %v1561
        %v1600 = vunpack.c.l.b16 %v1575
        %v1601 = vpack.c.b16 %v1594, %v1593
        %v1602 = vpack.c.b16 %v1596, %v1595
        %v1603 = vpack.c.b16 %v1598, %v1597
        %v1604 = vpack.c.b16 %v1600, %v1599
        %v1625 = vunpack.c.l.b16 %v1577
        %v1626 = vunpack.c.l.b16 %v1578
        %v1627 = vunpack.c.l.b16 %v1579
        %v1628 = vunpack.c.l.b16 %v1580
        %v1629 = vunpack.c.l.b16 %v1581
        %v1630 = vunpack.c.l.b16 %v1582
        %v1631 = vunpack.c.l.b16 %v1583
        %v1632 = vunpack.c.l.b16 %v1584
        %v1633 = vunpack.c.l.b16 %v1585
        %v1634 = vunpack.c.l.b16 %v1586
        %v1635 = vunpack.c.l.b16 %v1587
        %v1636 = vunpack.c.l.b16 %v1588
        %v1637 = vunpack.c.l.b16 %v1589
        %v1638 = vunpack.c.l.b16 %v1590
        %v1639 = vunpack.c.l.b16 %v1591
        %v1640 = vunpack.c.l.b16 %v1592
        %v1641 = vpack.c.b16 %v1626, %v1625
        %v1642 = vpack.c.b16 %v1628, %v1627
        %v1643 = vpack.c.b16 %v1630, %v1629
        %v1644 = vpack.c.b16 %v1632, %v1631
        %v1645 = vpack.c.b16 %v1634, %v1633
        %v1646 = vpack.c.b16 %v1636, %v1635
        %v1647 = vpack.c.b16 %v1638, %v1637
        %v1648 = vpack.c.b16 %v1640, %v1639
        %1657 = vmatpush.bf16.msra.mxu0 %v1648
        %1658 = vmatpush.bf16.msra.mxu0 %v1647
        %1659 = vmatpush.bf16.msra.mxu0 %v1646
        %1660 = vmatpush.bf16.msra.mxu0 %v1645
        %1661 = vmatpush.bf16.msra.mxu0 %v1644
        %1662 = vmatpush.bf16.msra.mxu0 %v1643
        %1663 = vmatpush.bf16.msra.mxu0 %v1642
        %1664 = vmatpush.bf16.msra.mxu0 %v1641
        %1665 = vmatmul.bf16.gmra.mxu0 %v1601
        %v1666 = vpop.f32.mrf.mxu0
        %v1667 = vadd.f32 0.0, %v1666
        %v1668 = vpop.f32.mrf.mxu0
        %v1669 = vadd.f32 0.0, %v1668
        %1670 = vmatmul.bf16.gmra.mxu0 %v1602
        %v1671 = vpop.f32.mrf.mxu0
        %v1672 = vadd.f32 0.0, %v1671
        %v1673 = vpop.f32.mrf.mxu0
        %v1674 = vadd.f32 0.0, %v1673
        %1675 = vmatmul.bf16.gmra.mxu0 %v1603
        %v1676 = vpop.f32.mrf.mxu0
        %v1677 = vadd.f32 0.0, %v1676
        %v1678 = vpop.f32.mrf.mxu0
        %v1679 = vadd.f32 0.0, %v1678
        %1680 = vmatmul.bf16.gmra.mxu0 %v1604
        %v1681 = vpop.f32.mrf.mxu0
        %v1682 = vadd.f32 0.0, %v1681
        %v1683 = vpop.f32.mrf.mxu0
        %v1684 = vadd.f32 0.0, %v1683
        %1685 = vdwg.mxu0
        %v1686 = vadd.f32 %v1440, %v1667
        %v1687 = vadd.f32 %v1441, %v1669
        %v1688 = vadd.f32 %v1442, %v1672
        %v1689 = vadd.f32 %v1443, %v1674
        %v1690 = vadd.f32 %v1444, %v1677
        %v1691 = vadd.f32 %v1445, %v1679
        %v1692 = vadd.f32 %v1446, %v1682
        %v1693 = vadd.f32 %v1447, %v1684
        %v1694 = vld [vmem:[%s1313] sm:$0xe]
        %v1695 = vld [vmem:[%s1313 + $0x8] sm:$0xe]
        %v1696 = vld [vmem:[%s1313 + $0x10] sm:$0xe]
        %v1697 = vld [vmem:[%s1313 + $0x18] sm:$0xe]
        %v1698 = vld [vmem:[%s1313 + $0x20] sm:$0xe]
        %v1699 = vld [vmem:[%s1313 + $0x28] sm:$0xe]
        %v1700 = vld [vmem:[%s1313 + $0x30] sm:$0xe]
        %v1701 = vld [vmem:[%s1313 + $0x38] sm:$0xe]
        %v1718 = vrot.slane %v1694, 5
        %v1719 = vrot.slane %v1718, 4
        %v1720 = vrot.slane %v1449, 5
        %v1721 = vsel %vm607, %v1719, %v1720
        %v1722 = vrot.slane %v1695, 5
        %v1723 = vrot.slane %v1722, 4
        %v1724 = vrot.slane %v1451, 5
        %v1725 = vsel %vm607, %v1723, %v1724
        %v1726 = vrot.slane %v1696, 5
        %v1727 = vrot.slane %v1726, 4
        %v1728 = vrot.slane %v1453, 5
        %v1729 = vsel %vm607, %v1727, %v1728
        %v1730 = vrot.slane %v1697, 5
        %v1731 = vrot.slane %v1730, 4
        %v1732 = vrot.slane %v1455, 5
        %v1733 = vsel %vm607, %v1731, %v1732
        %v1734 = vrot.slane %v1698, 5
        %v1735 = vrot.slane %v1734, 4
        %v1736 = vrot.slane %v1457, 5
        %v1737 = vsel %vm607, %v1735, %v1736
        %v1738 = vrot.slane %v1699, 5
        %v1739 = vrot.slane %v1738, 4
        %v1740 = vrot.slane %v1459, 5
        %v1741 = vsel %vm607, %v1739, %v1740
        %v1742 = vrot.slane %v1700, 5
        %v1743 = vrot.slane %v1742, 4
        %v1744 = vrot.slane %v1461, 5
        %v1745 = vsel %vm607, %v1743, %v1744
        %v1746 = vrot.slane %v1701, 5
        %v1747 = vrot.slane %v1746, 4
        %v1748 = vrot.slane %v1463, 5
        %v1749 = vsel %vm607, %v1747, %v1748
        %s1750 = scalar_lea.vmem %s1, 512
        %v1751 = vld [vmem:[%s1750] sm:$0xf]
        %v1752 = vld [vmem:[%s1750 + $0x4] sm:$0xf]
        %v1753 = vld [vmem:[%s1750 + $0x8] sm:$0xf]
        %v1754 = vld [vmem:[%s1750 + $0xc] sm:$0xf]
        %v1755 = vld [vmem:[%s1750 + $0x10] sm:$0xf]
        %v1756 = vld [vmem:[%s1750 + $0x14] sm:$0xf]
        %v1757 = vld [vmem:[%s1750 + $0x18] sm:$0xf]
        %v1758 = vld [vmem:[%s1750 + $0x1c] sm:$0xf]
        %v1759 = vld [vmem:[%s1750 + $0x20] sm:$0xf]
        %v1760 = vld [vmem:[%s1750 + $0x24] sm:$0xf]
        %v1761 = vld [vmem:[%s1750 + $0x28] sm:$0xf]
        %v1762 = vld [vmem:[%s1750 + $0x2c] sm:$0xf]
        %v1763 = vld [vmem:[%s1750 + $0x30] sm:$0xf]
        %v1764 = vld [vmem:[%s1750 + $0x34] sm:$0xf]
        %v1765 = vld [vmem:[%s1750 + $0x38] sm:$0xf]
        %v1766 = vld [vmem:[%s1750 + $0x3c] sm:$0xf]
        %v1767 = vunpack.c.l.b16 %v1721
        %v1768 = vunpack.c.l.b16 %v1725
        %v1769 = vunpack.c.l.b16 %v1729
        %v1770 = vunpack.c.l.b16 %v1733
        %v1771 = vunpack.c.l.b16 %v1737
        %v1772 = vunpack.c.l.b16 %v1741
        %v1773 = vunpack.c.l.b16 %v1745
        %v1774 = vunpack.c.l.b16 %v1749
        %v1775 = vpack.c.b16 %v1768, %v1767
        %v1776 = vpack.c.b16 %v1770, %v1769
        %v1777 = vpack.c.b16 %v1772, %v1771
        %v1778 = vpack.c.b16 %v1774, %v1773
        %v1799 = vunpack.c.l.b16 %v1751
        %v1800 = vunpack.c.l.b16 %v1752
        %v1801 = vunpack.c.l.b16 %v1753
        %v1802 = vunpack.c.l.b16 %v1754
        %v1803 = vunpack.c.l.b16 %v1755
        %v1804 = vunpack.c.l.b16 %v1756
        %v1805 = vunpack.c.l.b16 %v1757
        %v1806 = vunpack.c.l.b16 %v1758
        %v1807 = vunpack.c.l.b16 %v1759
        %v1808 = vunpack.c.l.b16 %v1760
        %v1809 = vunpack.c.l.b16 %v1761
        %v1810 = vunpack.c.l.b16 %v1762
        %v1811 = vunpack.c.l.b16 %v1763
        %v1812 = vunpack.c.l.b16 %v1764
        %v1813 = vunpack.c.l.b16 %v1765
        %v1814 = vunpack.c.l.b16 %v1766
        %v1815 = vpack.c.b16 %v1800, %v1799
        %v1816 = vpack.c.b16 %v1802, %v1801
        %v1817 = vpack.c.b16 %v1804, %v1803
        %v1818 = vpack.c.b16 %v1806, %v1805
        %v1819 = vpack.c.b16 %v1808, %v1807
        %v1820 = vpack.c.b16 %v1810, %v1809
        %v1821 = vpack.c.b16 %v1812, %v1811
        %v1822 = vpack.c.b16 %v1814, %v1813
        %1831 = vmatpush.bf16.msra.mxu0 %v1822
        %1832 = vmatpush.bf16.msra.mxu0 %v1821
        %1833 = vmatpush.bf16.msra.mxu0 %v1820
        %1834 = vmatpush.bf16.msra.mxu0 %v1819
        %1835 = vmatpush.bf16.msra.mxu0 %v1818
        %1836 = vmatpush.bf16.msra.mxu0 %v1817
        %1837 = vmatpush.bf16.msra.mxu0 %v1816
        %1838 = vmatpush.bf16.msra.mxu0 %v1815
        %1839 = vmatmul.bf16.gmra.mxu0 %v1775
        %v1840 = vpop.f32.mrf.mxu0
        %v1841 = vadd.f32 0.0, %v1840
        %v1842 = vpop.f32.mrf.mxu0
        %v1843 = vadd.f32 0.0, %v1842
        %1844 = vmatmul.bf16.gmra.mxu0 %v1776
        %v1845 = vpop.f32.mrf.mxu0
        %v1846 = vadd.f32 0.0, %v1845
        %v1847 = vpop.f32.mrf.mxu0
        %v1848 = vadd.f32 0.0, %v1847
        %1849 = vmatmul.bf16.gmra.mxu0 %v1777
        %v1850 = vpop.f32.mrf.mxu0
        %v1851 = vadd.f32 0.0, %v1850
        %v1852 = vpop.f32.mrf.mxu0
        %v1853 = vadd.f32 0.0, %v1852
        %1854 = vmatmul.bf16.gmra.mxu0 %v1778
        %v1855 = vpop.f32.mrf.mxu0
        %v1856 = vadd.f32 0.0, %v1855
        %v1857 = vpop.f32.mrf.mxu0
        %v1858 = vadd.f32 0.0, %v1857
        %1859 = vdwg.mxu0
        %v1860 = vadd.f32 %v1686, %v1841
        %v1861 = vadd.f32 %v1687, %v1843
        %v1862 = vadd.f32 %v1688, %v1846
        %v1863 = vadd.f32 %v1689, %v1848
        %v1864 = vadd.f32 %v1690, %v1851
        %v1865 = vadd.f32 %v1691, %v1853
        %v1866 = vadd.f32 %v1692, %v1856
        %v1867 = vadd.f32 %v1693, %v1858
        %v1868 = vld [vmem:[%s2] sm:$0x1]
        %v1870 = vperm.slane %v1868, 0
        %v1872 = vadd.f32 %v1860, %v1870
        %v1873 = vadd.f32 %v1861, %v1870
        %v1874 = vadd.f32 %v1862, %v1870
        %v1875 = vadd.f32 %v1863, %v1870
        %v1876 = vadd.f32 %v1864, %v1870
        %v1877 = vadd.f32 %v1865, %v1870
        %v1878 = vadd.f32 %v1866, %v1870
        %v1879 = vadd.f32 %v1867, %v1870
        %v1880 = vmax.f32 %v1872, 0.0
        %v1881 = vmax.f32 %v1873, 0.0
        %v1882 = vmax.f32 %v1874, 0.0
        %v1883 = vmax.f32 %v1875, 0.0
        %v1884 = vmax.f32 %v1876, 0.0
        %v1885 = vmax.f32 %v1877, 0.0
        %v1886 = vmax.f32 %v1878, 0.0
        %v1887 = vmax.f32 %v1879, 0.0
        %1888 = vst [vmem:[#allocation2] sm:$0xff] 0.0
        %1889 = vst [vmem:[#allocation2 + $0x8] sm:$0x3] 0.0
        %1890 = vst [vmem:[#allocation2 + $0x10] sm:$0xff] 0.0
        %1891 = vst [vmem:[#allocation2 + $0x18] sm:$0x3] 0.0
        %1892 = vst [vmem:[#allocation2 + $0x20] sm:$0xff] 0.0
        %1893 = vst [vmem:[#allocation2 + $0x28] sm:$0x3] 0.0
        %1894 = vst [vmem:[#allocation2 + $0x30] sm:$0xff] 0.0
        %1895 = vst [vmem:[#allocation2 + $0x38] sm:$0x3] 0.0
        %1896 = vst [vmem:[#allocation2 + $0x40] sm:$0xff] 0.0
        %1897 = vst [vmem:[#allocation2 + $0x48] sm:$0x3] 0.0
        %1898 = vst [vmem:[#allocation2 + $0x50] sm:$0xff] 0.0
        %1899 = vst [vmem:[#allocation2 + $0x58] sm:$0x3] 0.0
        %1900 = vst [vmem:[#allocation2 + $0x60] sm:$0xff] 0.0
        %1901 = vst [vmem:[#allocation2 + $0x68] sm:$0x3] 0.0
        %1902 = vst [vmem:[#allocation2 + $0x70] sm:$0xff] 0.0
        %1903 = vst [vmem:[#allocation2 + $0x78] sm:$0x3] 0.0
        %1904 = vst [vmem:[#allocation2 + $0x80] sm:$0xff] 0.0
        %1905 = vst [vmem:[#allocation2 + $0x88] sm:$0x3] 0.0
        %1906 = vst [vmem:[#allocation2 + $0x90] sm:$0xff] 0.0
        %1907 = vst [vmem:[#allocation2 + $0x98] sm:$0x3] 0.0
        %s1908 = scalar_lea.vmem [#allocation2], 16
        %1909 = vst [vmem:[%s1908 + $0x1] sm:$0xff] %v1880
        %1910 = vst [vmem:[%s1908 + $0x11] sm:$0xff] %v1881
        %1911 = vst [vmem:[%s1908 + $0x21] sm:$0xff] %v1882
        %1912 = vst [vmem:[%s1908 + $0x31] sm:$0xff] %v1883
        %1913 = vst [vmem:[%s1908 + $0x41] sm:$0xff] %v1884
        %1914 = vst [vmem:[%s1908 + $0x51] sm:$0xff] %v1885
        %1915 = vst [vmem:[%s1908 + $0x61] sm:$0xff] %v1886
        %1916 = vst [vmem:[%s1908 + $0x71] sm:$0xff] %v1887
        %v1917 = vld [vmem:[#allocation2] sm:$0xff]
        %v1918 = vld [vmem:[#allocation2 + $0x10] sm:$0xff]
        %v1919 = vld [vmem:[#allocation2 + $0x20] sm:$0xff]
        %v1920 = vld [vmem:[#allocation2 + $0x30] sm:$0xff]
        %v1921 = vld [vmem:[#allocation2 + $0x40] sm:$0xff]
        %v1922 = vld [vmem:[#allocation2 + $0x50] sm:$0xff]
        %v1923 = vld [vmem:[#allocation2 + $0x60] sm:$0xff]
        %v1924 = vld [vmem:[#allocation2 + $0x70] sm:$0xff]
        %v1925 = vpack.c.bf16 %v1918, %v1917
        %v1926 = vpack.c.bf16 %v1920, %v1919
        %v1927 = vpack.c.bf16 %v1922, %v1921
        %v1928 = vpack.c.bf16 %v1924, %v1923
        %v1929 = vld [vmem:[%s3] sm:$0xf]
        %v1930 = vld [vmem:[%s3 + $0x4] sm:$0xf]
        %v1931 = vld [vmem:[%s3 + $0x8] sm:$0xf]
        %v1932 = vld [vmem:[%s3 + $0xc] sm:$0xf]
        %v1933 = vld [vmem:[%s3 + $0x10] sm:$0xf]
        %v1934 = vld [vmem:[%s3 + $0x14] sm:$0xf]
        %v1935 = vld [vmem:[%s3 + $0x18] sm:$0xf]
        %v1936 = vld [vmem:[%s3 + $0x1c] sm:$0xf]
        %v1937 = vld [vmem:[%s3 + $0x20] sm:$0xf]
        %v1938 = vld [vmem:[%s3 + $0x24] sm:$0xf]
        %v1939 = vld [vmem:[%s3 + $0x28] sm:$0xf]
        %v1940 = vld [vmem:[%s3 + $0x2c] sm:$0xf]
        %v1941 = vld [vmem:[%s3 + $0x30] sm:$0xf]
        %v1942 = vld [vmem:[%s3 + $0x34] sm:$0xf]
        %v1943 = vld [vmem:[%s3 + $0x38] sm:$0xf]
        %v1944 = vld [vmem:[%s3 + $0x3c] sm:$0xf]
        %v1945 = vld [vmem:[#allocation2 + $0x1] sm:$0xff]
        %v1946 = vld [vmem:[#allocation2 + $0x11] sm:$0xff]
        %v1947 = vld [vmem:[#allocation2 + $0x21] sm:$0xff]
        %v1948 = vld [vmem:[#allocation2 + $0x31] sm:$0xff]
        %v1949 = vld [vmem:[#allocation2 + $0x41] sm:$0xff]
        %v1950 = vld [vmem:[#allocation2 + $0x51] sm:$0xff]
        %v1951 = vld [vmem:[#allocation2 + $0x61] sm:$0xff]
        %v1952 = vld [vmem:[#allocation2 + $0x71] sm:$0xff]
        %v1953 = vpack.c.bf16 %v1946, %v1945
        %v1954 = vpack.c.bf16 %v1948, %v1947
        %v1955 = vpack.c.bf16 %v1950, %v1949
        %v1956 = vpack.c.bf16 %v1952, %v1951
        %s1957 = scalar_lea.vmem %s3, 64
        %v1958 = vld [vmem:[%s1957] sm:$0xf]
        %v1959 = vld [vmem:[%s1957 + $0x4] sm:$0xf]
        %v1960 = vld [vmem:[%s1957 + $0x8] sm:$0xf]
        %v1961 = vld [vmem:[%s1957 + $0xc] sm:$0xf]
        %v1962 = vld [vmem:[%s1957 + $0x10] sm:$0xf]
        %v1963 = vld [vmem:[%s1957 + $0x14] sm:$0xf]
        %v1964 = vld [vmem:[%s1957 + $0x18] sm:$0xf]
        %v1965 = vld [vmem:[%s1957 + $0x1c] sm:$0xf]
        %v1966 = vld [vmem:[%s1957 + $0x20] sm:$0xf]
        %v1967 = vld [vmem:[%s1957 + $0x24] sm:$0xf]
        %v1968 = vld [vmem:[%s1957 + $0x28] sm:$0xf]
        %v1969 = vld [vmem:[%s1957 + $0x2c] sm:$0xf]
        %v1970 = vld [vmem:[%s1957 + $0x30] sm:$0xf]
        %v1971 = vld [vmem:[%s1957 + $0x34] sm:$0xf]
        %v1972 = vld [vmem:[%s1957 + $0x38] sm:$0xf]
        %v1973 = vld [vmem:[%s1957 + $0x3c] sm:$0xf]
        %v1990 = vunpack.c.l.b16 %v1958
        %v1991 = vunpack.c.l.b16 %v1959
        %v1992 = vunpack.c.l.b16 %v1960
        %v1993 = vunpack.c.l.b16 %v1961
        %v1994 = vunpack.c.l.b16 %v1962
        %v1995 = vunpack.c.l.b16 %v1963
        %v1996 = vunpack.c.l.b16 %v1964
        %v1997 = vunpack.c.l.b16 %v1965
        %v1998 = vunpack.c.l.b16 %v1966
        %v1999 = vunpack.c.l.b16 %v1967
        %v2000 = vunpack.c.l.b16 %v1968
        %v2001 = vunpack.c.l.b16 %v1969
        %v2002 = vunpack.c.l.b16 %v1970
        %v2003 = vunpack.c.l.b16 %v1971
        %v2004 = vunpack.c.l.b16 %v1972
        %v2005 = vunpack.c.l.b16 %v1973
        %v2006 = vpack.c.b16 %v1991, %v1990
        %v2007 = vpack.c.b16 %v1993, %v1992
        %v2008 = vpack.c.b16 %v1995, %v1994
        %v2009 = vpack.c.b16 %v1997, %v1996
        %v2010 = vpack.c.b16 %v1999, %v1998
        %v2011 = vpack.c.b16 %v2001, %v2000
        %v2012 = vpack.c.b16 %v2003, %v2002
        %v2013 = vpack.c.b16 %v2005, %v2004
        %2022 = vmatpush.bf16.msra.mxu0 %v2013
        %2023 = vmatpush.bf16.msra.mxu0 %v2012
        %2024 = vmatpush.bf16.msra.mxu0 %v2011
        %2025 = vmatpush.bf16.msra.mxu0 %v2010
        %2026 = vmatpush.bf16.msra.mxu0 %v2009
        %2027 = vmatpush.bf16.msra.mxu0 %v2008
        %2028 = vmatpush.bf16.msra.mxu0 %v2007
        %2029 = vmatpush.bf16.msra.mxu0 %v2006
        %2030 = vmatmul.bf16.gmra.mxu0 %v1953
        %v2031 = vpop.f32.mrf.mxu0
        %v2032 = vadd.f32 0.0, %v2031
        %v2033 = vpop.f32.mrf.mxu0
        %v2034 = vadd.f32 0.0, %v2033
        %2035 = vmatmul.bf16.gmra.mxu0 %v1954
        %v2036 = vpop.f32.mrf.mxu0
        %v2037 = vadd.f32 0.0, %v2036
        %v2038 = vpop.f32.mrf.mxu0
        %v2039 = vadd.f32 0.0, %v2038
        %2040 = vmatmul.bf16.gmra.mxu0 %v1955
        %v2041 = vpop.f32.mrf.mxu0
        %v2042 = vadd.f32 0.0, %v2041
        %v2043 = vpop.f32.mrf.mxu0
        %v2044 = vadd.f32 0.0, %v2043
        %2045 = vmatmul.bf16.gmra.mxu0 %v1956
        %v2046 = vpop.f32.mrf.mxu0
        %v2047 = vadd.f32 0.0, %v2046
        %v2048 = vpop.f32.mrf.mxu0
        %v2049 = vadd.f32 0.0, %v2048
        %2050 = vdwg.mxu0
        %v2067 = vunpack.c.l.b16 %v1929
        %v2068 = vunpack.c.l.b16 %v1930
        %v2069 = vunpack.c.l.b16 %v1931
        %v2070 = vunpack.c.l.b16 %v1932
        %v2071 = vunpack.c.l.b16 %v1933
        %v2072 = vunpack.c.l.b16 %v1934
        %v2073 = vunpack.c.l.b16 %v1935
        %v2074 = vunpack.c.l.b16 %v1936
        %v2075 = vunpack.c.l.b16 %v1937
        %v2076 = vunpack.c.l.b16 %v1938
        %v2077 = vunpack.c.l.b16 %v1939
        %v2078 = vunpack.c.l.b16 %v1940
        %v2079 = vunpack.c.l.b16 %v1941
        %v2080 = vunpack.c.l.b16 %v1942
        %v2081 = vunpack.c.l.b16 %v1943
        %v2082 = vunpack.c.l.b16 %v1944
        %v2083 = vpack.c.b16 %v2068, %v2067
        %v2084 = vpack.c.b16 %v2070, %v2069
        %v2085 = vpack.c.b16 %v2072, %v2071
        %v2086 = vpack.c.b16 %v2074, %v2073
        %v2087 = vpack.c.b16 %v2076, %v2075
        %v2088 = vpack.c.b16 %v2078, %v2077
        %v2089 = vpack.c.b16 %v2080, %v2079
        %v2090 = vpack.c.b16 %v2082, %v2081
        %2099 = vmatpush.bf16.msra.mxu0 %v2090
        %2100 = vmatpush.bf16.msra.mxu0 %v2089
        %2101 = vmatpush.bf16.msra.mxu0 %v2088
        %2102 = vmatpush.bf16.msra.mxu0 %v2087
        %2103 = vmatpush.bf16.msra.mxu0 %v2086
        %2104 = vmatpush.bf16.msra.mxu0 %v2085
        %2105 = vmatpush.bf16.msra.mxu0 %v2084
        %2106 = vmatpush.bf16.msra.mxu0 %v2083
        %2107 = vmatmul.bf16.gmra.mxu0 %v1925
        %v2108 = vpop.f32.mrf.mxu0
        %v2109 = vadd.f32 %v2032, %v2108
        %v2110 = vpop.f32.mrf.mxu0
        %v2111 = vadd.f32 %v2034, %v2110
        %2112 = vmatmul.bf16.gmra.mxu0 %v1926
        %v2113 = vpop.f32.mrf.mxu0
        %v2114 = vadd.f32 %v2037, %v2113
        %v2115 = vpop.f32.mrf.mxu0
        %v2116 = vadd.f32 %v2039, %v2115
        %2117 = vmatmul.bf16.gmra.mxu0 %v1927
        %v2118 = vpop.f32.mrf.mxu0
        %v2119 = vadd.f32 %v2042, %v2118
        %v2120 = vpop.f32.mrf.mxu0
        %v2121 = vadd.f32 %v2044, %v2120
        %2122 = vmatmul.bf16.gmra.mxu0 %v1928
        %v2123 = vpop.f32.mrf.mxu0
        %v2124 = vadd.f32 %v2047, %v2123
        %v2125 = vpop.f32.mrf.mxu0
        %v2126 = vadd.f32 %v2049, %v2125
        %2127 = vdwg.mxu0
        %v2128 = vld [vmem:[#allocation2 + $0x2] sm:$0xff]
        %v2129 = vld [vmem:[#allocation2 + $0x12] sm:$0xff]
        %v2130 = vld [vmem:[#allocation2 + $0x22] sm:$0xff]
        %v2131 = vld [vmem:[#allocation2 + $0x32] sm:$0xff]
        %v2132 = vld [vmem:[#allocation2 + $0x42] sm:$0xff]
        %v2133 = vld [vmem:[#allocation2 + $0x52] sm:$0xff]
        %v2134 = vld [vmem:[#allocation2 + $0x62] sm:$0xff]
        %v2135 = vld [vmem:[#allocation2 + $0x72] sm:$0xff]
        %v2136 = vpack.c.bf16 %v2129, %v2128
        %v2137 = vpack.c.bf16 %v2131, %v2130
        %v2138 = vpack.c.bf16 %v2133, %v2132
        %v2139 = vpack.c.bf16 %v2135, %v2134
        %s2140 = scalar_lea.vmem %s3, 128
        %v2141 = vld [vmem:[%s2140] sm:$0xf]
        %v2142 = vld [vmem:[%s2140 + $0x4] sm:$0xf]
        %v2143 = vld [vmem:[%s2140 + $0x8] sm:$0xf]
        %v2144 = vld [vmem:[%s2140 + $0xc] sm:$0xf]
        %v2145 = vld [vmem:[%s2140 + $0x10] sm:$0xf]
        %v2146 = vld [vmem:[%s2140 + $0x14] sm:$0xf]
        %v2147 = vld [vmem:[%s2140 + $0x18] sm:$0xf]
        %v2148 = vld [vmem:[%s2140 + $0x1c] sm:$0xf]
        %v2149 = vld [vmem:[%s2140 + $0x20] sm:$0xf]
        %v2150 = vld [vmem:[%s2140 + $0x24] sm:$0xf]
        %v2151 = vld [vmem:[%s2140 + $0x28] sm:$0xf]
        %v2152 = vld [vmem:[%s2140 + $0x2c] sm:$0xf]
        %v2153 = vld [vmem:[%s2140 + $0x30] sm:$0xf]
        %v2154 = vld [vmem:[%s2140 + $0x34] sm:$0xf]
        %v2155 = vld [vmem:[%s2140 + $0x38] sm:$0xf]
        %v2156 = vld [vmem:[%s2140 + $0x3c] sm:$0xf]
        %v2173 = vunpack.c.l.b16 %v2141
        %v2174 = vunpack.c.l.b16 %v2142
        %v2175 = vunpack.c.l.b16 %v2143
        %v2176 = vunpack.c.l.b16 %v2144
        %v2177 = vunpack.c.l.b16 %v2145
        %v2178 = vunpack.c.l.b16 %v2146
        %v2179 = vunpack.c.l.b16 %v2147
        %v2180 = vunpack.c.l.b16 %v2148
        %v2181 = vunpack.c.l.b16 %v2149
        %v2182 = vunpack.c.l.b16 %v2150
        %v2183 = vunpack.c.l.b16 %v2151
        %v2184 = vunpack.c.l.b16 %v2152
        %v2185 = vunpack.c.l.b16 %v2153
        %v2186 = vunpack.c.l.b16 %v2154
        %v2187 = vunpack.c.l.b16 %v2155
        %v2188 = vunpack.c.l.b16 %v2156
        %v2189 = vpack.c.b16 %v2174, %v2173
        %v2190 = vpack.c.b16 %v2176, %v2175
        %v2191 = vpack.c.b16 %v2178, %v2177
        %v2192 = vpack.c.b16 %v2180, %v2179
        %v2193 = vpack.c.b16 %v2182, %v2181
        %v2194 = vpack.c.b16 %v2184, %v2183
        %v2195 = vpack.c.b16 %v2186, %v2185
        %v2196 = vpack.c.b16 %v2188, %v2187
        %2205 = vmatpush.bf16.msra.mxu0 %v2196
        %2206 = vmatpush.bf16.msra.mxu0 %v2195
        %2207 = vmatpush.bf16.msra.mxu0 %v2194
        %2208 = vmatpush.bf16.msra.mxu0 %v2193
        %2209 = vmatpush.bf16.msra.mxu0 %v2192
        %2210 = vmatpush.bf16.msra.mxu0 %v2191
        %2211 = vmatpush.bf16.msra.mxu0 %v2190
        %2212 = vmatpush.bf16.msra.mxu0 %v2189
        %2213 = vmatmul.bf16.gmra.mxu0 %v2136
        %v2214 = vpop.f32.mrf.mxu0
        %v2215 = vadd.f32 0.0, %v2214
        %v2216 = vpop.f32.mrf.mxu0
        %v2217 = vadd.f32 0.0, %v2216
        %2218 = vmatmul.bf16.gmra.mxu0 %v2137
        %v2219 = vpop.f32.mrf.mxu0
        %v2220 = vadd.f32 0.0, %v2219
        %v2221 = vpop.f32.mrf.mxu0
        %v2222 = vadd.f32 0.0, %v2221
        %2223 = vmatmul.bf16.gmra.mxu0 %v2138
        %v2224 = vpop.f32.mrf.mxu0
        %v2225 = vadd.f32 0.0, %v2224
        %v2226 = vpop.f32.mrf.mxu0
        %v2227 = vadd.f32 0.0, %v2226
        %2228 = vmatmul.bf16.gmra.mxu0 %v2139
        %v2229 = vpop.f32.mrf.mxu0
        %v2230 = vadd.f32 0.0, %v2229
        %v2231 = vpop.f32.mrf.mxu0
        %v2232 = vadd.f32 0.0, %v2231
        %2233 = vdwg.mxu0
        %v2234 = vadd.f32 %v2109, %v2215
        %v2235 = vadd.f32 %v2111, %v2217
        %v2236 = vadd.f32 %v2114, %v2220
        %v2237 = vadd.f32 %v2116, %v2222
        %v2238 = vadd.f32 %v2119, %v2225
        %v2239 = vadd.f32 %v2121, %v2227
        %v2240 = vadd.f32 %v2124, %v2230
        %v2241 = vadd.f32 %v2126, %v2232
        %v2242 = vld [vmem:[%s1908] sm:$0xff]
        %v2243 = vld [vmem:[%s1908 + $0x10] sm:$0xff]
        %v2244 = vld [vmem:[%s1908 + $0x20] sm:$0xff]
        %v2245 = vld [vmem:[%s1908 + $0x30] sm:$0xff]
        %v2246 = vld [vmem:[%s1908 + $0x40] sm:$0xff]
        %v2247 = vld [vmem:[%s1908 + $0x50] sm:$0xff]
        %v2248 = vld [vmem:[%s1908 + $0x60] sm:$0xff]
        %v2249 = vld [vmem:[%s1908 + $0x70] sm:$0xff]
        %v2250 = vpack.c.bf16 %v2243, %v2242
        %v2251 = vpack.c.bf16 %v2245, %v2244
        %v2252 = vpack.c.bf16 %v2247, %v2246
        %v2253 = vpack.c.bf16 %v2249, %v2248
        %s2254 = scalar_lea.vmem %s3, 192
        %v2255 = vld [vmem:[%s2254] sm:$0xf]
        %v2256 = vld [vmem:[%s2254 + $0x4] sm:$0xf]
        %v2257 = vld [vmem:[%s2254 + $0x8] sm:$0xf]
        %v2258 = vld [vmem:[%s2254 + $0xc] sm:$0xf]
        %v2259 = vld [vmem:[%s2254 + $0x10] sm:$0xf]
        %v2260 = vld [vmem:[%s2254 + $0x14] sm:$0xf]
        %v2261 = vld [vmem:[%s2254 + $0x18] sm:$0xf]
        %v2262 = vld [vmem:[%s2254 + $0x1c] sm:$0xf]
        %v2263 = vld [vmem:[%s2254 + $0x20] sm:$0xf]
        %v2264 = vld [vmem:[%s2254 + $0x24] sm:$0xf]
        %v2265 = vld [vmem:[%s2254 + $0x28] sm:$0xf]
        %v2266 = vld [vmem:[%s2254 + $0x2c] sm:$0xf]
        %v2267 = vld [vmem:[%s2254 + $0x30] sm:$0xf]
        %v2268 = vld [vmem:[%s2254 + $0x34] sm:$0xf]
        %v2269 = vld [vmem:[%s2254 + $0x38] sm:$0xf]
        %v2270 = vld [vmem:[%s2254 + $0x3c] sm:$0xf]
        %v2287 = vunpack.c.l.b16 %v2255
        %v2288 = vunpack.c.l.b16 %v2256
        %v2289 = vunpack.c.l.b16 %v2257
        %v2290 = vunpack.c.l.b16 %v2258
        %v2291 = vunpack.c.l.b16 %v2259
        %v2292 = vunpack.c.l.b16 %v2260
        %v2293 = vunpack.c.l.b16 %v2261
        %v2294 = vunpack.c.l.b16 %v2262
        %v2295 = vunpack.c.l.b16 %v2263
        %v2296 = vunpack.c.l.b16 %v2264
        %v2297 = vunpack.c.l.b16 %v2265
        %v2298 = vunpack.c.l.b16 %v2266
        %v2299 = vunpack.c.l.b16 %v2267
        %v2300 = vunpack.c.l.b16 %v2268
        %v2301 = vunpack.c.l.b16 %v2269
        %v2302 = vunpack.c.l.b16 %v2270
        %v2303 = vpack.c.b16 %v2288, %v2287
        %v2304 = vpack.c.b16 %v2290, %v2289
        %v2305 = vpack.c.b16 %v2292, %v2291
        %v2306 = vpack.c.b16 %v2294, %v2293
        %v2307 = vpack.c.b16 %v2296, %v2295
        %v2308 = vpack.c.b16 %v2298, %v2297
        %v2309 = vpack.c.b16 %v2300, %v2299
        %v2310 = vpack.c.b16 %v2302, %v2301
        %2319 = vmatpush.bf16.msra.mxu0 %v2310
        %2320 = vmatpush.bf16.msra.mxu0 %v2309
        %2321 = vmatpush.bf16.msra.mxu0 %v2308
        %2322 = vmatpush.bf16.msra.mxu0 %v2307
        %2323 = vmatpush.bf16.msra.mxu0 %v2306
        %2324 = vmatpush.bf16.msra.mxu0 %v2305
        %2325 = vmatpush.bf16.msra.mxu0 %v2304
        %2326 = vmatpush.bf16.msra.mxu0 %v2303
        %2327 = vmatmul.bf16.gmra.mxu0 %v2250
        %v2328 = vpop.f32.mrf.mxu0
        %v2329 = vadd.f32 0.0, %v2328
        %v2330 = vpop.f32.mrf.mxu0
        %v2331 = vadd.f32 0.0, %v2330
        %2332 = vmatmul.bf16.gmra.mxu0 %v2251
        %v2333 = vpop.f32.mrf.mxu0
        %v2334 = vadd.f32 0.0, %v2333
        %v2335 = vpop.f32.mrf.mxu0
        %v2336 = vadd.f32 0.0, %v2335
        %2337 = vmatmul.bf16.gmra.mxu0 %v2252
        %v2338 = vpop.f32.mrf.mxu0
        %v2339 = vadd.f32 0.0, %v2338
        %v2340 = vpop.f32.mrf.mxu0
        %v2341 = vadd.f32 0.0, %v2340
        %2342 = vmatmul.bf16.gmra.mxu0 %v2253
        %v2343 = vpop.f32.mrf.mxu0
        %v2344 = vadd.f32 0.0, %v2343
        %v2345 = vpop.f32.mrf.mxu0
        %v2346 = vadd.f32 0.0, %v2345
        %2347 = vdwg.mxu0
        %v2348 = vadd.f32 %v2234, %v2329
        %v2349 = vadd.f32 %v2235, %v2331
        %v2350 = vadd.f32 %v2236, %v2334
        %v2351 = vadd.f32 %v2237, %v2336
        %v2352 = vadd.f32 %v2238, %v2339
        %v2353 = vadd.f32 %v2239, %v2341
        %v2354 = vadd.f32 %v2240, %v2344
        %v2355 = vadd.f32 %v2241, %v2346
        %v2356 = vld [vmem:[%s1908 + $0x1] sm:$0xff]
        %v2357 = vld [vmem:[%s1908 + $0x11] sm:$0xff]
        %v2358 = vld [vmem:[%s1908 + $0x21] sm:$0xff]
        %v2359 = vld [vmem:[%s1908 + $0x31] sm:$0xff]
        %v2360 = vld [vmem:[%s1908 + $0x41] sm:$0xff]
        %v2361 = vld [vmem:[%s1908 + $0x51] sm:$0xff]
        %v2362 = vld [vmem:[%s1908 + $0x61] sm:$0xff]
        %v2363 = vld [vmem:[%s1908 + $0x71] sm:$0xff]
        %v2364 = vpack.c.bf16 %v2357, %v2356
        %v2365 = vpack.c.bf16 %v2359, %v2358
        %v2366 = vpack.c.bf16 %v2361, %v2360
        %v2367 = vpack.c.bf16 %v2363, %v2362
        %s2368 = scalar_lea.vmem %s3, 256
        %v2369 = vld [vmem:[%s2368] sm:$0xf]
        %v2370 = vld [vmem:[%s2368 + $0x4] sm:$0xf]
        %v2371 = vld [vmem:[%s2368 + $0x8] sm:$0xf]
        %v2372 = vld [vmem:[%s2368 + $0xc] sm:$0xf]
        %v2373 = vld [vmem:[%s2368 + $0x10] sm:$0xf]
        %v2374 = vld [vmem:[%s2368 + $0x14] sm:$0xf]
        %v2375 = vld [vmem:[%s2368 + $0x18] sm:$0xf]
        %v2376 = vld [vmem:[%s2368 + $0x1c] sm:$0xf]
        %v2377 = vld [vmem:[%s2368 + $0x20] sm:$0xf]
        %v2378 = vld [vmem:[%s2368 + $0x24] sm:$0xf]
        %v2379 = vld [vmem:[%s2368 + $0x28] sm:$0xf]
        %v2380 = vld [vmem:[%s2368 + $0x2c] sm:$0xf]
        %v2381 = vld [vmem:[%s2368 + $0x30] sm:$0xf]
        %v2382 = vld [vmem:[%s2368 + $0x34] sm:$0xf]
        %v2383 = vld [vmem:[%s2368 + $0x38] sm:$0xf]
        %v2384 = vld [vmem:[%s2368 + $0x3c] sm:$0xf]
        %v2401 = vunpack.c.l.b16 %v2369
        %v2402 = vunpack.c.l.b16 %v2370
        %v2403 = vunpack.c.l.b16 %v2371
        %v2404 = vunpack.c.l.b16 %v2372
        %v2405 = vunpack.c.l.b16 %v2373
        %v2406 = vunpack.c.l.b16 %v2374
        %v2407 = vunpack.c.l.b16 %v2375
        %v2408 = vunpack.c.l.b16 %v2376
        %v2409 = vunpack.c.l.b16 %v2377
        %v2410 = vunpack.c.l.b16 %v2378
        %v2411 = vunpack.c.l.b16 %v2379
        %v2412 = vunpack.c.l.b16 %v2380
        %v2413 = vunpack.c.l.b16 %v2381
        %v2414 = vunpack.c.l.b16 %v2382
        %v2415 = vunpack.c.l.b16 %v2383
        %v2416 = vunpack.c.l.b16 %v2384
        %v2417 = vpack.c.b16 %v2402, %v2401
        %v2418 = vpack.c.b16 %v2404, %v2403
        %v2419 = vpack.c.b16 %v2406, %v2405
        %v2420 = vpack.c.b16 %v2408, %v2407
        %v2421 = vpack.c.b16 %v2410, %v2409
        %v2422 = vpack.c.b16 %v2412, %v2411
        %v2423 = vpack.c.b16 %v2414, %v2413
        %v2424 = vpack.c.b16 %v2416, %v2415
        %2433 = vmatpush.bf16.msra.mxu0 %v2424
        %2434 = vmatpush.bf16.msra.mxu0 %v2423
        %2435 = vmatpush.bf16.msra.mxu0 %v2422
        %2436 = vmatpush.bf16.msra.mxu0 %v2421
        %2437 = vmatpush.bf16.msra.mxu0 %v2420
        %2438 = vmatpush.bf16.msra.mxu0 %v2419
        %2439 = vmatpush.bf16.msra.mxu0 %v2418
        %2440 = vmatpush.bf16.msra.mxu0 %v2417
        %2441 = vmatmul.bf16.gmra.mxu0 %v2364
        %v2442 = vpop.f32.mrf.mxu0
        %v2443 = vadd.f32 0.0, %v2442
        %v2444 = vpop.f32.mrf.mxu0
        %v2445 = vadd.f32 0.0, %v2444
        %2446 = vmatmul.bf16.gmra.mxu0 %v2365
        %v2447 = vpop.f32.mrf.mxu0
        %v2448 = vadd.f32 0.0, %v2447
        %v2449 = vpop.f32.mrf.mxu0
        %v2450 = vadd.f32 0.0, %v2449
        %2451 = vmatmul.bf16.gmra.mxu0 %v2366
        %v2452 = vpop.f32.mrf.mxu0
        %v2453 = vadd.f32 0.0, %v2452
        %v2454 = vpop.f32.mrf.mxu0
        %v2455 = vadd.f32 0.0, %v2454
        %2456 = vmatmul.bf16.gmra.mxu0 %v2367
        %v2457 = vpop.f32.mrf.mxu0
        %v2458 = vadd.f32 0.0, %v2457
        %v2459 = vpop.f32.mrf.mxu0
        %v2460 = vadd.f32 0.0, %v2459
        %2461 = vdwg.mxu0
        %v2462 = vadd.f32 %v2348, %v2443
        %v2463 = vadd.f32 %v2349, %v2445
        %v2464 = vadd.f32 %v2350, %v2448
        %v2465 = vadd.f32 %v2351, %v2450
        %v2466 = vadd.f32 %v2352, %v2453
        %v2467 = vadd.f32 %v2353, %v2455
        %v2468 = vadd.f32 %v2354, %v2458
        %v2469 = vadd.f32 %v2355, %v2460
        %v2470 = vld [vmem:[%s1908 + $0x2] sm:$0xff]
        %v2471 = vld [vmem:[%s1908 + $0x12] sm:$0xff]
        %v2472 = vld [vmem:[%s1908 + $0x22] sm:$0xff]
        %v2473 = vld [vmem:[%s1908 + $0x32] sm:$0xff]
        %v2474 = vld [vmem:[%s1908 + $0x42] sm:$0xff]
        %v2475 = vld [vmem:[%s1908 + $0x52] sm:$0xff]
        %v2476 = vld [vmem:[%s1908 + $0x62] sm:$0xff]
        %v2477 = vld [vmem:[%s1908 + $0x72] sm:$0xff]
        %v2478 = vpack.c.bf16 %v2471, %v2470
        %v2479 = vpack.c.bf16 %v2473, %v2472
        %v2480 = vpack.c.bf16 %v2475, %v2474
        %v2481 = vpack.c.bf16 %v2477, %v2476
        %s2482 = scalar_lea.vmem %s3, 320
        %v2483 = vld [vmem:[%s2482] sm:$0xf]
        %v2484 = vld [vmem:[%s2482 + $0x4] sm:$0xf]
        %v2485 = vld [vmem:[%s2482 + $0x8] sm:$0xf]
        %v2486 = vld [vmem:[%s2482 + $0xc] sm:$0xf]
        %v2487 = vld [vmem:[%s2482 + $0x10] sm:$0xf]
        %v2488 = vld [vmem:[%s2482 + $0x14] sm:$0xf]
        %v2489 = vld [vmem:[%s2482 + $0x18] sm:$0xf]
        %v2490 = vld [vmem:[%s2482 + $0x1c] sm:$0xf]
        %v2491 = vld [vmem:[%s2482 + $0x20] sm:$0xf]
        %v2492 = vld [vmem:[%s2482 + $0x24] sm:$0xf]
        %v2493 = vld [vmem:[%s2482 + $0x28] sm:$0xf]
        %v2494 = vld [vmem:[%s2482 + $0x2c] sm:$0xf]
        %v2495 = vld [vmem:[%s2482 + $0x30] sm:$0xf]
        %v2496 = vld [vmem:[%s2482 + $0x34] sm:$0xf]
        %v2497 = vld [vmem:[%s2482 + $0x38] sm:$0xf]
        %v2498 = vld [vmem:[%s2482 + $0x3c] sm:$0xf]
        %v2515 = vunpack.c.l.b16 %v2483
        %v2516 = vunpack.c.l.b16 %v2484
        %v2517 = vunpack.c.l.b16 %v2485
        %v2518 = vunpack.c.l.b16 %v2486
        %v2519 = vunpack.c.l.b16 %v2487
        %v2520 = vunpack.c.l.b16 %v2488
        %v2521 = vunpack.c.l.b16 %v2489
        %v2522 = vunpack.c.l.b16 %v2490
        %v2523 = vunpack.c.l.b16 %v2491
        %v2524 = vunpack.c.l.b16 %v2492
        %v2525 = vunpack.c.l.b16 %v2493
        %v2526 = vunpack.c.l.b16 %v2494
        %v2527 = vunpack.c.l.b16 %v2495
        %v2528 = vunpack.c.l.b16 %v2496
        %v2529 = vunpack.c.l.b16 %v2497
        %v2530 = vunpack.c.l.b16 %v2498
        %v2531 = vpack.c.b16 %v2516, %v2515
        %v2532 = vpack.c.b16 %v2518, %v2517
        %v2533 = vpack.c.b16 %v2520, %v2519
        %v2534 = vpack.c.b16 %v2522, %v2521
        %v2535 = vpack.c.b16 %v2524, %v2523
        %v2536 = vpack.c.b16 %v2526, %v2525
        %v2537 = vpack.c.b16 %v2528, %v2527
        %v2538 = vpack.c.b16 %v2530, %v2529
        %2547 = vmatpush.bf16.msra.mxu0 %v2538
        %2548 = vmatpush.bf16.msra.mxu0 %v2537
        %2549 = vmatpush.bf16.msra.mxu0 %v2536
        %2550 = vmatpush.bf16.msra.mxu0 %v2535
        %2551 = vmatpush.bf16.msra.mxu0 %v2534
        %2552 = vmatpush.bf16.msra.mxu0 %v2533
        %2553 = vmatpush.bf16.msra.mxu0 %v2532
        %2554 = vmatpush.bf16.msra.mxu0 %v2531
        %2555 = vmatmul.bf16.gmra.mxu0 %v2478
        %v2556 = vpop.f32.mrf.mxu0
        %v2557 = vadd.f32 0.0, %v2556
        %v2558 = vpop.f32.mrf.mxu0
        %v2559 = vadd.f32 0.0, %v2558
        %2560 = vmatmul.bf16.gmra.mxu0 %v2479
        %v2561 = vpop.f32.mrf.mxu0
        %v2562 = vadd.f32 0.0, %v2561
        %v2563 = vpop.f32.mrf.mxu0
        %v2564 = vadd.f32 0.0, %v2563
        %2565 = vmatmul.bf16.gmra.mxu0 %v2480
        %v2566 = vpop.f32.mrf.mxu0
        %v2567 = vadd.f32 0.0, %v2566
        %v2568 = vpop.f32.mrf.mxu0
        %v2569 = vadd.f32 0.0, %v2568
        %2570 = vmatmul.bf16.gmra.mxu0 %v2481
        %v2571 = vpop.f32.mrf.mxu0
        %v2572 = vadd.f32 0.0, %v2571
        %v2573 = vpop.f32.mrf.mxu0
        %v2574 = vadd.f32 0.0, %v2573
        %2575 = vdwg.mxu0
        %v2576 = vadd.f32 %v2462, %v2557
        %v2577 = vadd.f32 %v2463, %v2559
        %v2578 = vadd.f32 %v2464, %v2562
        %v2579 = vadd.f32 %v2465, %v2564
        %v2580 = vadd.f32 %v2466, %v2567
        %v2581 = vadd.f32 %v2467, %v2569
        %v2582 = vadd.f32 %v2468, %v2572
        %v2583 = vadd.f32 %v2469, %v2574
        %s2584 = scalar_lea.vmem [#allocation2], 32
        %v2585 = vld [vmem:[%s2584] sm:$0xff]
        %v2586 = vld [vmem:[%s2584 + $0x10] sm:$0xff]
        %v2587 = vld [vmem:[%s2584 + $0x20] sm:$0xff]
        %v2588 = vld [vmem:[%s2584 + $0x30] sm:$0xff]
        %v2589 = vld [vmem:[%s2584 + $0x40] sm:$0xff]
        %v2590 = vld [vmem:[%s2584 + $0x50] sm:$0xff]
        %v2591 = vld [vmem:[%s2584 + $0x60] sm:$0xff]
        %v2592 = vld [vmem:[%s2584 + $0x70] sm:$0xff]
        %v2593 = vpack.c.bf16 %v2586, %v2585
        %v2594 = vpack.c.bf16 %v2588, %v2587
        %v2595 = vpack.c.bf16 %v2590, %v2589
        %v2596 = vpack.c.bf16 %v2592, %v2591
        %s2597 = scalar_lea.vmem %s3, 384
        %v2598 = vld [vmem:[%s2597] sm:$0xf]
        %v2599 = vld [vmem:[%s2597 + $0x4] sm:$0xf]
        %v2600 = vld [vmem:[%s2597 + $0x8] sm:$0xf]
        %v2601 = vld [vmem:[%s2597 + $0xc] sm:$0xf]
        %v2602 = vld [vmem:[%s2597 + $0x10] sm:$0xf]
        %v2603 = vld [vmem:[%s2597 + $0x14] sm:$0xf]
        %v2604 = vld [vmem:[%s2597 + $0x18] sm:$0xf]
        %v2605 = vld [vmem:[%s2597 + $0x1c] sm:$0xf]
        %v2606 = vld [vmem:[%s2597 + $0x20] sm:$0xf]
        %v2607 = vld [vmem:[%s2597 + $0x24] sm:$0xf]
        %v2608 = vld [vmem:[%s2597 + $0x28] sm:$0xf]
        %v2609 = vld [vmem:[%s2597 + $0x2c] sm:$0xf]
        %v2610 = vld [vmem:[%s2597 + $0x30] sm:$0xf]
        %v2611 = vld [vmem:[%s2597 + $0x34] sm:$0xf]
        %v2612 = vld [vmem:[%s2597 + $0x38] sm:$0xf]
        %v2613 = vld [vmem:[%s2597 + $0x3c] sm:$0xf]
        %v2630 = vunpack.c.l.b16 %v2598
        %v2631 = vunpack.c.l.b16 %v2599
        %v2632 = vunpack.c.l.b16 %v2600
        %v2633 = vunpack.c.l.b16 %v2601
        %v2634 = vunpack.c.l.b16 %v2602
        %v2635 = vunpack.c.l.b16 %v2603
        %v2636 = vunpack.c.l.b16 %v2604
        %v2637 = vunpack.c.l.b16 %v2605
        %v2638 = vunpack.c.l.b16 %v2606
        %v2639 = vunpack.c.l.b16 %v2607
        %v2640 = vunpack.c.l.b16 %v2608
        %v2641 = vunpack.c.l.b16 %v2609
        %v2642 = vunpack.c.l.b16 %v2610
        %v2643 = vunpack.c.l.b16 %v2611
        %v2644 = vunpack.c.l.b16 %v2612
        %v2645 = vunpack.c.l.b16 %v2613
        %v2646 = vpack.c.b16 %v2631, %v2630
        %v2647 = vpack.c.b16 %v2633, %v2632
        %v2648 = vpack.c.b16 %v2635, %v2634
        %v2649 = vpack.c.b16 %v2637, %v2636
        %v2650 = vpack.c.b16 %v2639, %v2638
        %v2651 = vpack.c.b16 %v2641, %v2640
        %v2652 = vpack.c.b16 %v2643, %v2642
        %v2653 = vpack.c.b16 %v2645, %v2644
        %2662 = vmatpush.bf16.msra.mxu0 %v2653
        %2663 = vmatpush.bf16.msra.mxu0 %v2652
        %2664 = vmatpush.bf16.msra.mxu0 %v2651
        %2665 = vmatpush.bf16.msra.mxu0 %v2650
        %2666 = vmatpush.bf16.msra.mxu0 %v2649
        %2667 = vmatpush.bf16.msra.mxu0 %v2648
        %2668 = vmatpush.bf16.msra.mxu0 %v2647
        %2669 = vmatpush.bf16.msra.mxu0 %v2646
        %2670 = vmatmul.bf16.gmra.mxu0 %v2593
        %v2671 = vpop.f32.mrf.mxu0
        %v2672 = vadd.f32 0.0, %v2671
        %v2673 = vpop.f32.mrf.mxu0
        %v2674 = vadd.f32 0.0, %v2673
        %2675 = vmatmul.bf16.gmra.mxu0 %v2594
        %v2676 = vpop.f32.mrf.mxu0
        %v2677 = vadd.f32 0.0, %v2676
        %v2678 = vpop.f32.mrf.mxu0
        %v2679 = vadd.f32 0.0, %v2678
        %2680 = vmatmul.bf16.gmra.mxu0 %v2595
        %v2681 = vpop.f32.mrf.mxu0
        %v2682 = vadd.f32 0.0, %v2681
        %v2683 = vpop.f32.mrf.mxu0
        %v2684 = vadd.f32 0.0, %v2683
        %2685 = vmatmul.bf16.gmra.mxu0 %v2596
        %v2686 = vpop.f32.mrf.mxu0
        %v2687 = vadd.f32 0.0, %v2686
        %v2688 = vpop.f32.mrf.mxu0
        %v2689 = vadd.f32 0.0, %v2688
        %2690 = vdwg.mxu0
        %v2691 = vadd.f32 %v2576, %v2672
        %v2692 = vadd.f32 %v2577, %v2674
        %v2693 = vadd.f32 %v2578, %v2677
        %v2694 = vadd.f32 %v2579, %v2679
        %v2695 = vadd.f32 %v2580, %v2682
        %v2696 = vadd.f32 %v2581, %v2684
        %v2697 = vadd.f32 %v2582, %v2687
        %v2698 = vadd.f32 %v2583, %v2689
        %v2699 = vld [vmem:[%s2584 + $0x1] sm:$0xff]
        %v2700 = vld [vmem:[%s2584 + $0x11] sm:$0xff]
        %v2701 = vld [vmem:[%s2584 + $0x21] sm:$0xff]
        %v2702 = vld [vmem:[%s2584 + $0x31] sm:$0xff]
        %v2703 = vld [vmem:[%s2584 + $0x41] sm:$0xff]
        %v2704 = vld [vmem:[%s2584 + $0x51] sm:$0xff]
        %v2705 = vld [vmem:[%s2584 + $0x61] sm:$0xff]
        %v2706 = vld [vmem:[%s2584 + $0x71] sm:$0xff]
        %v2707 = vpack.c.bf16 %v2700, %v2699
        %v2708 = vpack.c.bf16 %v2702, %v2701
        %v2709 = vpack.c.bf16 %v2704, %v2703
        %v2710 = vpack.c.bf16 %v2706, %v2705
        %s2711 = scalar_lea.vmem %s3, 448
        %v2712 = vld [vmem:[%s2711] sm:$0xf]
        %v2713 = vld [vmem:[%s2711 + $0x4] sm:$0xf]
        %v2714 = vld [vmem:[%s2711 + $0x8] sm:$0xf]
        %v2715 = vld [vmem:[%s2711 + $0xc] sm:$0xf]
        %v2716 = vld [vmem:[%s2711 + $0x10] sm:$0xf]
        %v2717 = vld [vmem:[%s2711 + $0x14] sm:$0xf]
        %v2718 = vld [vmem:[%s2711 + $0x18] sm:$0xf]
        %v2719 = vld [vmem:[%s2711 + $0x1c] sm:$0xf]
        %v2720 = vld [vmem:[%s2711 + $0x20] sm:$0xf]
        %v2721 = vld [vmem:[%s2711 + $0x24] sm:$0xf]
        %v2722 = vld [vmem:[%s2711 + $0x28] sm:$0xf]
        %v2723 = vld [vmem:[%s2711 + $0x2c] sm:$0xf]
        %v2724 = vld [vmem:[%s2711 + $0x30] sm:$0xf]
        %v2725 = vld [vmem:[%s2711 + $0x34] sm:$0xf]
        %v2726 = vld [vmem:[%s2711 + $0x38] sm:$0xf]
        %v2727 = vld [vmem:[%s2711 + $0x3c] sm:$0xf]
        %v2744 = vunpack.c.l.b16 %v2712
        %v2745 = vunpack.c.l.b16 %v2713
        %v2746 = vunpack.c.l.b16 %v2714
        %v2747 = vunpack.c.l.b16 %v2715
        %v2748 = vunpack.c.l.b16 %v2716
        %v2749 = vunpack.c.l.b16 %v2717
        %v2750 = vunpack.c.l.b16 %v2718
        %v2751 = vunpack.c.l.b16 %v2719
        %v2752 = vunpack.c.l.b16 %v2720
        %v2753 = vunpack.c.l.b16 %v2721
        %v2754 = vunpack.c.l.b16 %v2722
        %v2755 = vunpack.c.l.b16 %v2723
        %v2756 = vunpack.c.l.b16 %v2724
        %v2757 = vunpack.c.l.b16 %v2725
        %v2758 = vunpack.c.l.b16 %v2726
        %v2759 = vunpack.c.l.b16 %v2727
        %v2760 = vpack.c.b16 %v2745, %v2744
        %v2761 = vpack.c.b16 %v2747, %v2746
        %v2762 = vpack.c.b16 %v2749, %v2748
        %v2763 = vpack.c.b16 %v2751, %v2750
        %v2764 = vpack.c.b16 %v2753, %v2752
        %v2765 = vpack.c.b16 %v2755, %v2754
        %v2766 = vpack.c.b16 %v2757, %v2756
        %v2767 = vpack.c.b16 %v2759, %v2758
        %2776 = vmatpush.bf16.msra.mxu0 %v2767
        %2777 = vmatpush.bf16.msra.mxu0 %v2766
        %2778 = vmatpush.bf16.msra.mxu0 %v2765
        %2779 = vmatpush.bf16.msra.mxu0 %v2764
        %2780 = vmatpush.bf16.msra.mxu0 %v2763
        %2781 = vmatpush.bf16.msra.mxu0 %v2762
        %2782 = vmatpush.bf16.msra.mxu0 %v2761
        %2783 = vmatpush.bf16.msra.mxu0 %v2760
        %2784 = vmatmul.bf16.gmra.mxu0 %v2707
        %v2785 = vpop.f32.mrf.mxu0
        %v2786 = vadd.f32 0.0, %v2785
        %v2787 = vpop.f32.mrf.mxu0
        %v2788 = vadd.f32 0.0, %v2787
        %2789 = vmatmul.bf16.gmra.mxu0 %v2708
        %v2790 = vpop.f32.mrf.mxu0
        %v2791 = vadd.f32 0.0, %v2790
        %v2792 = vpop.f32.mrf.mxu0
        %v2793 = vadd.f32 0.0, %v2792
        %2794 = vmatmul.bf16.gmra.mxu0 %v2709
        %v2795 = vpop.f32.mrf.mxu0
        %v2796 = vadd.f32 0.0, %v2795
        %v2797 = vpop.f32.mrf.mxu0
        %v2798 = vadd.f32 0.0, %v2797
        %2799 = vmatmul.bf16.gmra.mxu0 %v2710
        %v2800 = vpop.f32.mrf.mxu0
        %v2801 = vadd.f32 0.0, %v2800
        %v2802 = vpop.f32.mrf.mxu0
        %v2803 = vadd.f32 0.0, %v2802
        %2804 = vdwg.mxu0
        %v2805 = vadd.f32 %v2691, %v2786
        %v2806 = vadd.f32 %v2692, %v2788
        %v2807 = vadd.f32 %v2693, %v2791
        %v2808 = vadd.f32 %v2694, %v2793
        %v2809 = vadd.f32 %v2695, %v2796
        %v2810 = vadd.f32 %v2696, %v2798
        %v2811 = vadd.f32 %v2697, %v2801
        %v2812 = vadd.f32 %v2698, %v2803
        %v2813 = vld [vmem:[%s2584 + $0x2] sm:$0xff]
        %v2814 = vld [vmem:[%s2584 + $0x12] sm:$0xff]
        %v2815 = vld [vmem:[%s2584 + $0x22] sm:$0xff]
        %v2816 = vld [vmem:[%s2584 + $0x32] sm:$0xff]
        %v2817 = vld [vmem:[%s2584 + $0x42] sm:$0xff]
        %v2818 = vld [vmem:[%s2584 + $0x52] sm:$0xff]
        %v2819 = vld [vmem:[%s2584 + $0x62] sm:$0xff]
        %v2820 = vld [vmem:[%s2584 + $0x72] sm:$0xff]
        %v2821 = vpack.c.bf16 %v2814, %v2813
        %v2822 = vpack.c.bf16 %v2816, %v2815
        %v2823 = vpack.c.bf16 %v2818, %v2817
        %v2824 = vpack.c.bf16 %v2820, %v2819
        %s2825 = scalar_lea.vmem %s3, 512
        %v2826 = vld [vmem:[%s2825] sm:$0xf]
        %v2827 = vld [vmem:[%s2825 + $0x4] sm:$0xf]
        %v2828 = vld [vmem:[%s2825 + $0x8] sm:$0xf]
        %v2829 = vld [vmem:[%s2825 + $0xc] sm:$0xf]
        %v2830 = vld [vmem:[%s2825 + $0x10] sm:$0xf]
        %v2831 = vld [vmem:[%s2825 + $0x14] sm:$0xf]
        %v2832 = vld [vmem:[%s2825 + $0x18] sm:$0xf]
        %v2833 = vld [vmem:[%s2825 + $0x1c] sm:$0xf]
        %v2834 = vld [vmem:[%s2825 + $0x20] sm:$0xf]
        %v2835 = vld [vmem:[%s2825 + $0x24] sm:$0xf]
        %v2836 = vld [vmem:[%s2825 + $0x28] sm:$0xf]
        %v2837 = vld [vmem:[%s2825 + $0x2c] sm:$0xf]
        %v2838 = vld [vmem:[%s2825 + $0x30] sm:$0xf]
        %v2839 = vld [vmem:[%s2825 + $0x34] sm:$0xf]
        %v2840 = vld [vmem:[%s2825 + $0x38] sm:$0xf]
        %v2841 = vld [vmem:[%s2825 + $0x3c] sm:$0xf]
        %v2858 = vunpack.c.l.b16 %v2826
        %v2859 = vunpack.c.l.b16 %v2827
        %v2860 = vunpack.c.l.b16 %v2828
        %v2861 = vunpack.c.l.b16 %v2829
        %v2862 = vunpack.c.l.b16 %v2830
        %v2863 = vunpack.c.l.b16 %v2831
        %v2864 = vunpack.c.l.b16 %v2832
        %v2865 = vunpack.c.l.b16 %v2833
        %v2866 = vunpack.c.l.b16 %v2834
        %v2867 = vunpack.c.l.b16 %v2835
        %v2868 = vunpack.c.l.b16 %v2836
        %v2869 = vunpack.c.l.b16 %v2837
        %v2870 = vunpack.c.l.b16 %v2838
        %v2871 = vunpack.c.l.b16 %v2839
        %v2872 = vunpack.c.l.b16 %v2840
        %v2873 = vunpack.c.l.b16 %v2841
        %v2874 = vpack.c.b16 %v2859, %v2858
        %v2875 = vpack.c.b16 %v2861, %v2860
        %v2876 = vpack.c.b16 %v2863, %v2862
        %v2877 = vpack.c.b16 %v2865, %v2864
        %v2878 = vpack.c.b16 %v2867, %v2866
        %v2879 = vpack.c.b16 %v2869, %v2868
        %v2880 = vpack.c.b16 %v2871, %v2870
        %v2881 = vpack.c.b16 %v2873, %v2872
        %2890 = vmatpush.bf16.msra.mxu0 %v2881
        %2891 = vmatpush.bf16.msra.mxu0 %v2880
        %2892 = vmatpush.bf16.msra.mxu0 %v2879
        %2893 = vmatpush.bf16.msra.mxu0 %v2878
        %2894 = vmatpush.bf16.msra.mxu0 %v2877
        %2895 = vmatpush.bf16.msra.mxu0 %v2876
        %2896 = vmatpush.bf16.msra.mxu0 %v2875
        %2897 = vmatpush.bf16.msra.mxu0 %v2874
        %2898 = vmatmul.bf16.gmra.mxu0 %v2821
        %v2899 = vpop.f32.mrf.mxu0
        %v2900 = vadd.f32 0.0, %v2899
        %v2901 = vpop.f32.mrf.mxu0
        %v2902 = vadd.f32 0.0, %v2901
        %2903 = vmatmul.bf16.gmra.mxu0 %v2822
        %v2904 = vpop.f32.mrf.mxu0
        %v2905 = vadd.f32 0.0, %v2904
        %v2906 = vpop.f32.mrf.mxu0
        %v2907 = vadd.f32 0.0, %v2906
        %2908 = vmatmul.bf16.gmra.mxu0 %v2823
        %v2909 = vpop.f32.mrf.mxu0
        %v2910 = vadd.f32 0.0, %v2909
        %v2911 = vpop.f32.mrf.mxu0
        %v2912 = vadd.f32 0.0, %v2911
        %2913 = vmatmul.bf16.gmra.mxu0 %v2824
        %v2914 = vpop.f32.mrf.mxu0
        %v2915 = vadd.f32 0.0, %v2914
        %v2916 = vpop.f32.mrf.mxu0
        %v2917 = vadd.f32 0.0, %v2916
        %2918 = vdwg.mxu0
        %v2919 = vadd.f32 %v2805, %v2900
        %v2920 = vadd.f32 %v2806, %v2902
        %v2921 = vadd.f32 %v2807, %v2905
        %v2922 = vadd.f32 %v2808, %v2907
        %v2923 = vadd.f32 %v2809, %v2910
        %v2924 = vadd.f32 %v2810, %v2912
        %v2925 = vadd.f32 %v2811, %v2915
        %v2926 = vadd.f32 %v2812, %v2917
        %v2927 = vld [vmem:[%s4] sm:$0x1]
        %v2929 = vperm.slane %v2927, 0
        %v2931 = vadd.f32 %v2919, %v2929
        %v2932 = vadd.f32 %v2920, %v2929
        %v2933 = vadd.f32 %v2921, %v2929
        %v2934 = vadd.f32 %v2922, %v2929
        %v2935 = vadd.f32 %v2923, %v2929
        %v2936 = vadd.f32 %v2924, %v2929
        %v2937 = vadd.f32 %v2925, %v2929
        %v2938 = vadd.f32 %v2926, %v2929
        %v2939 = vld [vmem:[%s758] sm:$0xf]
        %v2940 = vld [vmem:[%s758 + $0x4] sm:$0x1]
        %v2941 = vld [vmem:[%s758 + $0x8] sm:$0xf]
        %v2942 = vld [vmem:[%s758 + $0xc] sm:$0x1]
        %v2943 = vld [vmem:[%s758 + $0x10] sm:$0xf]
        %v2944 = vld [vmem:[%s758 + $0x14] sm:$0x1]
        %v2945 = vld [vmem:[%s758 + $0x18] sm:$0xf]
        %v2946 = vld [vmem:[%s758 + $0x1c] sm:$0x1]
        %v2947 = vld [vmem:[%s758 + $0x20] sm:$0xf]
        %v2948 = vld [vmem:[%s758 + $0x24] sm:$0x1]
        %v2949 = vld [vmem:[%s758 + $0x28] sm:$0xf]
        %v2950 = vld [vmem:[%s758 + $0x2c] sm:$0x1]
        %v2951 = vld [vmem:[%s758 + $0x30] sm:$0xf]
        %v2952 = vld [vmem:[%s758 + $0x34] sm:$0x1]
        %v2953 = vld [vmem:[%s758 + $0x38] sm:$0xf]
        %v2954 = vld [vmem:[%s758 + $0x3c] sm:$0x1]
        %v2956 = vshrl.u32 %v2939, 16
        %v2958 = vrot.slane %v2956, 4
        %v2959 = vshll.u32 %v2939, 16
        %v2961 = vrot.slane %v2959, 5
        %v2962 = vor.u32 %v2958, %v2961
        %v2963 = vrot.slane %v2962, 4
        %v2965 = vshll.u32 %v2940, 16
        %v2967 = vrot.slane %v2965, 5
        %v2968 = vsel %vm257, %v2963, %v2967
        %v2970 = vshrl.u32 %v2941, 16
        %v2972 = vrot.slane %v2970, 4
        %v2973 = vshll.u32 %v2941, 16
        %v2975 = vrot.slane %v2973, 5
        %v2976 = vor.u32 %v2972, %v2975
        %v2977 = vrot.slane %v2976, 4
        %v2979 = vshll.u32 %v2942, 16
        %v2981 = vrot.slane %v2979, 5
        %v2982 = vsel %vm257, %v2977, %v2981
        %v2984 = vshrl.u32 %v2943, 16
        %v2986 = vrot.slane %v2984, 4
        %v2987 = vshll.u32 %v2943, 16
        %v2989 = vrot.slane %v2987, 5
        %v2990 = vor.u32 %v2986, %v2989
        %v2991 = vrot.slane %v2990, 4
        %v2993 = vshll.u32 %v2944, 16
        %v2995 = vrot.slane %v2993, 5
        %v2996 = vsel %vm257, %v2991, %v2995
        %v2998 = vshrl.u32 %v2945, 16
        %v3000 = vrot.slane %v2998, 4
        %v3001 = vshll.u32 %v2945, 16
        %v3003 = vrot.slane %v3001, 5
        %v3004 = vor.u32 %v3000, %v3003
        %v3005 = vrot.slane %v3004, 4
        %v3007 = vshll.u32 %v2946, 16
        %v3009 = vrot.slane %v3007, 5
        %v3010 = vsel %vm257, %v3005, %v3009
        %v3012 = vshrl.u32 %v2947, 16
        %v3014 = vrot.slane %v3012, 4
        %v3015 = vshll.u32 %v2947, 16
        %v3017 = vrot.slane %v3015, 5
        %v3018 = vor.u32 %v3014, %v3017
        %v3019 = vrot.slane %v3018, 4
        %v3021 = vshll.u32 %v2948, 16
        %v3023 = vrot.slane %v3021, 5
        %v3024 = vsel %vm257, %v3019, %v3023
        %v3026 = vshrl.u32 %v2949, 16
        %v3028 = vrot.slane %v3026, 4
        %v3029 = vshll.u32 %v2949, 16
        %v3031 = vrot.slane %v3029, 5
        %v3032 = vor.u32 %v3028, %v3031
        %v3033 = vrot.slane %v3032, 4
        %v3035 = vshll.u32 %v2950, 16
        %v3037 = vrot.slane %v3035, 5
        %v3038 = vsel %vm257, %v3033, %v3037
        %v3040 = vshrl.u32 %v2951, 16
        %v3042 = vrot.slane %v3040, 4
        %v3043 = vshll.u32 %v2951, 16
        %v3045 = vrot.slane %v3043, 5
        %v3046 = vor.u32 %v3042, %v3045
        %v3047 = vrot.slane %v3046, 4
        %v3049 = vshll.u32 %v2952, 16
        %v3051 = vrot.slane %v3049, 5
        %v3052 = vsel %vm257, %v3047, %v3051
        %v3054 = vshrl.u32 %v2953, 16
        %v3056 = vrot.slane %v3054, 4
        %v3057 = vshll.u32 %v2953, 16
        %v3059 = vrot.slane %v3057, 5
        %v3060 = vor.u32 %v3056, %v3059
        %v3061 = vrot.slane %v3060, 4
        %v3063 = vshll.u32 %v2954, 16
        %v3065 = vrot.slane %v3063, 5
        %v3066 = vsel %vm257, %v3061, %v3065
        %v3075 = vunpack.c.l.bf16 %v2968
        %v3076 = vunpack.c.l.bf16 %v2982
        %v3077 = vunpack.c.l.bf16 %v2996
        %v3078 = vunpack.c.l.bf16 %v3010
        %v3079 = vunpack.c.l.bf16 %v3024
        %v3080 = vunpack.c.l.bf16 %v3038
        %v3081 = vunpack.c.l.bf16 %v3052
        %v3082 = vunpack.c.l.bf16 %v3066
        %v3083 = vadd.f32 %v2931, %v3075
        %v3084 = vadd.f32 %v2932, %v3076
        %v3085 = vadd.f32 %v2933, %v3077
        %v3086 = vadd.f32 %v2934, %v3078
        %v3087 = vadd.f32 %v2935, %v3079
        %v3088 = vadd.f32 %v2936, %v3080
        %v3089 = vadd.f32 %v2937, %v3081
        %v3090 = vadd.f32 %v2938, %v3082
        %v3091 = vmax.f32 %v3083, 0.0
        %v3092 = vmax.f32 %v3084, 0.0
        %v3093 = vmax.f32 %v3085, 0.0
        %v3094 = vmax.f32 %v3086, 0.0
        %v3095 = vmax.f32 %v3087, 0.0
        %v3096 = vmax.f32 %v3088, 0.0
        %v3097 = vmax.f32 %v3089, 0.0
        %v3098 = vmax.f32 %v3090, 0.0
        %v3099 = vpack.c.bf16 %v3091, %v3091
        %v3100 = vpack.c.bf16 %v3092, %v3092
        %v3101 = vpack.c.bf16 %v3093, %v3093
        %v3102 = vpack.c.bf16 %v3094, %v3094
        %v3103 = vpack.c.bf16 %v3095, %v3095
        %v3104 = vpack.c.bf16 %v3096, %v3096
        %v3105 = vpack.c.bf16 %v3097, %v3097
        %v3106 = vpack.c.bf16 %v3098, %v3098
        %3107 = vst [vmem:[%s217] sm:$0xf] %v3099
        %3108 = vst [vmem:[%s217 + $0x4] sm:$0xf] %v3100
        %3109 = vst [vmem:[%s217 + $0x8] sm:$0xf] %v3101
        %3110 = vst [vmem:[%s217 + $0xc] sm:$0xf] %v3102
        %3111 = vst [vmem:[%s217 + $0x10] sm:$0xf] %v3103
        %3112 = vst [vmem:[%s217 + $0x14] sm:$0xf] %v3104
        %3113 = vst [vmem:[%s217 + $0x18] sm:$0xf] %v3105
        %3114 = vst [vmem:[%s217 + $0x1c] sm:$0xf] %v3106
        %s3115 = sand.u32 %s137, 1
        %s3116 = scalar_lea.sflag [#allocation4], %s3115
        %s3117 = sand.u32 %s137, 1
        %s3118 = smul.addr %s3117, 32
        %s3119 = scalar_lea.vmem [#allocation3], %s3118
        // Predicated region
        $region41: #{forward.3} parent=39 // pred_check
          %p3120 = pneg %p147
        $region42: #{forward.3} parent=39 // pred_check_branch
          %3122 = sbr.rel (%p3120) target = $region44
        $region43: #{forward.3} parent=39 // pred_region
          %3124 = vsyncadd %s3116, 0
          %s3125 = smul.addr %s19, 8
          %s3126 = smul.addr %s3125, 4
          %s3127 = scalar_lea.hbm %s5, %s3126
          %s3128 = sshll.u32 %s3119, 4
          %s3129 = int_to_ptr.vmem [resolvable:$true] %s3128
          %s3130 = sshll.u32 %s3127, 4
          %s3131 = int_to_ptr.hbm [resolvable:$true] %s3130
          %3136 = dma.vmem_to_hbm [thread:$0]  %s3129, 512, %s3131, %s3116, 64, 64, 4
        $region44: #{forward.3} parent=39 // pred_fallthru
          _
      $region40: #{forward.3} parent=5 // pred_fallthru
        _
      %p3137 = scmp.le.s32.totalorder 2, %s14
      // Predicated region
      $region45: #{forward.3} parent=5 // pred_check
        %p3138 = pneg %p3137
      $region46: #{forward.3} parent=5 // pred_check_branch
        %3140 = sbr.rel (%p3138) target = $region48
      $region47: #{forward.3} parent=5 // pred_region
        %s3141 = ssub.s32 %s14, 2
        // Predicated region
        $region49: #{forward.3} parent=47 // pred_check
          %p3142 = pneg %p153
        $region50: #{forward.3} parent=47 // pred_check_branch
          %3144 = sbr.rel (%p3142) target = $region52
        $region51: #{forward.3} parent=47 // pred_region
          %s3145 = sand.u32 %s138, 1
          %s3146 = scalar_lea.sflag [#allocation4], %s3145
          %s3147 = sand.u32 %s138, 1
          %s3148 = smul.addr %s3147, 32
          %s3149 = scalar_lea.vmem [#allocation3], %s3148
          %3151 = dma.done %s3146, 512
        $region52: #{forward.3} parent=47 // pred_fallthru
          _
      $region48: #{forward.3} parent=5 // pred_fallthru
        _
    $region6: #{forward.3} parent=1 // loop_footer
      %s18 = sadd.s32 1, %s14
    $region7: #{forward.3} parent=1 // loop_footer_branch
      %13 = sbr.rel target = $region3
    $region8: #{forward.3} parent=1 // loop_exit
      _
    %3152 = vsyncpa [#allocation4], 1
    %s3153 = scalar_lea.sflag [#allocation4], 1
    %3154 = vsyncpa %s3153, 1

</llo_original>
